<compile_context>
chip_gen: v6e
topology: v6e:2x2x1
jax: 0.10.0
libtpu: 0.0.40
codegen_flags: <defaults>
</compile_context>

<pallas_src>
import functools
import math

import jax
import jax.numpy as jnp
from jax import lax
from jax.experimental import pallas as pl
from jax.experimental.pallas import tpu as pltpu


_NEG_BIG = -1e30  # finite "minus infinity": keeps 0 * masked_sim == 0 (no NaN)


def _round_up(x, m):
    return (x + m - 1) // m * m


def _contrastive_pair_kernel(a_idx_ref, b_idx_ref,         # scalar prefetch (SMEM)
                             lab_col_ref, lab_row_ref,     # (TM,1) / (1,TN) int32
                             fa_ref, fb_ref,               # bf16 feature tiles
                             out_ref,                      # (1,TM,1) f32
                             m_sc, l_sc, slab_sc, sls_sc,  # (TM,1) f32 scratch
                             *, resident_b, tile_n):
    del a_idx_ref, b_idx_ref  # only consumed by the index_maps
    j = pl.program_id(2)
    nj = pl.num_programs(2)

    @pl.when(j == 0)
    def _init():
        m_sc[...] = jnp.full(m_sc.shape, -jnp.inf, jnp.float32)
        l_sc[...] = jnp.zeros(l_sc.shape, jnp.float32)
        slab_sc[...] = jnp.zeros(slab_sc.shape, jnp.float32)
        sls_sc[...] = jnp.zeros(sls_sc.shape, jnp.float32)

    # Features arrive pre-normalized (and A pre-scaled by logit_scale) in bf16.
    a = fa_ref[0]                                             # (TM, D) bf16
    if resident_b:
        start = pl.multiple_of(j * tile_n, tile_n)
        b = fb_ref[0, pl.ds(start, tile_n), :]                # (TN, D) bf16
    else:
        b = fb_ref[0]                                         # (TN, D) bf16

    # logit_scale is already folded into `a`; f32 accumulation on the MXU.
    sim = lax.dot_general(
        a, b, dimension_numbers=(((1,), (1,)), ((), ())),
        preferred_element_type=jnp.float32)                   # (TM, TN) f32

    lab_i = lab_col_ref[...]                                  # (TM, 1) int32
    lab_j = lab_row_ref[...]                                  # (1, TN) int32
    label = (lab_i == lab_j).astype(jnp.float32)              # tile-local mask
    col_valid = lab_j >= 0                                    # padded cols = -1
    sim = jnp.where(col_valid, sim, jnp.float32(_NEG_BIG))

    # Label accumulators first, so the sim tile can die before the exp pass
    # (shorter live ranges -> less spill at TN=256).
    slab_sc[...] += jnp.sum(label, axis=1, keepdims=True)
    sls_sc[...] += jnp.sum(label * sim, axis=1, keepdims=True)

    # Online logsumexp per row of the i-tile.
    m_prev = m_sc[...]
    m_new = jnp.maximum(m_prev, jnp.max(sim, axis=1, keepdims=True))
    alpha = jnp.exp(m_prev - m_new)
    l_sc[...] = alpha * l_sc[...] + jnp.sum(jnp.exp(sim - m_new),
                                            axis=1, keepdims=True)
    m_sc[...] = m_new

    @pl.when(j == nj - 1)
    def _finalize():
        # per-row soft-CE: sum_j label_ij * (lse_i - sim_ij)
        lse = m_sc[...] + jnp.log(l_sc[...])                  # (TM, 1)
        row_loss = slab_sc[...] * lse - sls_sc[...]           # (TM, 1)
        row_valid = lab_col_ref[...] >= 0                     # padded rows = -1
        row_loss = jnp.where(row_valid, row_loss, jnp.float32(0.0))
        out_ref[...] = row_loss[None, :, :]                   # (1, TM, 1)


def contrastive_loss_pallas(image_features, dna_features, text_features,
                            labels, logit_scale, *, tile_m=256, tile_n=256,
                            vmem_budget_bytes=48 * 1024 * 1024):
    """Forward of bioscanclip ContrastiveLoss (CrossEntropyLoss criterion)."""
    B, D = image_features.shape
    B_pad = _round_up(B, math.lcm(tile_m, tile_n))
    D_pad = _round_up(max(D, 1), 128)

    scale = jnp.asarray(logit_scale, dtype=jnp.float32)

    def prep(x, s):
        # F.normalize(x, p=2, dim=1) with eps=1e-12, in f32; optional pre-scale
        # (logit_scale folded into the A operand) applied BEFORE the bf16 cast.
        x = x.astype(jnp.float32)
        nrm = jnp.maximum(jnp.sqrt(jnp.sum(x * x, axis=1, keepdims=True)), 1e-12)
        y = (x / nrm) * s
        y = jnp.pad(y, ((0, B_pad - B), (0, D_pad - D)))
        return y.astype(jnp.bfloat16)

    modalities = (image_features, dna_features, text_features)
    feats_a = jnp.stack([prep(f, scale) for f in modalities])       # scaled A side
    feats_b = jnp.stack([prep(f, jnp.float32(1.0)) for f in modalities])

    lab = jnp.pad(labels.astype(jnp.int32), (0, B_pad - B), constant_values=-1)
    lab_col = lab.reshape(B_pad, 1)
    lab_row = lab.reshape(1, B_pad)

    # Ordered pairs (a, b), a != b, reordered so consecutive pairs share `b`
    # -> the resident B buffer is re-DMA'd only 3x over the whole grid.
    a_idx = jnp.array([0, 2, 0, 1, 1, 2], dtype=jnp.int32)
    b_idx = jnp.array([1, 1, 2, 2, 0, 0], dtype=jnp.int32)
    n_pairs = 6

    ni = B_pad // tile_m
    nj = B_pad // tile_n

    # VMEM budget check (v7x has only 64 MiB physical): resident B is
    # double-buffered by the pipeline.
    resident_fb_bytes = 2 * B_pad * D_pad * 2
    other_bytes = (2 * tile_m * D_pad * 2           # A tile double buffer (bf16)
                   + 2 * tile_m * 128 * 4           # label column window
                   + 2 * 8 * tile_n * 4             # label row window
                   + 2 * tile_m * 128 * 4           # output window
                   + 4 * tile_m * 128 * 4           # scratch accumulators
                   + 8 * tile_m * tile_n * 4)       # sim-sized temporaries headroom
    resident_b = resident_fb_bytes + other_bytes <= vmem_budget_bytes

    if resident_b:
        fb_spec = pl.BlockSpec((1, B_pad, D_pad),
                               lambda p, i, j, a, b: (b[p], 0, 0))
    else:
        # Streamed fallback (large B_pad * D_pad): deeper B pipeline; for this
        # path prefer tile_m=512 to raise flops-per-streamed-B-byte.
        fb_spec = pl.BlockSpec((1, tile_n, D_pad),
                               lambda p, i, j, a, b: (b[p], j, 0),
                               pipeline_mode=pl.Buffered(3))

    grid_spec = pltpu.PrefetchScalarGridSpec(
        num_scalar_prefetch=2,
        grid=(n_pairs, ni, nj),
        in_specs=[
            pl.BlockSpec((tile_m, 1), lambda p, i, j, a, b: (i, 0)),   # row labels
            pl.BlockSpec((1, tile_n), lambda p, i, j, a, b: (0, j)),   # col labels
            pl.BlockSpec((1, tile_m, D_pad),
                         lambda p, i, j, a, b: (a[p], i, 0)),          # A tile
            fb_spec,                                                   # B (resident)
        ],
        out_specs=pl.BlockSpec((1, tile_m, 1), lambda p, i, j, a, b: (p, i, 0)),
        scratch_shapes=[pltpu.VMEM((tile_m, 1), jnp.float32)] * 4,
    )

    fb_bytes = (3 * B_pad * D_pad * 2 if resident_b
                else n_pairs * ni * nj * tile_n * D_pad * 2)
    flops = 2 * n_pairs * B_pad * B_pad * D_pad + 12 * n_pairs * B_pad * B_pad
    transcendentals = n_pairs * B_pad * B_pad
    bytes_accessed = (n_pairs * ni * tile_m * D_pad * 2     # A: once per (p, i)
                      + fb_bytes                            # B: 3x (resident)
                      + n_pairs * ni * (tile_m + B_pad) * 4 # label slices
                      + n_pairs * B_pad * 4)                # output

    kernel = functools.partial(_contrastive_pair_kernel,
                               resident_b=resident_b, tile_n=tile_n)

    out = pl.pallas_call(
        kernel,
        out_shape=jax.ShapeDtypeStruct((n_pairs, B_pad, 1), jnp.float32),
        grid_spec=grid_spec,
        compiler_params=pltpu.CompilerParams(
            dimension_semantics=("parallel", "parallel", "arbitrary"),
            vmem_limit_bytes=vmem_budget_bytes),
        cost_estimate=pl.CostEstimate(flops=flops,
                                      transcendentals=transcendentals,
                                      bytes_accessed=bytes_accessed),
    )(a_idx, b_idx, lab_col, lab_row, feats_a, feats_b)

    # Padded rows are zeroed in-kernel; tiny (6 * B_pad) reduction left to XLA.
    return jnp.sum(out) / (n_pairs * B)


def _reference_loss(img, dna, txt, labels, scale, *, bf16_operands=False):
    """Pure-JAX mirror of the PyTorch forward (for sanity checks)."""
    def norm(x):
        x = x.astype(jnp.float32)
        return x / jnp.maximum(jnp.linalg.norm(x, axis=1, keepdims=True), 1e-12)

    feats = [norm(img), norm(dna), norm(txt)]
    if bf16_operands:
        # Mirror the kernel's precision: scale folded into bf16 A, bf16 B.
        fa = [(f * scale).astype(jnp.bfloat16).astype(jnp.float32) for f in feats]
        fb = [f.astype(jnp.bfloat16).astype(jnp.float32) for f in feats]
        def sim(a, b):
            return fa[a] @ fb[b].T
    else:
        def sim(a, b):
            return scale * (feats[a] @ feats[b].T)

    label = (labels[None, :] == labels[:, None]).astype(jnp.float32)
    B = img.shape[0]
    losses = []
    for a in range(3):
        for b in range(3):
            if a == b:
                continue
            losses.append(-jnp.sum(label * jax.nn.log_softmax(sim(a, b), axis=1)) / B)
            losses.append(-jnp.sum(label * jax.nn.log_softmax(sim(b, a), axis=1)) / B)
    return sum(losses) / len(losses)


if __name__ == "__main__":
    key = jax.random.PRNGKey(0)
    k_img, k_dna, k_txt, k_lab = jax.random.split(key, 4)

    B, D = 8, 32
    image_features = jax.random.normal(k_img, (B, D), dtype=jnp.float32)
    dna_features = jax.random.normal(k_dna, (B, D), dtype=jnp.float32)
    text_features = jax.random.normal(k_txt, (B, D), dtype=jnp.float32)
    labels = jax.random.randint(k_lab, (B,), 0, 4, dtype=jnp.int32)
    logit_scale = jnp.float32(1.0 / 0.07)   # CLIP-style learned scale

    loss = contrastive_loss_pallas(image_features, dna_features, text_features,
                                   labels, logit_scale)
    loss = jax.block_until_ready(loss)

    # Tight check vs a precision-matched (bf16-operand, pre-scaled-A) reference ...
    ref_matched = _reference_loss(image_features, dna_features, text_features,
                                  labels, logit_scale, bf16_operands=True)
    assert jnp.allclose(loss, ref_matched, rtol=2e-3, atol=2e-3), (loss, ref_matched)
    # ... and a looser check vs the full-f32 PyTorch-equivalent math.
    ref_f32 = _reference_loss(image_features, dna_features, text_features,
                              labels, logit_scale, bf16_operands=False)
    assert jnp.allclose(loss, ref_f32, rtol=5e-2, atol=5e-2), (loss, ref_f32)

    print("KERNEL_OK")
</pallas_src>

<mosaic_0001>
module attributes {stable_mosaic.version = 11 : i64} {
  func.func @_contrastive_pair_kernel(%arg0: i32, %arg1: i32, %arg2: i32, %arg3: memref<6xi32, #tpu.memory_space<smem>>, %arg4: memref<6xi32, #tpu.memory_space<smem>>, %arg5: memref<256x1xi32, #tpu.memory_space<vmem>>, %arg6: memref<1x256xi32, #tpu.memory_space<vmem>>, %arg7: memref<1x256x128xbf16, #tpu.memory_space<vmem>>, %arg8: memref<1x256x128xbf16, #tpu.memory_space<vmem>>, %arg9: memref<1x256x1xf32, #tpu.memory_space<vmem>>, %arg10: memref<256x1xf32, #tpu.memory_space<vmem>>, %arg11: memref<256x1xf32, #tpu.memory_space<vmem>>, %arg12: memref<256x1xf32, #tpu.memory_space<vmem>>, %arg13: memref<256x1xf32, #tpu.memory_space<vmem>>) attributes {dimension_semantics = [#tpu.dimension_semantics<parallel>, #tpu.dimension_semantics<parallel>, #tpu.dimension_semantics<arbitrary>], iteration_bounds = array<i64: 6, 1, 1>, scalar_prefetch = 2 : i64, scratch_operands = 4 : i64, tpu.core_type = #tpu.core_type<tc>, window_params = [{transform_indices = @transform_0, window_bounds = array<i64: 256, 1>}, {transform_indices = @transform_1, window_bounds = array<i64: 1, 256>}, {transform_indices = @transform_2, window_bounds = array<i64: 1, 256, 128>}, {transform_indices = @transform_3, window_bounds = array<i64: 1, 256, 128>}, {transform_indices = @transform_4, window_bounds = array<i64: 1, 256, 1>}]} {
    %c0_i32 = arith.constant 0 : i32
    %0 = arith.cmpi eq, %arg2, %c0_i32 : i32
    %1 = arith.extui %0 : i1 to i32
    %c0_i32_0 = arith.constant 0 : i32
    %2 = arith.cmpi ne, %1, %c0_i32_0 : i32
    scf.if %2 {
      %cst_33 = arith.constant 0xFF800000 : f32
      %54 = vector.broadcast %cst_33 : f32 to vector<256x1xf32>
      %c0_34 = arith.constant 0 : index
      %c0_35 = arith.constant 0 : index
      %55 = vector.load %arg10[%c0_34, %c0_35] : memref<256x1xf32, #tpu.memory_space<vmem>>, vector<256x1xf32>
      tpu.vector_store %arg10[%c0_34, %c0_35], %54 {strides = array<i32>} : memref<256x1xf32, #tpu.memory_space<vmem>>, vector<256x1xf32>,
      %cst_36 = arith.constant 0.000000e+00 : f32
      %56 = vector.broadcast %cst_36 : f32 to vector<256x1xf32>
      %c0_37 = arith.constant 0 : index
      %c0_38 = arith.constant 0 : index
      %57 = vector.load %arg11[%c0_37, %c0_38] : memref<256x1xf32, #tpu.memory_space<vmem>>, vector<256x1xf32>
      tpu.vector_store %arg11[%c0_37, %c0_38], %56 {strides = array<i32>} : memref<256x1xf32, #tpu.memory_space<vmem>>, vector<256x1xf32>,
      %cst_39 = arith.constant 0.000000e+00 : f32
      %58 = vector.broadcast %cst_39 : f32 to vector<256x1xf32>
      %c0_40 = arith.constant 0 : index
      %c0_41 = arith.constant 0 : index
      %59 = vector.load %arg12[%c0_40, %c0_41] : memref<256x1xf32, #tpu.memory_space<vmem>>, vector<256x1xf32>
      tpu.vector_store %arg12[%c0_40, %c0_41], %58 {strides = array<i32>} : memref<256x1xf32, #tpu.memory_space<vmem>>, vector<256x1xf32>,
      %cst_42 = arith.constant 0.000000e+00 : f32
      %60 = vector.broadcast %cst_42 : f32 to vector<256x1xf32>
      %c0_43 = arith.constant 0 : index
      %c0_44 = arith.constant 0 : index
      %61 = vector.load %arg13[%c0_43, %c0_44] : memref<256x1xf32, #tpu.memory_space<vmem>>, vector<256x1xf32>
      tpu.vector_store %arg13[%c0_43, %c0_44], %60 {strides = array<i32>} : memref<256x1xf32, #tpu.memory_space<vmem>>, vector<256x1xf32>,
    } else {
    }
    %c0 = arith.constant 0 : index
    %c0_1 = arith.constant 0 : index
    %c0_2 = arith.constant 0 : index
    %3 = vector.load %arg7[%c0, %c0_1, %c0_2] : memref<1x256x128xbf16, #tpu.memory_space<vmem>>, vector<1x256x128xbf16>
    %4 = vector.shape_cast %3 : vector<1x256x128xbf16> to vector<256x128xbf16>
    %c256_i32 = arith.constant 256 : i32
    %5 = arith.muli %arg2, %c256_i32 : i32
    %6 = tpu.assume_multiple %5, 256 : i32
    %c0_3 = arith.constant 0 : index
    %7 = arith.index_cast %6 : i32 to index
    %c0_4 = arith.constant 0 : index
    %8 = vector.load %arg8[%c0_3, %7, %c0_4] : memref<1x256x128xbf16, #tpu.memory_space<vmem>>, vector<1x256x128xbf16>
    %9 = vector.shape_cast %8 : vector<1x256x128xbf16> to vector<256x128xbf16>
    %cst = arith.constant dense<0.000000e+00> : vector<256x256xf32>
    %10 = tpu.matmul %4, %9, %cst {dimension_numbers = #tpu.dot_dimension_numbers<[1], [1], [0], [0], [0, 0, 1, 0], [], []>} : vector<256x128xbf16>, vector<256x128xbf16>, vector<256x256xf32> -> vector<256x256xf32>
    %c0_5 = arith.constant 0 : index
    %c0_6 = arith.constant 0 : index
    %11 = vector.load %arg5[%c0_5, %c0_6] : memref<256x1xi32, #tpu.memory_space<vmem>>, vector<256x1xi32>
    %c0_7 = arith.constant 0 : index
    %c0_8 = arith.constant 0 : index
    %12 = vector.load %arg6[%c0_7, %c0_8] : memref<1x256xi32, #tpu.memory_space<vmem>>, vector<1x256xi32>
    %13 = vector.broadcast %11 : vector<256x1xi32> to vector<256x256xi32>
    %14 = vector.broadcast %12 : vector<1x256xi32> to vector<256x256xi32>
    %15 = arith.cmpi eq, %13, %14 : vector<256x256xi32>
    %16 = arith.extui %15 : vector<256x256xi1> to vector<256x256xi32>
    %17 = arith.sitofp %16 : vector<256x256xi32> to vector<256x256xf32>
    %c0_i32_9 = arith.constant 0 : i32
    %18 = vector.broadcast %c0_i32_9 : i32 to vector<1x256xi32>
    %19 = arith.cmpi sge, %12, %18 : vector<1x256xi32>
    %cst_10 = arith.constant -1.000000e+30 : f32
    %20 = vector.shape_cast %19 : vector<1x256xi1> to vector<1x256xi1>
    %21 = vector.broadcast %20 : vector<1x256xi1> to vector<256x256xi1>
    %22 = vector.broadcast %cst_10 : f32 to vector<256x256xf32>
    %23 = arith.select %21, %10, %22 : vector<256x256xi1>, vector<256x256xf32>
    %c0_11 = arith.constant 0 : index
    %c0_12 = arith.constant 0 : index
    %24 = vector.load %arg12[%c0_11, %c0_12] : memref<256x1xf32, #tpu.memory_space<vmem>>, vector<256x1xf32>
    %cst_13 = arith.constant dense<0.000000e+00> : vector<256xf32>
    %25 = vector.multi_reduction <add>, %17, %cst_13 [1] : vector<256x256xf32> to vector<256xf32>
    %26 = vector.shape_cast %25 : vector<256xf32> to vector<256x1xf32>
    %27 = arith.addf %24, %26 : vector<256x1xf32>
    %c0_14 = arith.constant 0 : index
    %c0_15 = arith.constant 0 : index
    %28 = vector.load %arg12[%c0_14, %c0_15] : memref<256x1xf32, #tpu.memory_space<vmem>>, vector<256x1xf32>
    tpu.vector_store %arg12[%c0_14, %c0_15], %27 {strides = array<i32>} : memref<256x1xf32, #tpu.memory_space<vmem>>, vector<256x1xf32>,
    %c0_16 = arith.constant 0 : index
    %c0_17 = arith.constant 0 : index
    %29 = vector.load %arg13[%c0_16, %c0_17] : memref<256x1xf32, #tpu.memory_space<vmem>>, vector<256x1xf32>
    %30 = arith.mulf %17, %23 : vector<256x256xf32>
    %cst_18 = arith.constant dense<0.000000e+00> : vector<256xf32>
    %31 = vector.multi_reduction <add>, %30, %cst_18 [1] : vector<256x256xf32> to vector<256xf32>
    %32 = vector.shape_cast %31 : vector<256xf32> to vector<256x1xf32>
    %33 = arith.addf %29, %32 : vector<256x1xf32>
    %c0_19 = arith.constant 0 : index
    %c0_20 = arith.constant 0 : index
    %34 = vector.load %arg13[%c0_19, %c0_20] : memref<256x1xf32, #tpu.memory_space<vmem>>, vector<256x1xf32>
    tpu.vector_store %arg13[%c0_19, %c0_20], %33 {strides = array<i32>} : memref<256x1xf32, #tpu.memory_space<vmem>>, vector<256x1xf32>,
    %c0_21 = arith.constant 0 : index
    %c0_22 = arith.constant 0 : index
    %35 = vector.load %arg10[%c0_21, %c0_22] : memref<256x1xf32, #tpu.memory_space<vmem>>, vector<256x1xf32>
    %cst_23 = arith.constant dense<0xFF800000> : vector<256xf32>
    %36 = vector.multi_reduction <maximumf>, %23, %cst_23 [1] : vector<256x256xf32> to vector<256xf32>
    %37 = vector.shape_cast %36 : vector<256xf32> to vector<256x1xf32>
    %38 = arith.maximumf %35, %37 : vector<256x1xf32>
    %39 = arith.subf %35, %38 : vector<256x1xf32>
    %40 = math.exp %39 : vector<256x1xf32>
    %c0_24 = arith.constant 0 : index
    %c0_25 = arith.constant 0 : index
    %41 = vector.load %arg11[%c0_24, %c0_25] : memref<256x1xf32, #tpu.memory_space<vmem>>, vector<256x1xf32>
    %42 = arith.mulf %40, %41 : vector<256x1xf32>
    %43 = vector.broadcast %38 : vector<256x1xf32> to vector<256x256xf32>
    %44 = arith.subf %23, %43 : vector<256x256xf32>
    %45 = math.exp %44 : vector<256x256xf32>
    %cst_26 = arith.constant dense<0.000000e+00> : vector<256xf32>
    %46 = vector.multi_reduction <add>, %45, %cst_26 [1] : vector<256x256xf32> to vector<256xf32>
    %47 = vector.shape_cast %46 : vector<256xf32> to vector<256x1xf32>
    %48 = arith.addf %42, %47 : vector<256x1xf32>
    %c0_27 = arith.constant 0 : index
    %c0_28 = arith.constant 0 : index
    %49 = vector.load %arg11[%c0_27, %c0_28] : memref<256x1xf32, #tpu.memory_space<vmem>>, vector<256x1xf32>
    tpu.vector_store %arg11[%c0_27, %c0_28], %48 {strides = array<i32>} : memref<256x1xf32, #tpu.memory_space<vmem>>, vector<256x1xf32>,
    %c0_29 = arith.constant 0 : index
    %c0_30 = arith.constant 0 : index
    %50 = vector.load %arg10[%c0_29, %c0_30] : memref<256x1xf32, #tpu.memory_space<vmem>>, vector<256x1xf32>
    tpu.vector_store %arg10[%c0_29, %c0_30], %38 {strides = array<i32>} : memref<256x1xf32, #tpu.memory_space<vmem>>, vector<256x1xf32>,
    %c0_i32_31 = arith.constant 0 : i32
    %51 = arith.cmpi eq, %arg2, %c0_i32_31 : i32
    %52 = arith.extui %51 : i1 to i32
    %c0_i32_32 = arith.constant 0 : i32
    %53 = arith.cmpi ne, %52, %c0_i32_32 : i32
    scf.if %53 {
      %c0_33 = arith.constant 0 : index
      %c0_34 = arith.constant 0 : index
      %54 = vector.load %arg10[%c0_33, %c0_34] : memref<256x1xf32, #tpu.memory_space<vmem>>, vector<256x1xf32>
      %c0_35 = arith.constant 0 : index
      %c0_36 = arith.constant 0 : index
      %55 = vector.load %arg11[%c0_35, %c0_36] : memref<256x1xf32, #tpu.memory_space<vmem>>, vector<256x1xf32>
      %56 = math.log %55 : vector<256x1xf32>
      %57 = arith.addf %54, %56 : vector<256x1xf32>
      %c0_37 = arith.constant 0 : index
      %c0_38 = arith.constant 0 : index
      %58 = vector.load %arg12[%c0_37, %c0_38] : memref<256x1xf32, #tpu.memory_space<vmem>>, vector<256x1xf32>
      %59 = arith.mulf %58, %57 : vector<256x1xf32>
      %c0_39 = arith.constant 0 : index
      %c0_40 = arith.constant 0 : index
      %60 = vector.load %arg13[%c0_39, %c0_40] : memref<256x1xf32, #tpu.memory_space<vmem>>, vector<256x1xf32>
      %61 = arith.subf %59, %60 : vector<256x1xf32>
      %c0_41 = arith.constant 0 : index
      %c0_42 = arith.constant 0 : index
      %62 = vector.load %arg5[%c0_41, %c0_42] : memref<256x1xi32, #tpu.memory_space<vmem>>, vector<256x1xi32>
      %c0_i32_43 = arith.constant 0 : i32
      %63 = vector.broadcast %c0_i32_43 : i32 to vector<256x1xi32>
      %64 = arith.cmpi sge, %62, %63 : vector<256x1xi32>
      %cst_44 = arith.constant 0.000000e+00 : f32
      %65 = vector.broadcast %cst_44 : f32 to vector<256x1xf32>
      %66 = arith.select %64, %61, %65 : vector<256x1xi1>, vector<256x1xf32>
      %67 = vector.shape_cast %66 : vector<256x1xf32> to vector<1x256x1xf32>
      %c0_45 = arith.constant 0 : index
      %c0_46 = arith.constant 0 : index
      %c0_47 = arith.constant 0 : index
      %68 = vector.load %arg9[%c0_45, %c0_46, %c0_47] : memref<1x256x1xf32, #tpu.memory_space<vmem>>, vector<1x256x1xf32>
      tpu.vector_store %arg9[%c0_45, %c0_46, %c0_47], %67 {strides = array<i32>} : memref<1x256x1xf32, #tpu.memory_space<vmem>>, vector<1x256x1xf32>,
    } else {
    }
    return
  }
  func.func @transform_0(%arg0: i32, %arg1: i32, %arg2: i32, %arg3: memref<6xi32, #tpu.memory_space<smem>>, %arg4: memref<6xi32, #tpu.memory_space<smem>>) -> (i32, i32) {
    %c0_i32 = arith.constant 0 : i32
    %c0_i32_0 = arith.constant 0 : i32
    return %arg1, %c0_i32 : i32, i32
  }
  func.func @transform_1(%arg0: i32, %arg1: i32, %arg2: i32, %arg3: memref<6xi32, #tpu.memory_space<smem>>, %arg4: memref<6xi32, #tpu.memory_space<smem>>) -> (i32, i32) {
    %c0_i32 = arith.constant 0 : i32
    %c0_i32_0 = arith.constant 0 : i32
    return %c0_i32, %arg2 : i32, i32
  }
  func.func @transform_2(%arg0: i32, %arg1: i32, %arg2: i32, %arg3: memref<6xi32, #tpu.memory_space<smem>>, %arg4: memref<6xi32, #tpu.memory_space<smem>>) -> (i32, i32, i32) {
    %0 = arith.index_cast %arg0 : i32 to index
    %1 = memref.load %arg3[%0] : memref<6xi32, #tpu.memory_space<smem>>
    %c0_i32 = arith.constant 0 : i32
    %c0_i32_0 = arith.constant 0 : i32
    return %1, %arg1, %c0_i32 : i32, i32, i32
  }
  func.func @transform_3(%arg0: i32, %arg1: i32, %arg2: i32, %arg3: memref<6xi32, #tpu.memory_space<smem>>, %arg4: memref<6xi32, #tpu.memory_space<smem>>) -> (i32, i32, i32) {
    %0 = arith.index_cast %arg0 : i32 to index
    %1 = memref.load %arg4[%0] : memref<6xi32, #tpu.memory_space<smem>>
    %c0_i32 = arith.constant 0 : i32
    %c0_i32_0 = arith.constant 0 : i32
    %c0_i32_1 = arith.constant 0 : i32
    return %1, %c0_i32, %c0_i32_0 : i32, i32, i32
  }
  func.func @transform_4(%arg0: i32, %arg1: i32, %arg2: i32, %arg3: memref<6xi32, #tpu.memory_space<smem>>, %arg4: memref<6xi32, #tpu.memory_space<smem>>) -> (i32, i32, i32) {
    %c0_i32 = arith.constant 0 : i32
    %c0_i32_0 = arith.constant 0 : i32
    return %arg0, %arg1, %c0_i32 : i32, i32, i32
  }
}

</mosaic_0001>

<llo_original>
// kernel: tpu_custom_call.1
$region0: #{tpu_custom_call.1}
  #allocation0 [shape = 'u32[]', space=smem, size = 0x4, offset = 0x4, fixed_abs, tag = 'smem constant byte address 0x4 - core index']
  #allocation1 [shape = 'u32[144,128]{1,0:T(1,128)}', space=vmem, size = 0x12000, scoped, tag = 'internal scratch']
  #allocation2 [shape = 'f32[256,1]{1,0:T(8,128)}', space=vmem, size = 0x20000, scoped, tag = 'scratch operand']
  #allocation3 [shape = 'f32[256,1]{1,0:T(8,128)}', space=vmem, size = 0x20000, scoped, tag = 'scratch operand']
  #allocation4 [shape = 'f32[256,1]{1,0:T(8,128)}', space=vmem, size = 0x20000, scoped, tag = 'scratch operand']
  #allocation5 [shape = 'f32[256,1]{1,0:T(8,128)}', space=vmem, size = 0x20000, scoped, tag = 'scratch operand']
  #allocation6 [shape = 's32[1]{0}', space=sflag, size = 0x4, scoped, tag = 'scoped memory for tpu_custom_call.1']
  #allocation7 [shape = 'u8[512]{0}', space=smem, size = 0x200, scoped, tag = 'prefetched SMEM operand 0']
  #allocation8 [shape = 'u8[512]{0}', space=smem, size = 0x200, scoped, tag = 'prefetched SMEM operand 1']
  %s0 = inlined_call_operand.vmem [shape: s32[6], index: 0, kind: input, shape index: {}]
  %s1 = inlined_call_operand.vmem [shape: s32[6], index: 1, kind: input, shape index: {}]
  %s2 = inlined_call_operand.vmem [shape: s32[256,1], index: 2, kind: input, shape index: {}]
  %s3 = inlined_call_operand.vmem [shape: s32[1,256], index: 3, kind: input, shape index: {}]
  %s4 = inlined_call_operand.hbm [shape: bf16[3,256,128], index: 4, kind: input, shape index: {}]
  %s5 = inlined_call_operand.hbm [shape: bf16[3,256,128], index: 5, kind: input, shape index: {}]
  %s6 = inlined_call_operand.vmem [shape: f32[6,256,1], index: 6, kind: output, shape index: {}]
  %s7 = sld [smem:[#allocation0]]
  $region65: #{tpu_custom_call.1} parent=0
    _
  %s9 = ssub.s32 1, %s7
  %s10 = scalar_select 0, %s9, %s7
  %s11 = sshll.u32 %s0, 4
  %s12 = int_to_ptr.vmem [resolvable:$true] %s11
  %14 = dma.vmem_to_smem %s12, 16, [#allocation7], [#allocation6]
  %s15 = sshll.u32 %s1, 4
  %s16 = int_to_ptr.vmem [resolvable:$true] %s15
  %18 = dma.vmem_to_smem %s16, 16, [#allocation8], [#allocation6]
  %19 = dma.done [#allocation6], 32
  %20 = sfence
  $region1: #{tpu_custom_call.1} parent=0
    #allocation9 [shape = 'u8[131072]{0}', space=vmem, size = 0x20000, scoped, tag = 'input window, operand 4']
    #allocation10 [shape = 's32[2]{0}', space=sflag, size = 0x8, scoped, tag = 'scoped memory for tpu_custom_call.1']
    #allocation11 [shape = 'u8[131072]{0}', space=vmem, size = 0x20000, scoped, tag = 'input window, operand 5']
    #allocation12 [shape = 's32[2]{0}', space=sflag, size = 0x8, scoped, tag = 'scoped memory for tpu_custom_call.1']
    %21 = vsyncpa [#allocation10], 0
    %s22 = scalar_lea.sflag [#allocation10], 1
    %23 = vsyncpa %s22, 0
    %24 = vsyncpa [#allocation12], 0
    %s25 = scalar_lea.sflag [#allocation12], 1
    %26 = vsyncpa %s25, 0
    loop: start=0, step=1, limit=8
    $region2: #{tpu_custom_call.1} parent=1 // loop_pre_header
      _
    $region3: #{tpu_custom_call.1} parent=1 // loop_header
      %s28 = sphi 0, %s32
      %p29 = scmp.ge.s32.totalorder %s28, 8
      %s35 = sphi 0, %s54
      %s36 = sphi 0, %s50
      %s37 = sphi 0, %s46
      %s38 = sphi 0, %s35
      %s39 = sphi 0, %s36
      %s40 = sphi 0, %s37
      %s41 = sphi 0, %s38
      %s42 = sphi 0, %s39
      %s43 = sphi 0, %s40
      %s57 = sphi 0, %s59
      %s60 = sphi 0, %s57
      %s61 = sphi 0, %s60
      %s77 = sphi 0, %s61
      %s83 = sphi 0, %s85
      %s86 = sphi 0, %s83
      %s87 = sphi 0, %s86
      %s103 = sphi 0, %s87
      %s113 = sphi 0, %s115
      %s116 = sphi 0, %s113
      %s117 = sphi 0, %s116
      %s133 = sphi 0, %s117
      %s141 = sphi 0, %s143
      %s144 = sphi 0, %s141
      %s145 = sphi 0, %s144
      %s161 = sphi 0, %s145
      %s169 = sphi 0, %s171
      %s172 = sphi 0, %s169
      %s173 = sphi 0, %s172
      %s189 = sphi 0, %s173
    $region4: #{tpu_custom_call.1} parent=1 // loop_header_branch
      %31 = sbr.rel (%p29) target = $region8
    $region5: #{tpu_custom_call.1} parent=1 // loop_body
      %s33 = ssub.s32 %s28, 1
      %s34 = ssub.s32 %s28, 2
      %s44 = sadd.s32 1, %s37
      %p45 = scmp.ge.s32.totalorder %s44, 1
      %s46 = scalar_select %p45, 0, %s44
      %s47 = sadd.s32 1, %s36
      %s48 = scalar_select %p45, %s47, %s36
      %p49 = scmp.ge.s32.totalorder %s48, 1
      %s50 = scalar_select %p49, 0, %s48
      %s51 = sadd.s32 1, %s35
      %s52 = scalar_select %p49, %s51, %s35
      %p53 = scmp.ge.s32.totalorder %s52, 6
      %s54 = scalar_select %p53, 0, %s52
      %s55 = ssub.s32 %s36, %s50
      %p56 = scmp.eq.s32.totalorder %s55, 0
      %s58 = sadd.s32 %s57, 1
      %s59 = scalar_select %p56, %s57, %s58
      %p62 = pneg %p56
      %p63 = scmp.eq.s32.totalorder %s28, 5
      %p64 = por %p62, %p63
      %p65 = scmp.ne.s32.totalorder %s57, %s60
      %p66 = scmp.eq.s32.totalorder %s28, 0
      %p67 = por %p65, %p66
      %p68 = scmp.ne.s32.totalorder %s57, %s60
      %p69 = scmp.eq.s32.totalorder %s33, 5
      %p70 = por %p68, %p69
      %p71 = scmp.ne.s32.totalorder %s60, %s61
      %p72 = scmp.eq.s32.totalorder %s33, 0
      %p73 = por %p71, %p72
      %p74 = scmp.ne.s32.totalorder %s60, %s61
      %p75 = scmp.eq.s32.totalorder %s34, 5
      %p76 = por %p74, %p75
      %p78 = scmp.ne.s32.totalorder %s61, %s77
      %p79 = scmp.eq.s32.totalorder %s34, 0
      %p80 = por %p78, %p79
      %s81 = ssub.s32 %s37, %s46
      %p82 = scmp.eq.s32.totalorder %s81, 0
      %s84 = sadd.s32 %s83, 1
      %s85 = scalar_select %p82, %s83, %s84
      %p88 = pneg %p82
      %p89 = scmp.eq.s32.totalorder %s28, 5
      %p90 = por %p88, %p89
      %p91 = scmp.ne.s32.totalorder %s83, %s86
      %p92 = scmp.eq.s32.totalorder %s28, 0
      %p93 = por %p91, %p92
      %p94 = scmp.ne.s32.totalorder %s83, %s86
      %p95 = scmp.eq.s32.totalorder %s33, 5
      %p96 = por %p94, %p95
      %p97 = scmp.ne.s32.totalorder %s86, %s87
      %p98 = scmp.eq.s32.totalorder %s33, 0
      %p99 = por %p97, %p98
      %p100 = scmp.ne.s32.totalorder %s86, %s87
      %p101 = scmp.eq.s32.totalorder %s34, 5
      %p102 = por %p100, %p101
      %p104 = scmp.ne.s32.totalorder %s87, %s103
      %p105 = scmp.eq.s32.totalorder %s34, 0
      %p106 = por %p104, %p105
      %s107 = sld [smem:[#allocation7 + %s35]]
      %s108 = sld [smem:[#allocation7 + %s54]]
      %s109 = ssub.s32 %s107, %s108
      %s110 = ssub.s32 %s36, %s50
      %s111 = sor.u32 %s109, %s110
      %p112 = scmp.eq.s32.totalorder %s111, 0
      %s114 = sadd.s32 %s113, 1
      %s115 = scalar_select %p112, %s113, %s114
      %p118 = pneg %p112
      %p119 = scmp.eq.s32.totalorder %s28, 5
      %p120 = por %p118, %p119
      %p121 = scmp.ne.s32.totalorder %s113, %s116
      %p122 = scmp.eq.s32.totalorder %s28, 0
      %p123 = por %p121, %p122
      %p124 = scmp.ne.s32.totalorder %s113, %s116
      %p125 = scmp.eq.s32.totalorder %s33, 5
      %p126 = por %p124, %p125
      %p127 = scmp.ne.s32.totalorder %s116, %s117
      %p128 = scmp.eq.s32.totalorder %s33, 0
      %p129 = por %p127, %p128
      %p130 = scmp.ne.s32.totalorder %s116, %s117
      %p131 = scmp.eq.s32.totalorder %s34, 5
      %p132 = por %p130, %p131
      %p134 = scmp.ne.s32.totalorder %s117, %s133
      %p135 = scmp.eq.s32.totalorder %s34, 0
      %p136 = por %p134, %p135
      %s137 = sld [smem:[#allocation8 + %s35]]
      %s138 = sld [smem:[#allocation8 + %s54]]
      %s139 = ssub.s32 %s137, %s138
      %p140 = scmp.eq.s32.totalorder %s139, 0
      %s142 = sadd.s32 %s141, 1
      %s143 = scalar_select %p140, %s141, %s142
      %p146 = pneg %p140
      %p147 = scmp.eq.s32.totalorder %s28, 5
      %p148 = por %p146, %p147
      %p149 = scmp.ne.s32.totalorder %s141, %s144
      %p150 = scmp.eq.s32.totalorder %s28, 0
      %p151 = por %p149, %p150
      %p152 = scmp.ne.s32.totalorder %s141, %s144
      %p153 = scmp.eq.s32.totalorder %s33, 5
      %p154 = por %p152, %p153
      %p155 = scmp.ne.s32.totalorder %s144, %s145
      %p156 = scmp.eq.s32.totalorder %s33, 0
      %p157 = por %p155, %p156
      %p158 = scmp.ne.s32.totalorder %s144, %s145
      %p159 = scmp.eq.s32.totalorder %s34, 5
      %p160 = por %p158, %p159
      %p162 = scmp.ne.s32.totalorder %s145, %s161
      %p163 = scmp.eq.s32.totalorder %s34, 0
      %p164 = por %p162, %p163
      %s165 = ssub.s32 %s35, %s54
      %s166 = ssub.s32 %s36, %s50
      %s167 = sor.u32 %s165, %s166
      %p168 = scmp.eq.s32.totalorder %s167, 0
      %s170 = sadd.s32 %s169, 1
      %s171 = scalar_select %p168, %s169, %s170
      %p174 = pneg %p168
      %p175 = scmp.eq.s32.totalorder %s28, 5
      %p176 = por %p174, %p175
      %p177 = scmp.ne.s32.totalorder %s169, %s172
      %p178 = scmp.eq.s32.totalorder %s28, 0
      %p179 = por %p177, %p178
      %p180 = scmp.ne.s32.totalorder %s169, %s172
      %p181 = scmp.eq.s32.totalorder %s33, 5
      %p182 = por %p180, %p181
      %p183 = scmp.ne.s32.totalorder %s172, %s173
      %p184 = scmp.eq.s32.totalorder %s33, 0
      %p185 = por %p183, %p184
      %p186 = scmp.ne.s32.totalorder %s172, %s173
      %p187 = scmp.eq.s32.totalorder %s34, 5
      %p188 = por %p186, %p187
      %p190 = scmp.ne.s32.totalorder %s173, %s189
      %p191 = scmp.eq.s32.totalorder %s34, 0
      %p192 = por %p190, %p191
      %p193 = scmp.le.s32.totalorder 1, %s28
      %p194 = scmp.lt.s32.totalorder %s28, 7
      %p195 = pnand %p193, %p194
      %p196 = pneg %p195
      // Predicated region
      $region9: #{tpu_custom_call.1} parent=5 // pred_check
        _
      $region10: #{tpu_custom_call.1} parent=5 // pred_check_branch
        %198 = sbr.rel (%p195) target = $region12
      $region11: #{tpu_custom_call.1} parent=5 // pred_region
        %s199 = ssub.s32 %s28, 1
        // Predicated region
        $region13: #{tpu_custom_call.1} parent=11 // pred_check
          %p200 = pneg %p73
        $region14: #{tpu_custom_call.1} parent=11 // pred_check_branch
          %202 = sbr.rel (%p200) target = $region16
        $region15: #{tpu_custom_call.1} parent=11 // pred_region
          %s203 = smul.u32 32, %s39
          %p204 = scmp.lt.s32.totalorder %s203, 31
          %s205 = scalar_select %p204, %s203, 31
          %s206 = smul.addr %s205, 8
          %s207 = scalar_lea.vmem %s2, %s206
          %s208 = smul.u32 32, %s39
        $region16: #{tpu_custom_call.1} parent=11 // pred_fallthru
          _
        // Predicated region
        $region17: #{tpu_custom_call.1} parent=11 // pred_check
          %p209 = pneg %p99
        $region18: #{tpu_custom_call.1} parent=11 // pred_check_branch
          %211 = sbr.rel (%p209) target = $region20
        $region19: #{tpu_custom_call.1} parent=11 // pred_region
          %s212 = smul.u32 2, %s40
          %p213 = scmp.lt.s32.totalorder %s212, 1
          %s214 = scalar_select %p213, %s212, 1
          %s215 = scalar_lea.vmem %s3, %s214
          %s216 = smul.u32 2, %s40
        $region20: #{tpu_custom_call.1} parent=11 // pred_fallthru
          _
      $region12: #{tpu_custom_call.1} parent=5 // pred_fallthru
        _
      %p217 = scmp.lt.s32.totalorder %s28, 6
      // Predicated region
      $region21: #{tpu_custom_call.1} parent=5 // pred_check
        %p218 = pneg %p217
      $region22: #{tpu_custom_call.1} parent=5 // pred_check_branch
        %220 = sbr.rel (%p218) target = $region24
      $region23: #{tpu_custom_call.1} parent=5 // pred_region
        // Predicated region
        $region25: #{tpu_custom_call.1} parent=23 // pred_check
          %p221 = pneg %p123
        $region26: #{tpu_custom_call.1} parent=23 // pred_check_branch
          %223 = sbr.rel (%p221) target = $region28
        $region27: #{tpu_custom_call.1} parent=23 // pred_region
          %s224 = sand.u32 %s113, 1
          %s225 = scalar_lea.sflag [#allocation10], %s224
          %s226 = sand.u32 %s113, 1
          %s227 = smul.addr %s226, 128
          %s228 = scalar_lea.vmem [#allocation9], %s227
          %s229 = sld [smem:[#allocation7 + %s35]]
          %s230 = smul.u32 32, %s36
          %s232 = ssub.s32 2048, 2048
          %233 = vsyncadd %s225, %s232
          %s234 = smul.addr %s229, 32
          %s235 = sadd.s32 %s230, %s234
          %s236 = smul.addr %s235, 64
          %s237 = scalar_lea.hbm %s4, %s236
          %s238 = sshll.u32 %s228, 4
          %s239 = int_to_ptr.vmem [resolvable:$true] %s238
          %244 = dma.hbm_to_vmem [thread:$0]  %s237, 2048, %s239, %s225, 64, 64, 4
        $region28: #{tpu_custom_call.1} parent=23 // pred_fallthru
          _
        // Predicated region
        $region29: #{tpu_custom_call.1} parent=23 // pred_check
          %p245 = pneg %p151
        $region30: #{tpu_custom_call.1} parent=23 // pred_check_branch
          %247 = sbr.rel (%p245) target = $region32
        $region31: #{tpu_custom_call.1} parent=23 // pred_region
          %s248 = sand.u32 %s141, 1
          %s249 = scalar_lea.sflag [#allocation12], %s248
          %s250 = sand.u32 %s141, 1
          %s251 = smul.addr %s250, 128
          %s252 = scalar_lea.vmem [#allocation11], %s251
          %s253 = sld [smem:[#allocation8 + %s35]]
          %s255 = ssub.s32 2048, 2048
          %256 = vsyncadd %s249, %s255
          %s257 = smul.addr %s253, 32
          %s258 = smul.addr %s257, 64
          %s259 = scalar_lea.hbm %s5, %s258
          %s260 = sshll.u32 %s252, 4
          %s261 = int_to_ptr.vmem [resolvable:$true] %s260
          %266 = dma.hbm_to_vmem [thread:$0]  %s259, 2048, %s261, %s249, 64, 64, 4
        $region32: #{tpu_custom_call.1} parent=23 // pred_fallthru
          _
      $region24: #{tpu_custom_call.1} parent=5 // pred_fallthru
        _
      %p267 = scmp.le.s32.totalorder 1, %s28
      %p268 = scmp.lt.s32.totalorder %s28, 7
      %p269 = pnand %p267, %p268
      %p270 = pneg %p269
      // Predicated region
      $region33: #{tpu_custom_call.1} parent=5 // pred_check
        _
      $region34: #{tpu_custom_call.1} parent=5 // pred_check_branch
        %272 = sbr.rel (%p269) target = $region36
      $region35: #{tpu_custom_call.1} parent=5 // pred_region
        %s273 = ssub.s32 %s28, 1
        %s274 = sand.u32 %s116, 1
        %s275 = scalar_lea.sflag [#allocation10], %s274
        %s276 = sand.u32 %s116, 1
        %s277 = smul.addr %s276, 128
        %s278 = scalar_lea.vmem [#allocation9], %s277
        // Predicated region
        $region37: #{tpu_custom_call.1} parent=35 // pred_check
          %p279 = pneg %p129
        $region38: #{tpu_custom_call.1} parent=35 // pred_check_branch
          %281 = sbr.rel (%p279) target = $region40
        $region39: #{tpu_custom_call.1} parent=35 // pred_region
          %282 = dma.done %s275, 2048
        $region40: #{tpu_custom_call.1} parent=35 // pred_fallthru
          _
        %s283 = sand.u32 %s144, 1
        %s284 = scalar_lea.sflag [#allocation12], %s283
        %s285 = sand.u32 %s144, 1
        %s286 = smul.addr %s285, 128
        %s287 = scalar_lea.vmem [#allocation11], %s286
        // Predicated region
        $region41: #{tpu_custom_call.1} parent=35 // pred_check
          %p288 = pneg %p157
        $region42: #{tpu_custom_call.1} parent=35 // pred_check_branch
          %290 = sbr.rel (%p288) target = $region44
        $region43: #{tpu_custom_call.1} parent=35 // pred_region
          %291 = dma.done %s284, 2048
        $region44: #{tpu_custom_call.1} parent=35 // pred_fallthru
          _
        %s292 = smul.u32 32, %s39
        %p293 = scmp.lt.s32.totalorder %s292, 31
        %s294 = scalar_select %p293, %s292, 31
        %s295 = smul.addr %s294, 8
        %s296 = scalar_lea.vmem %s2, %s295
        %p297 = pneg %p73
        %p298 = pneg %p70
        %s299 = smul.u32 2, %s40
        %p300 = scmp.lt.s32.totalorder %s299, 1
        %s301 = scalar_select %p300, %s299, 1
        %s302 = scalar_lea.vmem %s3, %s301
        %p303 = pneg %p99
        %p304 = pneg %p96
        %s305 = sand.u32 %s116, 1
        %s306 = scalar_lea.sflag [#allocation10], %s305
        %s307 = sand.u32 %s116, 1
        %s308 = smul.addr %s307, 128
        %s309 = scalar_lea.vmem [#allocation9], %s308
        %p310 = pneg %p129
        %p311 = pneg %p126
        %s312 = sand.u32 %s144, 1
        %s313 = scalar_lea.sflag [#allocation12], %s312
        %s314 = sand.u32 %s144, 1
        %s315 = smul.addr %s314, 128
        %s316 = scalar_lea.vmem [#allocation11], %s315
        %p317 = pneg %p157
        %p318 = pneg %p154
        %p319 = pneg %p185
        %p320 = pneg %p182
        %s321 = smul.u32 32, %s39
        %p322 = scmp.lt.s32.totalorder %s38, 5
        %s323 = scalar_select %p322, %s38, 5
        %p324 = scmp.lt.s32.totalorder %s321, 31
        %s325 = scalar_select %p324, %s321, 31
        %s326 = smul.addr %s323, 32
        %s327 = sadd.s32 %s325, %s326
        %s328 = smul.addr %s327, 8
        %s329 = scalar_lea.vmem %s6, %s328
        %s330 = smul.u32 32, %s39
        %p331 = scmp.lt.s32.totalorder %s330, 31
        %s332 = scalar_select %p331, %s330, 31
        %s333 = smul.addr %s332, 8
        %s334 = scalar_lea.vmem %s2, %s333
        %s335 = smul.u32 32, %s39
        %s336 = smul.u32 2, %s40
        %p337 = scmp.lt.s32.totalorder %s336, 1
        %s338 = scalar_select %p337, %s336, 1
        %s339 = scalar_lea.vmem %s3, %s338
        %s340 = smul.u32 2, %s40
        %s341 = sld [smem:[#allocation7 + %s38]]
        %s342 = smul.u32 32, %s39
        %s343 = sld [smem:[#allocation8 + %s38]]
        %s344 = smul.u32 32, %s39
        %p345 = scmp.lt.s32.totalorder %s38, 5
        %s346 = scalar_select %p345, %s38, 5
        %p347 = scmp.lt.s32.totalorder %s344, 31
        %s348 = scalar_select %p347, %s344, 31
        %s349 = smul.addr %s346, 32
        %s350 = sadd.s32 %s348, %s349
        %s351 = smul.addr %s350, 8
        %s352 = scalar_lea.vmem %s6, %s351
        %s353 = smul.u32 32, %s39
        %p355 = scmp.eq.s32.totalorder %s40, 0
        // Predicated region
        $region45: #{tpu_custom_call.1} parent=35 // pred_check
          %p356 = pneg %p355
        $region46: #{tpu_custom_call.1} parent=35 // pred_check_branch
          %358 = sbr.rel (%p356) target = $region48
        $region47: #{tpu_custom_call.1} parent=35 // pred_region
          %vm359 = vcmask 7168
          %360 = vst.msk [vmem:[#allocation2] sm:$0xff] %vm359, -inf
          %361 = vst.msk [vmem:[#allocation2 + $0x8] sm:$0xff] %vm359, -inf
          %362 = vst.msk [vmem:[#allocation2 + $0x10] sm:$0xff] %vm359, -inf
          %363 = vst.msk [vmem:[#allocation2 + $0x18] sm:$0xff] %vm359, -inf
          %364 = vst.msk [vmem:[#allocation2 + $0x20] sm:$0xff] %vm359, -inf
          %365 = vst.msk [vmem:[#allocation2 + $0x28] sm:$0xff] %vm359, -inf
          %366 = vst.msk [vmem:[#allocation2 + $0x30] sm:$0xff] %vm359, -inf
          %367 = vst.msk [vmem:[#allocation2 + $0x38] sm:$0xff] %vm359, -inf
          %368 = vst.msk [vmem:[#allocation2 + $0x40] sm:$0xff] %vm359, -inf
          %369 = vst.msk [vmem:[#allocation2 + $0x48] sm:$0xff] %vm359, -inf
          %370 = vst.msk [vmem:[#allocation2 + $0x50] sm:$0xff] %vm359, -inf
          %371 = vst.msk [vmem:[#allocation2 + $0x58] sm:$0xff] %vm359, -inf
          %372 = vst.msk [vmem:[#allocation2 + $0x60] sm:$0xff] %vm359, -inf
          %373 = vst.msk [vmem:[#allocation2 + $0x68] sm:$0xff] %vm359, -inf
          %374 = vst.msk [vmem:[#allocation2 + $0x70] sm:$0xff] %vm359, -inf
          %375 = vst.msk [vmem:[#allocation2 + $0x78] sm:$0xff] %vm359, -inf
          %376 = vst.msk [vmem:[#allocation2 + $0x80] sm:$0xff] %vm359, -inf
          %377 = vst.msk [vmem:[#allocation2 + $0x88] sm:$0xff] %vm359, -inf
          %378 = vst.msk [vmem:[#allocation2 + $0x90] sm:$0xff] %vm359, -inf
          %379 = vst.msk [vmem:[#allocation2 + $0x98] sm:$0xff] %vm359, -inf
          %380 = vst.msk [vmem:[#allocation2 + $0xa0] sm:$0xff] %vm359, -inf
          %381 = vst.msk [vmem:[#allocation2 + $0xa8] sm:$0xff] %vm359, -inf
          %382 = vst.msk [vmem:[#allocation2 + $0xb0] sm:$0xff] %vm359, -inf
          %383 = vst.msk [vmem:[#allocation2 + $0xb8] sm:$0xff] %vm359, -inf
          %384 = vst.msk [vmem:[#allocation2 + $0xc0] sm:$0xff] %vm359, -inf
          %385 = vst.msk [vmem:[#allocation2 + $0xc8] sm:$0xff] %vm359, -inf
          %386 = vst.msk [vmem:[#allocation2 + $0xd0] sm:$0xff] %vm359, -inf
          %387 = vst.msk [vmem:[#allocation2 + $0xd8] sm:$0xff] %vm359, -inf
          %388 = vst.msk [vmem:[#allocation2 + $0xe0] sm:$0xff] %vm359, -inf
          %389 = vst.msk [vmem:[#allocation2 + $0xe8] sm:$0xff] %vm359, -inf
          %390 = vst.msk [vmem:[#allocation2 + $0xf0] sm:$0xff] %vm359, -inf
          %391 = vst.msk [vmem:[#allocation2 + $0xf8] sm:$0xff] %vm359, -inf
          %392 = vst.msk [vmem:[#allocation3] sm:$0xff] %vm359, 0.0
          %393 = vst.msk [vmem:[#allocation3 + $0x8] sm:$0xff] %vm359, 0.0
          %394 = vst.msk [vmem:[#allocation3 + $0x10] sm:$0xff] %vm359, 0.0
          %395 = vst.msk [vmem:[#allocation3 + $0x18] sm:$0xff] %vm359, 0.0
          %396 = vst.msk [vmem:[#allocation3 + $0x20] sm:$0xff] %vm359, 0.0
          %397 = vst.msk [vmem:[#allocation3 + $0x28] sm:$0xff] %vm359, 0.0
          %398 = vst.msk [vmem:[#allocation3 + $0x30] sm:$0xff] %vm359, 0.0
          %399 = vst.msk [vmem:[#allocation3 + $0x38] sm:$0xff] %vm359, 0.0
          %400 = vst.msk [vmem:[#allocation3 + $0x40] sm:$0xff] %vm359, 0.0
          %401 = vst.msk [vmem:[#allocation3 + $0x48] sm:$0xff] %vm359, 0.0
          %402 = vst.msk [vmem:[#allocation3 + $0x50] sm:$0xff] %vm359, 0.0
          %403 = vst.msk [vmem:[#allocation3 + $0x58] sm:$0xff] %vm359, 0.0
          %404 = vst.msk [vmem:[#allocation3 + $0x60] sm:$0xff] %vm359, 0.0
          %405 = vst.msk [vmem:[#allocation3 + $0x68] sm:$0xff] %vm359, 0.0
          %406 = vst.msk [vmem:[#allocation3 + $0x70] sm:$0xff] %vm359, 0.0
          %407 = vst.msk [vmem:[#allocation3 + $0x78] sm:$0xff] %vm359, 0.0
          %408 = vst.msk [vmem:[#allocation3 + $0x80] sm:$0xff] %vm359, 0.0
          %409 = vst.msk [vmem:[#allocation3 + $0x88] sm:$0xff] %vm359, 0.0
          %410 = vst.msk [vmem:[#allocation3 + $0x90] sm:$0xff] %vm359, 0.0
          %411 = vst.msk [vmem:[#allocation3 + $0x98] sm:$0xff] %vm359, 0.0
          %412 = vst.msk [vmem:[#allocation3 + $0xa0] sm:$0xff] %vm359, 0.0
          %413 = vst.msk [vmem:[#allocation3 + $0xa8] sm:$0xff] %vm359, 0.0
          %414 = vst.msk [vmem:[#allocation3 + $0xb0] sm:$0xff] %vm359, 0.0
          %415 = vst.msk [vmem:[#allocation3 + $0xb8] sm:$0xff] %vm359, 0.0
          %416 = vst.msk [vmem:[#allocation3 + $0xc0] sm:$0xff] %vm359, 0.0
          %417 = vst.msk [vmem:[#allocation3 + $0xc8] sm:$0xff] %vm359, 0.0
          %418 = vst.msk [vmem:[#allocation3 + $0xd0] sm:$0xff] %vm359, 0.0
          %419 = vst.msk [vmem:[#allocation3 + $0xd8] sm:$0xff] %vm359, 0.0
          %420 = vst.msk [vmem:[#allocation3 + $0xe0] sm:$0xff] %vm359, 0.0
          %421 = vst.msk [vmem:[#allocation3 + $0xe8] sm:$0xff] %vm359, 0.0
          %422 = vst.msk [vmem:[#allocation3 + $0xf0] sm:$0xff] %vm359, 0.0
          %423 = vst.msk [vmem:[#allocation3 + $0xf8] sm:$0xff] %vm359, 0.0
          %424 = vst.msk [vmem:[#allocation4] sm:$0xff] %vm359, 0.0
          %425 = vst.msk [vmem:[#allocation4 + $0x8] sm:$0xff] %vm359, 0.0
          %426 = vst.msk [vmem:[#allocation4 + $0x10] sm:$0xff] %vm359, 0.0
          %427 = vst.msk [vmem:[#allocation4 + $0x18] sm:$0xff] %vm359, 0.0
          %428 = vst.msk [vmem:[#allocation4 + $0x20] sm:$0xff] %vm359, 0.0
          %429 = vst.msk [vmem:[#allocation4 + $0x28] sm:$0xff] %vm359, 0.0
          %430 = vst.msk [vmem:[#allocation4 + $0x30] sm:$0xff] %vm359, 0.0
          %431 = vst.msk [vmem:[#allocation4 + $0x38] sm:$0xff] %vm359, 0.0
          %432 = vst.msk [vmem:[#allocation4 + $0x40] sm:$0xff] %vm359, 0.0
          %433 = vst.msk [vmem:[#allocation4 + $0x48] sm:$0xff] %vm359, 0.0
          %434 = vst.msk [vmem:[#allocation4 + $0x50] sm:$0xff] %vm359, 0.0
          %435 = vst.msk [vmem:[#allocation4 + $0x58] sm:$0xff] %vm359, 0.0
          %436 = vst.msk [vmem:[#allocation4 + $0x60] sm:$0xff] %vm359, 0.0
          %437 = vst.msk [vmem:[#allocation4 + $0x68] sm:$0xff] %vm359, 0.0
          %438 = vst.msk [vmem:[#allocation4 + $0x70] sm:$0xff] %vm359, 0.0
          %439 = vst.msk [vmem:[#allocation4 + $0x78] sm:$0xff] %vm359, 0.0
          %440 = vst.msk [vmem:[#allocation4 + $0x80] sm:$0xff] %vm359, 0.0
          %441 = vst.msk [vmem:[#allocation4 + $0x88] sm:$0xff] %vm359, 0.0
          %442 = vst.msk [vmem:[#allocation4 + $0x90] sm:$0xff] %vm359, 0.0
          %443 = vst.msk [vmem:[#allocation4 + $0x98] sm:$0xff] %vm359, 0.0
          %444 = vst.msk [vmem:[#allocation4 + $0xa0] sm:$0xff] %vm359, 0.0
          %445 = vst.msk [vmem:[#allocation4 + $0xa8] sm:$0xff] %vm359, 0.0
          %446 = vst.msk [vmem:[#allocation4 + $0xb0] sm:$0xff] %vm359, 0.0
          %447 = vst.msk [vmem:[#allocation4 + $0xb8] sm:$0xff] %vm359, 0.0
          %448 = vst.msk [vmem:[#allocation4 + $0xc0] sm:$0xff] %vm359, 0.0
          %449 = vst.msk [vmem:[#allocation4 + $0xc8] sm:$0xff] %vm359, 0.0
          %450 = vst.msk [vmem:[#allocation4 + $0xd0] sm:$0xff] %vm359, 0.0
          %451 = vst.msk [vmem:[#allocation4 + $0xd8] sm:$0xff] %vm359, 0.0
          %452 = vst.msk [vmem:[#allocation4 + $0xe0] sm:$0xff] %vm359, 0.0
          %453 = vst.msk [vmem:[#allocation4 + $0xe8] sm:$0xff] %vm359, 0.0
          %454 = vst.msk [vmem:[#allocation4 + $0xf0] sm:$0xff] %vm359, 0.0
          %455 = vst.msk [vmem:[#allocation4 + $0xf8] sm:$0xff] %vm359, 0.0
          %456 = vst.msk [vmem:[#allocation5] sm:$0xff] %vm359, 0.0
          %457 = vst.msk [vmem:[#allocation5 + $0x8] sm:$0xff] %vm359, 0.0
          %458 = vst.msk [vmem:[#allocation5 + $0x10] sm:$0xff] %vm359, 0.0
          %459 = vst.msk [vmem:[#allocation5 + $0x18] sm:$0xff] %vm359, 0.0
          %460 = vst.msk [vmem:[#allocation5 + $0x20] sm:$0xff] %vm359, 0.0
          %461 = vst.msk [vmem:[#allocation5 + $0x28] sm:$0xff] %vm359, 0.0
          %462 = vst.msk [vmem:[#allocation5 + $0x30] sm:$0xff] %vm359, 0.0
          %463 = vst.msk [vmem:[#allocation5 + $0x38] sm:$0xff] %vm359, 0.0
          %464 = vst.msk [vmem:[#allocation5 + $0x40] sm:$0xff] %vm359, 0.0
          %465 = vst.msk [vmem:[#allocation5 + $0x48] sm:$0xff] %vm359, 0.0
          %466 = vst.msk [vmem:[#allocation5 + $0x50] sm:$0xff] %vm359, 0.0
          %467 = vst.msk [vmem:[#allocation5 + $0x58] sm:$0xff] %vm359, 0.0
          %468 = vst.msk [vmem:[#allocation5 + $0x60] sm:$0xff] %vm359, 0.0
          %469 = vst.msk [vmem:[#allocation5 + $0x68] sm:$0xff] %vm359, 0.0
          %470 = vst.msk [vmem:[#allocation5 + $0x70] sm:$0xff] %vm359, 0.0
          %471 = vst.msk [vmem:[#allocation5 + $0x78] sm:$0xff] %vm359, 0.0
          %472 = vst.msk [vmem:[#allocation5 + $0x80] sm:$0xff] %vm359, 0.0
          %473 = vst.msk [vmem:[#allocation5 + $0x88] sm:$0xff] %vm359, 0.0
          %474 = vst.msk [vmem:[#allocation5 + $0x90] sm:$0xff] %vm359, 0.0
          %475 = vst.msk [vmem:[#allocation5 + $0x98] sm:$0xff] %vm359, 0.0
          %476 = vst.msk [vmem:[#allocation5 + $0xa0] sm:$0xff] %vm359, 0.0
          %477 = vst.msk [vmem:[#allocation5 + $0xa8] sm:$0xff] %vm359, 0.0
          %478 = vst.msk [vmem:[#allocation5 + $0xb0] sm:$0xff] %vm359, 0.0
          %479 = vst.msk [vmem:[#allocation5 + $0xb8] sm:$0xff] %vm359, 0.0
          %480 = vst.msk [vmem:[#allocation5 + $0xc0] sm:$0xff] %vm359, 0.0
          %481 = vst.msk [vmem:[#allocation5 + $0xc8] sm:$0xff] %vm359, 0.0
          %482 = vst.msk [vmem:[#allocation5 + $0xd0] sm:$0xff] %vm359, 0.0
          %483 = vst.msk [vmem:[#allocation5 + $0xd8] sm:$0xff] %vm359, 0.0
          %484 = vst.msk [vmem:[#allocation5 + $0xe0] sm:$0xff] %vm359, 0.0
          %485 = vst.msk [vmem:[#allocation5 + $0xe8] sm:$0xff] %vm359, 0.0
          %486 = vst.msk [vmem:[#allocation5 + $0xf0] sm:$0xff] %vm359, 0.0
          %487 = vst.msk [vmem:[#allocation5 + $0xf8] sm:$0xff] %vm359, 0.0
        $region48: #{tpu_custom_call.1} parent=35 // pred_fallthru
          _
        %v488 = vld [vmem:[%s278] sm:$0xf]
        %v489 = vld [vmem:[%s278 + $0x4] sm:$0xf]
        %v490 = vld [vmem:[%s278 + $0x8] sm:$0xf]
        %v491 = vld [vmem:[%s278 + $0xc] sm:$0xf]
        %v492 = vld [vmem:[%s278 + $0x10] sm:$0xf]
        %v493 = vld [vmem:[%s278 + $0x14] sm:$0xf]
        %v494 = vld [vmem:[%s278 + $0x18] sm:$0xf]
        %v495 = vld [vmem:[%s278 + $0x1c] sm:$0xf]
        %v496 = vld [vmem:[%s278 + $0x20] sm:$0xf]
        %v497 = vld [vmem:[%s278 + $0x24] sm:$0xf]
        %v498 = vld [vmem:[%s278 + $0x28] sm:$0xf]
        %v499 = vld [vmem:[%s278 + $0x2c] sm:$0xf]
        %v500 = vld [vmem:[%s278 + $0x30] sm:$0xf]
        %v501 = vld [vmem:[%s278 + $0x34] sm:$0xf]
        %v502 = vld [vmem:[%s278 + $0x38] sm:$0xf]
        %v503 = vld [vmem:[%s278 + $0x3c] sm:$0xf]
        %v504 = vld [vmem:[%s278 + $0x40] sm:$0xf]
        %v505 = vld [vmem:[%s278 + $0x44] sm:$0xf]
        %v506 = vld [vmem:[%s278 + $0x48] sm:$0xf]
        %v507 = vld [vmem:[%s278 + $0x4c] sm:$0xf]
        %v508 = vld [vmem:[%s278 + $0x50] sm:$0xf]
        %v509 = vld [vmem:[%s278 + $0x54] sm:$0xf]
        %v510 = vld [vmem:[%s278 + $0x58] sm:$0xf]
        %v511 = vld [vmem:[%s278 + $0x5c] sm:$0xf]
        %v512 = vld [vmem:[%s278 + $0x60] sm:$0xf]
        %v513 = vld [vmem:[%s278 + $0x64] sm:$0xf]
        %v514 = vld [vmem:[%s278 + $0x68] sm:$0xf]
        %v515 = vld [vmem:[%s278 + $0x6c] sm:$0xf]
        %v516 = vld [vmem:[%s278 + $0x70] sm:$0xf]
        %v517 = vld [vmem:[%s278 + $0x74] sm:$0xf]
        %v518 = vld [vmem:[%s278 + $0x78] sm:$0xf]
        %v519 = vld [vmem:[%s278 + $0x7c] sm:$0xf]
        %s520 = smul.u32 %s40, 256
        %s521 = sshra.s32 %s520, 3
        %s522 = sand.u32 %s520, 7
        %s523 = smul.addr %s521, 4
        %s524 = scalar_lea.vmem %s287, %s523 [#allocation11]
        %v525 = vld [vmem:[%s524] sm:$0xf]
        %v526 = vld [vmem:[%s524 + $0x4] sm:$0xf]
        %v527 = vld [vmem:[%s524 + $0x8] sm:$0xf]
        %v528 = vld [vmem:[%s524 + $0xc] sm:$0xf]
        %v529 = vld [vmem:[%s524 + $0x10] sm:$0xf]
        %v530 = vld [vmem:[%s524 + $0x14] sm:$0xf]
        %v531 = vld [vmem:[%s524 + $0x18] sm:$0xf]
        %v532 = vld [vmem:[%s524 + $0x1c] sm:$0xf]
        %v533 = vld [vmem:[%s524 + $0x20] sm:$0xf]
        %v534 = vld [vmem:[%s524 + $0x24] sm:$0xf]
        %v535 = vld [vmem:[%s524 + $0x28] sm:$0xf]
        %v536 = vld [vmem:[%s524 + $0x2c] sm:$0xf]
        %v537 = vld [vmem:[%s524 + $0x30] sm:$0xf]
        %v538 = vld [vmem:[%s524 + $0x34] sm:$0xf]
        %v539 = vld [vmem:[%s524 + $0x38] sm:$0xf]
        %v540 = vld [vmem:[%s524 + $0x3c] sm:$0xf]
        %v541 = vld [vmem:[%s524 + $0x40] sm:$0xf]
        %v542 = vld [vmem:[%s524 + $0x44] sm:$0xf]
        %v543 = vld [vmem:[%s524 + $0x48] sm:$0xf]
        %v544 = vld [vmem:[%s524 + $0x4c] sm:$0xf]
        %v545 = vld [vmem:[%s524 + $0x50] sm:$0xf]
        %v546 = vld [vmem:[%s524 + $0x54] sm:$0xf]
        %v547 = vld [vmem:[%s524 + $0x58] sm:$0xf]
        %v548 = vld [vmem:[%s524 + $0x5c] sm:$0xf]
        %v549 = vld [vmem:[%s524 + $0x60] sm:$0xf]
        %v550 = vld [vmem:[%s524 + $0x64] sm:$0xf]
        %v551 = vld [vmem:[%s524 + $0x68] sm:$0xf]
        %v552 = vld [vmem:[%s524 + $0x6c] sm:$0xf]
        %v553 = vld [vmem:[%s524 + $0x70] sm:$0xf]
        %v554 = vld [vmem:[%s524 + $0x74] sm:$0xf]
        %v555 = vld [vmem:[%s524 + $0x78] sm:$0xf]
        %v556 = vld [vmem:[%s524 + $0x7c] sm:$0xf]
        %v589 = vunpack.c.l.b16 %v488
        %v590 = vunpack.c.l.b16 %v489
        %v591 = vunpack.c.l.b16 %v490
        %v592 = vunpack.c.l.b16 %v491
        %v593 = vunpack.c.l.b16 %v492
        %v594 = vunpack.c.l.b16 %v493
        %v595 = vunpack.c.l.b16 %v494
        %v596 = vunpack.c.l.b16 %v495
        %v597 = vunpack.c.l.b16 %v496
        %v598 = vunpack.c.l.b16 %v497
        %v599 = vunpack.c.l.b16 %v498
        %v600 = vunpack.c.l.b16 %v499
        %v601 = vunpack.c.l.b16 %v500
        %v602 = vunpack.c.l.b16 %v501
        %v603 = vunpack.c.l.b16 %v502
        %v604 = vunpack.c.l.b16 %v503
        %v605 = vunpack.c.l.b16 %v504
        %v606 = vunpack.c.l.b16 %v505
        %v607 = vunpack.c.l.b16 %v506
        %v608 = vunpack.c.l.b16 %v507
        %v609 = vunpack.c.l.b16 %v508
        %v610 = vunpack.c.l.b16 %v509
        %v611 = vunpack.c.l.b16 %v510
        %v612 = vunpack.c.l.b16 %v511
        %v613 = vunpack.c.l.b16 %v512
        %v614 = vunpack.c.l.b16 %v513
        %v615 = vunpack.c.l.b16 %v514
        %v616 = vunpack.c.l.b16 %v515
        %v617 = vunpack.c.l.b16 %v516
        %v618 = vunpack.c.l.b16 %v517
        %v619 = vunpack.c.l.b16 %v518
        %v620 = vunpack.c.l.b16 %v519
        %v621 = vpack.c.b16 %v590, %v589
        %v622 = vpack.c.b16 %v592, %v591
        %v623 = vpack.c.b16 %v594, %v593
        %v624 = vpack.c.b16 %v596, %v595
        %v625 = vpack.c.b16 %v598, %v597
        %v626 = vpack.c.b16 %v600, %v599
        %v627 = vpack.c.b16 %v602, %v601
        %v628 = vpack.c.b16 %v604, %v603
        %v629 = vpack.c.b16 %v606, %v605
        %v630 = vpack.c.b16 %v608, %v607
        %v631 = vpack.c.b16 %v610, %v609
        %v632 = vpack.c.b16 %v612, %v611
        %v633 = vpack.c.b16 %v614, %v613
        %v634 = vpack.c.b16 %v616, %v615
        %v635 = vpack.c.b16 %v618, %v617
        %v636 = vpack.c.b16 %v620, %v619
        %v685 = vunpack.c.l.b16 %v525
        %v686 = vunpack.c.l.b16 %v526
        %v687 = vunpack.c.l.b16 %v527
        %v688 = vunpack.c.l.b16 %v528
        %v689 = vunpack.c.l.b16 %v529
        %v690 = vunpack.c.l.b16 %v530
        %v691 = vunpack.c.l.b16 %v531
        %v692 = vunpack.c.l.b16 %v532
        %v693 = vunpack.c.l.b16 %v533
        %v694 = vunpack.c.l.b16 %v534
        %v695 = vunpack.c.l.b16 %v535
        %v696 = vunpack.c.l.b16 %v536
        %v697 = vunpack.c.l.b16 %v537
        %v698 = vunpack.c.l.b16 %v538
        %v699 = vunpack.c.l.b16 %v539
        %v700 = vunpack.c.l.b16 %v540
        %v701 = vunpack.c.l.b16 %v541
        %v702 = vunpack.c.l.b16 %v542
        %v703 = vunpack.c.l.b16 %v543
        %v704 = vunpack.c.l.b16 %v544
        %v705 = vunpack.c.l.b16 %v545
        %v706 = vunpack.c.l.b16 %v546
        %v707 = vunpack.c.l.b16 %v547
        %v708 = vunpack.c.l.b16 %v548
        %v709 = vunpack.c.l.b16 %v549
        %v710 = vunpack.c.l.b16 %v550
        %v711 = vunpack.c.l.b16 %v551
        %v712 = vunpack.c.l.b16 %v552
        %v713 = vunpack.c.l.b16 %v553
        %v714 = vunpack.c.l.b16 %v554
        %v715 = vunpack.c.l.b16 %v555
        %v716 = vunpack.c.l.b16 %v556
        %v717 = vpack.c.b16 %v686, %v685
        %v718 = vpack.c.b16 %v688, %v687
        %v719 = vpack.c.b16 %v690, %v689
        %v720 = vpack.c.b16 %v692, %v691
        %v721 = vpack.c.b16 %v694, %v693
        %v722 = vpack.c.b16 %v696, %v695
        %v723 = vpack.c.b16 %v698, %v697
        %v724 = vpack.c.b16 %v700, %v699
        %v725 = vpack.c.b16 %v702, %v701
        %v726 = vpack.c.b16 %v704, %v703
        %v727 = vpack.c.b16 %v706, %v705
        %v728 = vpack.c.b16 %v708, %v707
        %v729 = vpack.c.b16 %v710, %v709
        %v730 = vpack.c.b16 %v712, %v711
        %v731 = vpack.c.b16 %v714, %v713
        %v732 = vpack.c.b16 %v716, %v715
        %749 = vmatprep.subr.bf16.mxu0 0
        %750 = vmatpush1.bf16.xpose.msra.mxu0 %v724
        %751 = vmatprep.subr.bf16.mxu0 0
        %752 = vmatpush1.bf16.xpose.msra.mxu0 %v723
        %753 = vmatprep.subr.bf16.mxu0 0
        %754 = vmatpush1.bf16.xpose.msra.mxu0 %v722
        %755 = vmatprep.subr.bf16.mxu0 0
        %756 = vmatpush1.bf16.xpose.msra.mxu0 %v721
        %757 = vmatprep.subr.bf16.mxu0 0
        %758 = vmatpush1.bf16.xpose.msra.mxu0 %v720
        %759 = vmatprep.subr.bf16.mxu0 0
        %760 = vmatpush1.bf16.xpose.msra.mxu0 %v719
        %761 = vmatprep.subr.bf16.mxu0 0
        %762 = vmatpush1.bf16.xpose.msra.mxu0 %v718
        %763 = vmatprep.subr.bf16.mxu0 0
        %764 = vmatpush1.bf16.xpose.msra.mxu0 %v717
        %765 = vmatprep.subr.bf16.mxu0 0
        %766 = vmatpush2.bf16.xpose.msra.mxu0 %v732
        %767 = vmatprep.subr.bf16.mxu0 0
        %768 = vmatpush2.bf16.xpose.msra.mxu0 %v731
        %769 = vmatprep.subr.bf16.mxu0 0
        %770 = vmatpush2.bf16.xpose.msra.mxu0 %v730
        %771 = vmatprep.subr.bf16.mxu0 0
        %772 = vmatpush2.bf16.xpose.msra.mxu0 %v729
        %773 = vmatprep.subr.bf16.mxu0 0
        %774 = vmatpush2.bf16.xpose.msra.mxu0 %v728
        %775 = vmatprep.subr.bf16.mxu0 0
        %776 = vmatpush2.bf16.xpose.msra.mxu0 %v727
        %777 = vmatprep.subr.bf16.mxu0 0
        %778 = vmatpush2.bf16.xpose.msra.mxu0 %v726
        %779 = vmatprep.subr.bf16.mxu0 0
        %780 = vmatpush2.bf16.xpose.msra.mxu0 %v725
        %781 = vmatprep.mubr.bf16.mxu0 0
        %782 = vmatmul.mubr.bf16.gmra.mxu0 %v621
        %v783 = vpop.f32.mrf.mxu0
        %v784 = vadd.f32 0.0, %v783
        %v785 = vpop.f32.mrf.mxu0
        %v786 = vadd.f32 0.0, %v785
        %v787 = vpop.f32.mrf.mxu0
        %v788 = vadd.f32 0.0, %v787
        %v789 = vpop.f32.mrf.mxu0
        %v790 = vadd.f32 0.0, %v789
        %791 = vmatprep.mubr.bf16.mxu0 0
        %792 = vmatmul.mubr.bf16.gmra.mxu0 %v622
        %v793 = vpop.f32.mrf.mxu0
        %v794 = vadd.f32 0.0, %v793
        %v795 = vpop.f32.mrf.mxu0
        %v796 = vadd.f32 0.0, %v795
        %v797 = vpop.f32.mrf.mxu0
        %v798 = vadd.f32 0.0, %v797
        %v799 = vpop.f32.mrf.mxu0
        %v800 = vadd.f32 0.0, %v799
        %801 = vmatprep.mubr.bf16.mxu0 0
        %802 = vmatmul.mubr.bf16.gmra.mxu0 %v623
        %v803 = vpop.f32.mrf.mxu0
        %v804 = vadd.f32 0.0, %v803
        %v805 = vpop.f32.mrf.mxu0
        %v806 = vadd.f32 0.0, %v805
        %v807 = vpop.f32.mrf.mxu0
        %v808 = vadd.f32 0.0, %v807
        %v809 = vpop.f32.mrf.mxu0
        %v810 = vadd.f32 0.0, %v809
        %811 = vmatprep.mubr.bf16.mxu0 0
        %812 = vmatmul.mubr.bf16.gmra.mxu0 %v624
        %v813 = vpop.f32.mrf.mxu0
        %v814 = vadd.f32 0.0, %v813
        %v815 = vpop.f32.mrf.mxu0
        %v816 = vadd.f32 0.0, %v815
        %v817 = vpop.f32.mrf.mxu0
        %v818 = vadd.f32 0.0, %v817
        %v819 = vpop.f32.mrf.mxu0
        %v820 = vadd.f32 0.0, %v819
        %821 = vmatprep.mubr.bf16.mxu0 0
        %822 = vmatmul.mubr.bf16.gmra.mxu0 %v625
        %v823 = vpop.f32.mrf.mxu0
        %v824 = vadd.f32 0.0, %v823
        %v825 = vpop.f32.mrf.mxu0
        %v826 = vadd.f32 0.0, %v825
        %v827 = vpop.f32.mrf.mxu0
        %v828 = vadd.f32 0.0, %v827
        %v829 = vpop.f32.mrf.mxu0
        %v830 = vadd.f32 0.0, %v829
        %831 = vmatprep.mubr.bf16.mxu0 0
        %832 = vmatmul.mubr.bf16.gmra.mxu0 %v626
        %v833 = vpop.f32.mrf.mxu0
        %v834 = vadd.f32 0.0, %v833
        %v835 = vpop.f32.mrf.mxu0
        %v836 = vadd.f32 0.0, %v835
        %v837 = vpop.f32.mrf.mxu0
        %v838 = vadd.f32 0.0, %v837
        %v839 = vpop.f32.mrf.mxu0
        %v840 = vadd.f32 0.0, %v839
        %841 = vmatprep.mubr.bf16.mxu0 0
        %842 = vmatmul.mubr.bf16.gmra.mxu0 %v627
        %v843 = vpop.f32.mrf.mxu0
        %v844 = vadd.f32 0.0, %v843
        %v845 = vpop.f32.mrf.mxu0
        %v846 = vadd.f32 0.0, %v845
        %v847 = vpop.f32.mrf.mxu0
        %v848 = vadd.f32 0.0, %v847
        %v849 = vpop.f32.mrf.mxu0
        %v850 = vadd.f32 0.0, %v849
        %851 = vmatprep.mubr.bf16.mxu0 0
        %852 = vmatmul.mubr.bf16.gmra.mxu0 %v628
        %v853 = vpop.f32.mrf.mxu0
        %v854 = vadd.f32 0.0, %v853
        %v855 = vpop.f32.mrf.mxu0
        %v856 = vadd.f32 0.0, %v855
        %v857 = vpop.f32.mrf.mxu0
        %v858 = vadd.f32 0.0, %v857
        %v859 = vpop.f32.mrf.mxu0
        %v860 = vadd.f32 0.0, %v859
        %861 = vmatprep.mubr.bf16.mxu0 0
        %862 = vmatmul.mubr.bf16.gmra.mxu0 %v629
        %v863 = vpop.f32.mrf.mxu0
        %v864 = vadd.f32 0.0, %v863
        %v865 = vpop.f32.mrf.mxu0
        %v866 = vadd.f32 0.0, %v865
        %v867 = vpop.f32.mrf.mxu0
        %v868 = vadd.f32 0.0, %v867
        %v869 = vpop.f32.mrf.mxu0
        %v870 = vadd.f32 0.0, %v869
        %871 = vmatprep.mubr.bf16.mxu0 0
        %872 = vmatmul.mubr.bf16.gmra.mxu0 %v630
        %v873 = vpop.f32.mrf.mxu0
        %v874 = vadd.f32 0.0, %v873
        %v875 = vpop.f32.mrf.mxu0
        %v876 = vadd.f32 0.0, %v875
        %v877 = vpop.f32.mrf.mxu0
        %v878 = vadd.f32 0.0, %v877
        %v879 = vpop.f32.mrf.mxu0
        %v880 = vadd.f32 0.0, %v879
        %881 = vmatprep.mubr.bf16.mxu0 0
        %882 = vmatmul.mubr.bf16.gmra.mxu0 %v631
        %v883 = vpop.f32.mrf.mxu0
        %v884 = vadd.f32 0.0, %v883
        %v885 = vpop.f32.mrf.mxu0
        %v886 = vadd.f32 0.0, %v885
        %v887 = vpop.f32.mrf.mxu0
        %v888 = vadd.f32 0.0, %v887
        %v889 = vpop.f32.mrf.mxu0
        %v890 = vadd.f32 0.0, %v889
        %891 = vmatprep.mubr.bf16.mxu0 0
        %892 = vmatmul.mubr.bf16.gmra.mxu0 %v632
        %v893 = vpop.f32.mrf.mxu0
        %v894 = vadd.f32 0.0, %v893
        %v895 = vpop.f32.mrf.mxu0
        %v896 = vadd.f32 0.0, %v895
        %v897 = vpop.f32.mrf.mxu0
        %v898 = vadd.f32 0.0, %v897
        %v899 = vpop.f32.mrf.mxu0
        %v900 = vadd.f32 0.0, %v899
        %901 = vmatprep.mubr.bf16.mxu0 0
        %902 = vmatmul.mubr.bf16.gmra.mxu0 %v633
        %v903 = vpop.f32.mrf.mxu0
        %v904 = vadd.f32 0.0, %v903
        %v905 = vpop.f32.mrf.mxu0
        %v906 = vadd.f32 0.0, %v905
        %v907 = vpop.f32.mrf.mxu0
        %v908 = vadd.f32 0.0, %v907
        %v909 = vpop.f32.mrf.mxu0
        %v910 = vadd.f32 0.0, %v909
        %911 = vmatprep.mubr.bf16.mxu0 0
        %912 = vmatmul.mubr.bf16.gmra.mxu0 %v634
        %v913 = vpop.f32.mrf.mxu0
        %v914 = vadd.f32 0.0, %v913
        %v915 = vpop.f32.mrf.mxu0
        %v916 = vadd.f32 0.0, %v915
        %v917 = vpop.f32.mrf.mxu0
        %v918 = vadd.f32 0.0, %v917
        %v919 = vpop.f32.mrf.mxu0
        %v920 = vadd.f32 0.0, %v919
        %921 = vmatprep.mubr.bf16.mxu0 0
        %922 = vmatmul.mubr.bf16.gmra.mxu0 %v635
        %v923 = vpop.f32.mrf.mxu0
        %v924 = vadd.f32 0.0, %v923
        %v925 = vpop.f32.mrf.mxu0
        %v926 = vadd.f32 0.0, %v925
        %v927 = vpop.f32.mrf.mxu0
        %v928 = vadd.f32 0.0, %v927
        %v929 = vpop.f32.mrf.mxu0
        %v930 = vadd.f32 0.0, %v929
        %931 = vmatprep.mubr.bf16.mxu0 0
        %932 = vmatmul.mubr.bf16.gmra.mxu0 %v636
        %v933 = vpop.f32.mrf.mxu0
        %v934 = vadd.f32 0.0, %v933
        %v935 = vpop.f32.mrf.mxu0
        %v936 = vadd.f32 0.0, %v935
        %v937 = vpop.f32.mrf.mxu0
        %v938 = vadd.f32 0.0, %v937
        %v939 = vpop.f32.mrf.mxu0
        %v940 = vadd.f32 0.0, %v939
        %941 = vdwg.mxu0
        %v942 = vld [vmem:[%s334] sm:$0xff]
        %v943 = vld [vmem:[%s334 + $0x8] sm:$0xff]
        %v944 = vld [vmem:[%s334 + $0x10] sm:$0xff]
        %v945 = vld [vmem:[%s334 + $0x18] sm:$0xff]
        %v946 = vld [vmem:[%s334 + $0x20] sm:$0xff]
        %v947 = vld [vmem:[%s334 + $0x28] sm:$0xff]
        %v948 = vld [vmem:[%s334 + $0x30] sm:$0xff]
        %v949 = vld [vmem:[%s334 + $0x38] sm:$0xff]
        %v950 = vld [vmem:[%s334 + $0x40] sm:$0xff]
        %v951 = vld [vmem:[%s334 + $0x48] sm:$0xff]
        %v952 = vld [vmem:[%s334 + $0x50] sm:$0xff]
        %v953 = vld [vmem:[%s334 + $0x58] sm:$0xff]
        %v954 = vld [vmem:[%s334 + $0x60] sm:$0xff]
        %v955 = vld [vmem:[%s334 + $0x68] sm:$0xff]
        %v956 = vld [vmem:[%s334 + $0x70] sm:$0xff]
        %v957 = vld [vmem:[%s334 + $0x78] sm:$0xff]
        %v958 = vld [vmem:[%s334 + $0x80] sm:$0xff]
        %v959 = vld [vmem:[%s334 + $0x88] sm:$0xff]
        %v960 = vld [vmem:[%s334 + $0x90] sm:$0xff]
        %v961 = vld [vmem:[%s334 + $0x98] sm:$0xff]
        %v962 = vld [vmem:[%s334 + $0xa0] sm:$0xff]
        %v963 = vld [vmem:[%s334 + $0xa8] sm:$0xff]
        %v964 = vld [vmem:[%s334 + $0xb0] sm:$0xff]
        %v965 = vld [vmem:[%s334 + $0xb8] sm:$0xff]
        %v966 = vld [vmem:[%s334 + $0xc0] sm:$0xff]
        %v967 = vld [vmem:[%s334 + $0xc8] sm:$0xff]
        %v968 = vld [vmem:[%s334 + $0xd0] sm:$0xff]
        %v969 = vld [vmem:[%s334 + $0xd8] sm:$0xff]
        %v970 = vld [vmem:[%s334 + $0xe0] sm:$0xff]
        %v971 = vld [vmem:[%s334 + $0xe8] sm:$0xff]
        %v972 = vld [vmem:[%s334 + $0xf0] sm:$0xff]
        %v973 = vld [vmem:[%s334 + $0xf8] sm:$0xff]
        %v974 = vld [vmem:[%s339] sm:$0x3]
        %975 = vset.pattern.permute.xlu0 0
        %976 = vperm.xlu0 %975, %v942
        %v977 = vpop.permute.xlu0 %976
        %978 = vset.pattern.permute.xlu0 0
        %979 = vperm.xlu0 %978, %v943
        %v980 = vpop.permute.xlu0 %979
        %981 = vset.pattern.permute.xlu0 0
        %982 = vperm.xlu0 %981, %v944
        %v983 = vpop.permute.xlu0 %982
        %984 = vset.pattern.permute.xlu0 0
        %985 = vperm.xlu0 %984, %v945
        %v986 = vpop.permute.xlu0 %985
        %987 = vset.pattern.permute.xlu0 0
        %988 = vperm.xlu0 %987, %v946
        %v989 = vpop.permute.xlu0 %988
        %990 = vset.pattern.permute.xlu0 0
        %991 = vperm.xlu0 %990, %v947
        %v992 = vpop.permute.xlu0 %991
        %993 = vset.pattern.permute.xlu0 0
        %994 = vperm.xlu0 %993, %v948
        %v995 = vpop.permute.xlu0 %994
        %996 = vset.pattern.permute.xlu0 0
        %997 = vperm.xlu0 %996, %v949
        %v998 = vpop.permute.xlu0 %997
        %999 = vset.pattern.permute.xlu0 0
        %1000 = vperm.xlu0 %999, %v950
        %v1001 = vpop.permute.xlu0 %1000
        %1002 = vset.pattern.permute.xlu0 0
        %1003 = vperm.xlu0 %1002, %v951
        %v1004 = vpop.permute.xlu0 %1003
        %1005 = vset.pattern.permute.xlu0 0
        %1006 = vperm.xlu0 %1005, %v952
        %v1007 = vpop.permute.xlu0 %1006
        %1008 = vset.pattern.permute.xlu0 0
        %1009 = vperm.xlu0 %1008, %v953
        %v1010 = vpop.permute.xlu0 %1009
        %1011 = vset.pattern.permute.xlu0 0
        %1012 = vperm.xlu0 %1011, %v954
        %v1013 = vpop.permute.xlu0 %1012
        %1014 = vset.pattern.permute.xlu0 0
        %1015 = vperm.xlu0 %1014, %v955
        %v1016 = vpop.permute.xlu0 %1015
        %1017 = vset.pattern.permute.xlu0 0
        %1018 = vperm.xlu0 %1017, %v956
        %v1019 = vpop.permute.xlu0 %1018
        %1020 = vset.pattern.permute.xlu0 0
        %1021 = vperm.xlu0 %1020, %v957
        %v1022 = vpop.permute.xlu0 %1021
        %1023 = vset.pattern.permute.xlu0 0
        %1024 = vperm.xlu0 %1023, %v958
        %v1025 = vpop.permute.xlu0 %1024
        %1026 = vset.pattern.permute.xlu0 0
        %1027 = vperm.xlu0 %1026, %v959
        %v1028 = vpop.permute.xlu0 %1027
        %1029 = vset.pattern.permute.xlu0 0
        %1030 = vperm.xlu0 %1029, %v960
        %v1031 = vpop.permute.xlu0 %1030
        %1032 = vset.pattern.permute.xlu0 0
        %1033 = vperm.xlu0 %1032, %v961
        %v1034 = vpop.permute.xlu0 %1033
        %1035 = vset.pattern.permute.xlu0 0
        %1036 = vperm.xlu0 %1035, %v962
        %v1037 = vpop.permute.xlu0 %1036
        %1038 = vset.pattern.permute.xlu0 0
        %1039 = vperm.xlu0 %1038, %v963
        %v1040 = vpop.permute.xlu0 %1039
        %1041 = vset.pattern.permute.xlu0 0
        %1042 = vperm.xlu0 %1041, %v964
        %v1043 = vpop.permute.xlu0 %1042
        %1044 = vset.pattern.permute.xlu0 0
        %1045 = vperm.xlu0 %1044, %v965
        %v1046 = vpop.permute.xlu0 %1045
        %1047 = vset.pattern.permute.xlu0 0
        %1048 = vperm.xlu0 %1047, %v966
        %v1049 = vpop.permute.xlu0 %1048
        %1050 = vset.pattern.permute.xlu0 0
        %1051 = vperm.xlu0 %1050, %v967
        %v1052 = vpop.permute.xlu0 %1051
        %1053 = vset.pattern.permute.xlu0 0
        %1054 = vperm.xlu0 %1053, %v968
        %v1055 = vpop.permute.xlu0 %1054
        %1056 = vset.pattern.permute.xlu0 0
        %1057 = vperm.xlu0 %1056, %v969
        %v1058 = vpop.permute.xlu0 %1057
        %1059 = vset.pattern.permute.xlu0 0
        %1060 = vperm.xlu0 %1059, %v970
        %v1061 = vpop.permute.xlu0 %1060
        %1062 = vset.pattern.permute.xlu0 0
        %1063 = vperm.xlu0 %1062, %v971
        %v1064 = vpop.permute.xlu0 %1063
        %1065 = vset.pattern.permute.xlu0 0
        %1066 = vperm.xlu0 %1065, %v972
        %v1067 = vpop.permute.xlu0 %1066
        %1068 = vset.pattern.permute.xlu0 0
        %1069 = vperm.xlu0 %1068, %v973
        %v1070 = vpop.permute.xlu0 %1069
        %v1071 = vlaneseq
        %v1072 = vshrl.u32 %v1071, 7
        %v1073 = vsub.s32 0, %v1072
        %v1074 = vrot.slane %v974, %v1073
        %v1075 = vlaneseq
        %v1076 = vshrl.u32 %v1075, 7
        %v1077 = vsub.s32 1, %v1076
        %v1078 = vrot.slane %v974, %v1077
        %vm1079 = vcmp.eq.s32.totalorder %v977, %v1074
        %vm1080 = vcmp.eq.s32.totalorder %v977, %v1078
        %vm1081 = vcmp.eq.s32.totalorder %v980, %v1074
        %vm1082 = vcmp.eq.s32.totalorder %v980, %v1078
        %vm1083 = vcmp.eq.s32.totalorder %v983, %v1074
        %vm1084 = vcmp.eq.s32.totalorder %v983, %v1078
        %vm1085 = vcmp.eq.s32.totalorder %v986, %v1074
        %vm1086 = vcmp.eq.s32.totalorder %v986, %v1078
        %vm1087 = vcmp.eq.s32.totalorder %v989, %v1074
        %vm1088 = vcmp.eq.s32.totalorder %v989, %v1078
        %vm1089 = vcmp.eq.s32.totalorder %v992, %v1074
        %vm1090 = vcmp.eq.s32.totalorder %v992, %v1078
        %vm1091 = vcmp.eq.s32.totalorder %v995, %v1074
        %vm1092 = vcmp.eq.s32.totalorder %v995, %v1078
        %vm1093 = vcmp.eq.s32.totalorder %v998, %v1074
        %vm1094 = vcmp.eq.s32.totalorder %v998, %v1078
        %vm1095 = vcmp.eq.s32.totalorder %v1001, %v1074
        %vm1096 = vcmp.eq.s32.totalorder %v1001, %v1078
        %vm1097 = vcmp.eq.s32.totalorder %v1004, %v1074
        %vm1098 = vcmp.eq.s32.totalorder %v1004, %v1078
        %vm1099 = vcmp.eq.s32.totalorder %v1007, %v1074
        %vm1100 = vcmp.eq.s32.totalorder %v1007, %v1078
        %vm1101 = vcmp.eq.s32.totalorder %v1010, %v1074
        %vm1102 = vcmp.eq.s32.totalorder %v1010, %v1078
        %vm1103 = vcmp.eq.s32.totalorder %v1013, %v1074
        %vm1104 = vcmp.eq.s32.totalorder %v1013, %v1078
        %vm1105 = vcmp.eq.s32.totalorder %v1016, %v1074
        %vm1106 = vcmp.eq.s32.totalorder %v1016, %v1078
        %vm1107 = vcmp.eq.s32.totalorder %v1019, %v1074
        %vm1108 = vcmp.eq.s32.totalorder %v1019, %v1078
        %vm1109 = vcmp.eq.s32.totalorder %v1022, %v1074
        %vm1110 = vcmp.eq.s32.totalorder %v1022, %v1078
        %vm1111 = vcmp.eq.s32.totalorder %v1025, %v1074
        %vm1112 = vcmp.eq.s32.totalorder %v1025, %v1078
        %vm1113 = vcmp.eq.s32.totalorder %v1028, %v1074
        %vm1114 = vcmp.eq.s32.totalorder %v1028, %v1078
        %vm1115 = vcmp.eq.s32.totalorder %v1031, %v1074
        %vm1116 = vcmp.eq.s32.totalorder %v1031, %v1078
        %vm1117 = vcmp.eq.s32.totalorder %v1034, %v1074
        %vm1118 = vcmp.eq.s32.totalorder %v1034, %v1078
        %vm1119 = vcmp.eq.s32.totalorder %v1037, %v1074
        %vm1120 = vcmp.eq.s32.totalorder %v1037, %v1078
        %vm1121 = vcmp.eq.s32.totalorder %v1040, %v1074
        %vm1122 = vcmp.eq.s32.totalorder %v1040, %v1078
        %vm1123 = vcmp.eq.s32.totalorder %v1043, %v1074
        %vm1124 = vcmp.eq.s32.totalorder %v1043, %v1078
        %vm1125 = vcmp.eq.s32.totalorder %v1046, %v1074
        %vm1126 = vcmp.eq.s32.totalorder %v1046, %v1078
        %vm1127 = vcmp.eq.s32.totalorder %v1049, %v1074
        %vm1128 = vcmp.eq.s32.totalorder %v1049, %v1078
        %vm1129 = vcmp.eq.s32.totalorder %v1052, %v1074
        %vm1130 = vcmp.eq.s32.totalorder %v1052, %v1078
        %vm1131 = vcmp.eq.s32.totalorder %v1055, %v1074
        %vm1132 = vcmp.eq.s32.totalorder %v1055, %v1078
        %vm1133 = vcmp.eq.s32.totalorder %v1058, %v1074
        %vm1134 = vcmp.eq.s32.totalorder %v1058, %v1078
        %vm1135 = vcmp.eq.s32.totalorder %v1061, %v1074
        %vm1136 = vcmp.eq.s32.totalorder %v1061, %v1078
        %vm1137 = vcmp.eq.s32.totalorder %v1064, %v1074
        %vm1138 = vcmp.eq.s32.totalorder %v1064, %v1078
        %vm1139 = vcmp.eq.s32.totalorder %v1067, %v1074
        %vm1140 = vcmp.eq.s32.totalorder %v1067, %v1078
        %vm1141 = vcmp.eq.s32.totalorder %v1070, %v1074
        %vm1142 = vcmp.eq.s32.totalorder %v1070, %v1078
        %v1143 = vsel %vm1079, 1, 0
        %v1144 = vsel %vm1080, 1, 0
        %v1145 = vsel %vm1081, 1, 0
        %v1146 = vsel %vm1082, 1, 0
        %v1147 = vsel %vm1083, 1, 0
        %v1148 = vsel %vm1084, 1, 0
        %v1149 = vsel %vm1085, 1, 0
        %v1150 = vsel %vm1086, 1, 0
        %v1151 = vsel %vm1087, 1, 0
        %v1152 = vsel %vm1088, 1, 0
        %v1153 = vsel %vm1089, 1, 0
        %v1154 = vsel %vm1090, 1, 0
        %v1155 = vsel %vm1091, 1, 0
        %v1156 = vsel %vm1092, 1, 0
        %v1157 = vsel %vm1093, 1, 0
        %v1158 = vsel %vm1094, 1, 0
        %v1159 = vsel %vm1095, 1, 0
        %v1160 = vsel %vm1096, 1, 0
        %v1161 = vsel %vm1097, 1, 0
        %v1162 = vsel %vm1098, 1, 0
        %v1163 = vsel %vm1099, 1, 0
        %v1164 = vsel %vm1100, 1, 0
        %v1165 = vsel %vm1101, 1, 0
        %v1166 = vsel %vm1102, 1, 0
        %v1167 = vsel %vm1103, 1, 0
        %v1168 = vsel %vm1104, 1, 0
        %v1169 = vsel %vm1105, 1, 0
        %v1170 = vsel %vm1106, 1, 0
        %v1171 = vsel %vm1107, 1, 0
        %v1172 = vsel %vm1108, 1, 0
        %v1173 = vsel %vm1109, 1, 0
        %v1174 = vsel %vm1110, 1, 0
        %v1175 = vsel %vm1111, 1, 0
        %v1176 = vsel %vm1112, 1, 0
        %v1177 = vsel %vm1113, 1, 0
        %v1178 = vsel %vm1114, 1, 0
        %v1179 = vsel %vm1115, 1, 0
        %v1180 = vsel %vm1116, 1, 0
        %v1181 = vsel %vm1117, 1, 0
        %v1182 = vsel %vm1118, 1, 0
        %v1183 = vsel %vm1119, 1, 0
        %v1184 = vsel %vm1120, 1, 0
        %v1185 = vsel %vm1121, 1, 0
        %v1186 = vsel %vm1122, 1, 0
        %v1187 = vsel %vm1123, 1, 0
        %v1188 = vsel %vm1124, 1, 0
        %v1189 = vsel %vm1125, 1, 0
        %v1190 = vsel %vm1126, 1, 0
        %v1191 = vsel %vm1127, 1, 0
        %v1192 = vsel %vm1128, 1, 0
        %v1193 = vsel %vm1129, 1, 0
        %v1194 = vsel %vm1130, 1, 0
        %v1195 = vsel %vm1131, 1, 0
        %v1196 = vsel %vm1132, 1, 0
        %v1197 = vsel %vm1133, 1, 0
        %v1198 = vsel %vm1134, 1, 0
        %v1199 = vsel %vm1135, 1, 0
        %v1200 = vsel %vm1136, 1, 0
        %v1201 = vsel %vm1137, 1, 0
        %v1202 = vsel %vm1138, 1, 0
        %v1203 = vsel %vm1139, 1, 0
        %v1204 = vsel %vm1140, 1, 0
        %v1205 = vsel %vm1141, 1, 0
        %v1206 = vsel %vm1142, 1, 0
        %v1207 = vcvt.s32.f32 %v1143
        %v1208 = vcvt.s32.f32 %v1144
        %v1209 = vcvt.s32.f32 %v1145
        %v1210 = vcvt.s32.f32 %v1146
        %v1211 = vcvt.s32.f32 %v1147
        %v1212 = vcvt.s32.f32 %v1148
        %v1213 = vcvt.s32.f32 %v1149
        %v1214 = vcvt.s32.f32 %v1150
        %v1215 = vcvt.s32.f32 %v1151
        %v1216 = vcvt.s32.f32 %v1152
        %v1217 = vcvt.s32.f32 %v1153
        %v1218 = vcvt.s32.f32 %v1154
        %v1219 = vcvt.s32.f32 %v1155
        %v1220 = vcvt.s32.f32 %v1156
        %v1221 = vcvt.s32.f32 %v1157
        %v1222 = vcvt.s32.f32 %v1158
        %v1223 = vcvt.s32.f32 %v1159
        %v1224 = vcvt.s32.f32 %v1160
        %v1225 = vcvt.s32.f32 %v1161
        %v1226 = vcvt.s32.f32 %v1162
        %v1227 = vcvt.s32.f32 %v1163
        %v1228 = vcvt.s32.f32 %v1164
        %v1229 = vcvt.s32.f32 %v1165
        %v1230 = vcvt.s32.f32 %v1166
        %v1231 = vcvt.s32.f32 %v1167
        %v1232 = vcvt.s32.f32 %v1168
        %v1233 = vcvt.s32.f32 %v1169
        %v1234 = vcvt.s32.f32 %v1170
        %v1235 = vcvt.s32.f32 %v1171
        %v1236 = vcvt.s32.f32 %v1172
        %v1237 = vcvt.s32.f32 %v1173
        %v1238 = vcvt.s32.f32 %v1174
        %v1239 = vcvt.s32.f32 %v1175
        %v1240 = vcvt.s32.f32 %v1176
        %v1241 = vcvt.s32.f32 %v1177
        %v1242 = vcvt.s32.f32 %v1178
        %v1243 = vcvt.s32.f32 %v1179
        %v1244 = vcvt.s32.f32 %v1180
        %v1245 = vcvt.s32.f32 %v1181
        %v1246 = vcvt.s32.f32 %v1182
        %v1247 = vcvt.s32.f32 %v1183
        %v1248 = vcvt.s32.f32 %v1184
        %v1249 = vcvt.s32.f32 %v1185
        %v1250 = vcvt.s32.f32 %v1186
        %v1251 = vcvt.s32.f32 %v1187
        %v1252 = vcvt.s32.f32 %v1188
        %v1253 = vcvt.s32.f32 %v1189
        %v1254 = vcvt.s32.f32 %v1190
        %v1255 = vcvt.s32.f32 %v1191
        %v1256 = vcvt.s32.f32 %v1192
        %v1257 = vcvt.s32.f32 %v1193
        %v1258 = vcvt.s32.f32 %v1194
        %v1259 = vcvt.s32.f32 %v1195
        %v1260 = vcvt.s32.f32 %v1196
        %v1261 = vcvt.s32.f32 %v1197
        %v1262 = vcvt.s32.f32 %v1198
        %v1263 = vcvt.s32.f32 %v1199
        %v1264 = vcvt.s32.f32 %v1200
        %v1265 = vcvt.s32.f32 %v1201
        %v1266 = vcvt.s32.f32 %v1202
        %v1267 = vcvt.s32.f32 %v1203
        %v1268 = vcvt.s32.f32 %v1204
        %v1269 = vcvt.s32.f32 %v1205
        %v1270 = vcvt.s32.f32 %v1206
        %vm1271 = vcmp.ge.s32.totalorder %v974, 0
        %v1272 = vsel %vm1271, 1, 0
        %v1273 = vlaneseq
        %v1274 = vshrl.u32 %v1273, 7
        %v1275 = vsub.s32 0, %v1274
        %v1276 = vrot.slane %v1272, %v1275
        %v1277 = vlaneseq
        %v1278 = vshrl.u32 %v1277, 7
        %v1279 = vsub.s32 1, %v1278
        %v1280 = vrot.slane %v1272, %v1279
        %vm1281 = vcmp.eq.s32.totalorder %v1276, 1
        %vm1282 = vcmp.eq.s32.totalorder %v1280, 1
        %v1283 = vsel %vm1281, %v784, -1e+30
        %v1284 = vsel %vm1282, %v786, -1e+30
        %v1285 = vsel %vm1281, %v788, -1e+30
        %v1286 = vsel %vm1282, %v790, -1e+30
        %v1287 = vsel %vm1281, %v794, -1e+30
        %v1288 = vsel %vm1282, %v796, -1e+30
        %v1289 = vsel %vm1281, %v798, -1e+30
        %v1290 = vsel %vm1282, %v800, -1e+30
        %v1291 = vsel %vm1281, %v804, -1e+30
        %v1292 = vsel %vm1282, %v806, -1e+30
        %v1293 = vsel %vm1281, %v808, -1e+30
        %v1294 = vsel %vm1282, %v810, -1e+30
        %v1295 = vsel %vm1281, %v814, -1e+30
        %v1296 = vsel %vm1282, %v816, -1e+30
        %v1297 = vsel %vm1281, %v818, -1e+30
        %v1298 = vsel %vm1282, %v820, -1e+30
        %v1299 = vsel %vm1281, %v824, -1e+30
        %v1300 = vsel %vm1282, %v826, -1e+30
        %v1301 = vsel %vm1281, %v828, -1e+30
        %v1302 = vsel %vm1282, %v830, -1e+30
        %v1303 = vsel %vm1281, %v834, -1e+30
        %v1304 = vsel %vm1282, %v836, -1e+30
        %v1305 = vsel %vm1281, %v838, -1e+30
        %v1306 = vsel %vm1282, %v840, -1e+30
        %v1307 = vsel %vm1281, %v844, -1e+30
        %v1308 = vsel %vm1282, %v846, -1e+30
        %v1309 = vsel %vm1281, %v848, -1e+30
        %v1310 = vsel %vm1282, %v850, -1e+30
        %v1311 = vsel %vm1281, %v854, -1e+30
        %v1312 = vsel %vm1282, %v856, -1e+30
        %v1313 = vsel %vm1281, %v858, -1e+30
        %v1314 = vsel %vm1282, %v860, -1e+30
        %v1315 = vsel %vm1281, %v864, -1e+30
        %v1316 = vsel %vm1282, %v866, -1e+30
        %v1317 = vsel %vm1281, %v868, -1e+30
        %v1318 = vsel %vm1282, %v870, -1e+30
        %v1319 = vsel %vm1281, %v874, -1e+30
        %v1320 = vsel %vm1282, %v876, -1e+30
        %v1321 = vsel %vm1281, %v878, -1e+30
        %v1322 = vsel %vm1282, %v880, -1e+30
        %v1323 = vsel %vm1281, %v884, -1e+30
        %v1324 = vsel %vm1282, %v886, -1e+30
        %v1325 = vsel %vm1281, %v888, -1e+30
        %v1326 = vsel %vm1282, %v890, -1e+30
        %v1327 = vsel %vm1281, %v894, -1e+30
        %v1328 = vsel %vm1282, %v896, -1e+30
        %v1329 = vsel %vm1281, %v898, -1e+30
        %v1330 = vsel %vm1282, %v900, -1e+30
        %v1331 = vsel %vm1281, %v904, -1e+30
        %v1332 = vsel %vm1282, %v906, -1e+30
        %v1333 = vsel %vm1281, %v908, -1e+30
        %v1334 = vsel %vm1282, %v910, -1e+30
        %v1335 = vsel %vm1281, %v914, -1e+30
        %v1336 = vsel %vm1282, %v916, -1e+30
        %v1337 = vsel %vm1281, %v918, -1e+30
        %v1338 = vsel %vm1282, %v920, -1e+30
        %v1339 = vsel %vm1281, %v924, -1e+30
        %v1340 = vsel %vm1282, %v926, -1e+30
        %v1341 = vsel %vm1281, %v928, -1e+30
        %v1342 = vsel %vm1282, %v930, -1e+30
        %v1343 = vsel %vm1281, %v934, -1e+30
        %v1344 = vsel %vm1282, %v936, -1e+30
        %v1345 = vsel %vm1281, %v938, -1e+30
        %v1346 = vsel %vm1282, %v940, -1e+30
        %v1347 = vld [vmem:[#allocation4] sm:$0xff]
        %v1348 = vld [vmem:[#allocation4 + $0x8] sm:$0xff]
        %v1349 = vld [vmem:[#allocation4 + $0x10] sm:$0xff]
        %v1350 = vld [vmem:[#allocation4 + $0x18] sm:$0xff]
        %v1351 = vld [vmem:[#allocation4 + $0x20] sm:$0xff]
        %v1352 = vld [vmem:[#allocation4 + $0x28] sm:$0xff]
        %v1353 = vld [vmem:[#allocation4 + $0x30] sm:$0xff]
        %v1354 = vld [vmem:[#allocation4 + $0x38] sm:$0xff]
        %v1355 = vld [vmem:[#allocation4 + $0x40] sm:$0xff]
        %v1356 = vld [vmem:[#allocation4 + $0x48] sm:$0xff]
        %v1357 = vld [vmem:[#allocation4 + $0x50] sm:$0xff]
        %v1358 = vld [vmem:[#allocation4 + $0x58] sm:$0xff]
        %v1359 = vld [vmem:[#allocation4 + $0x60] sm:$0xff]
        %v1360 = vld [vmem:[#allocation4 + $0x68] sm:$0xff]
        %v1361 = vld [vmem:[#allocation4 + $0x70] sm:$0xff]
        %v1362 = vld [vmem:[#allocation4 + $0x78] sm:$0xff]
        %v1363 = vld [vmem:[#allocation4 + $0x80] sm:$0xff]
        %v1364 = vld [vmem:[#allocation4 + $0x88] sm:$0xff]
        %v1365 = vld [vmem:[#allocation4 + $0x90] sm:$0xff]
        %v1366 = vld [vmem:[#allocation4 + $0x98] sm:$0xff]
        %v1367 = vld [vmem:[#allocation4 + $0xa0] sm:$0xff]
        %v1368 = vld [vmem:[#allocation4 + $0xa8] sm:$0xff]
        %v1369 = vld [vmem:[#allocation4 + $0xb0] sm:$0xff]
        %v1370 = vld [vmem:[#allocation4 + $0xb8] sm:$0xff]
        %v1371 = vld [vmem:[#allocation4 + $0xc0] sm:$0xff]
        %v1372 = vld [vmem:[#allocation4 + $0xc8] sm:$0xff]
        %v1373 = vld [vmem:[#allocation4 + $0xd0] sm:$0xff]
        %v1374 = vld [vmem:[#allocation4 + $0xd8] sm:$0xff]
        %v1375 = vld [vmem:[#allocation4 + $0xe0] sm:$0xff]
        %v1376 = vld [vmem:[#allocation4 + $0xe8] sm:$0xff]
        %v1377 = vld [vmem:[#allocation4 + $0xf0] sm:$0xff]
        %v1378 = vld [vmem:[#allocation4 + $0xf8] sm:$0xff]
        %v1379 = vadd.f32 %v1207, %v1208
        %1380 = vadd.xlane.f32.xlu0 %v1379
        %v1381 = vpop.xlane.xlu0 %1380
        %v1382 = vadd.f32 %v1209, %v1210
        %1383 = vadd.xlane.f32.xlu0 %v1382
        %v1384 = vpop.xlane.xlu0 %1383
        %v1385 = vadd.f32 %v1211, %v1212
        %1386 = vadd.xlane.f32.xlu0 %v1385
        %v1387 = vpop.xlane.xlu0 %1386
        %v1388 = vadd.f32 %v1213, %v1214
        %1389 = vadd.xlane.f32.xlu0 %v1388
        %v1390 = vpop.xlane.xlu0 %1389
        %v1391 = vadd.f32 %v1215, %v1216
        %1392 = vadd.xlane.f32.xlu0 %v1391
        %v1393 = vpop.xlane.xlu0 %1392
        %v1394 = vadd.f32 %v1217, %v1218
        %1395 = vadd.xlane.f32.xlu0 %v1394
        %v1396 = vpop.xlane.xlu0 %1395
        %v1397 = vadd.f32 %v1219, %v1220
        %1398 = vadd.xlane.f32.xlu0 %v1397
        %v1399 = vpop.xlane.xlu0 %1398
        %v1400 = vadd.f32 %v1221, %v1222
        %1401 = vadd.xlane.f32.xlu0 %v1400
        %v1402 = vpop.xlane.xlu0 %1401
        %v1403 = vadd.f32 %v1223, %v1224
        %1404 = vadd.xlane.f32.xlu0 %v1403
        %v1405 = vpop.xlane.xlu0 %1404
        %v1406 = vadd.f32 %v1225, %v1226
        %1407 = vadd.xlane.f32.xlu0 %v1406
        %v1408 = vpop.xlane.xlu0 %1407
        %v1409 = vadd.f32 %v1227, %v1228
        %1410 = vadd.xlane.f32.xlu0 %v1409
        %v1411 = vpop.xlane.xlu0 %1410
        %v1412 = vadd.f32 %v1229, %v1230
        %1413 = vadd.xlane.f32.xlu0 %v1412
        %v1414 = vpop.xlane.xlu0 %1413
        %v1415 = vadd.f32 %v1231, %v1232
        %1416 = vadd.xlane.f32.xlu0 %v1415
        %v1417 = vpop.xlane.xlu0 %1416
        %v1418 = vadd.f32 %v1233, %v1234
        %1419 = vadd.xlane.f32.xlu0 %v1418
        %v1420 = vpop.xlane.xlu0 %1419
        %v1421 = vadd.f32 %v1235, %v1236
        %1422 = vadd.xlane.f32.xlu0 %v1421
        %v1423 = vpop.xlane.xlu0 %1422
        %v1424 = vadd.f32 %v1237, %v1238
        %1425 = vadd.xlane.f32.xlu0 %v1424
        %v1426 = vpop.xlane.xlu0 %1425
        %v1427 = vadd.f32 %v1239, %v1240
        %1428 = vadd.xlane.f32.xlu0 %v1427
        %v1429 = vpop.xlane.xlu0 %1428
        %v1430 = vadd.f32 %v1241, %v1242
        %1431 = vadd.xlane.f32.xlu0 %v1430
        %v1432 = vpop.xlane.xlu0 %1431
        %v1433 = vadd.f32 %v1243, %v1244
        %1434 = vadd.xlane.f32.xlu0 %v1433
        %v1435 = vpop.xlane.xlu0 %1434
        %v1436 = vadd.f32 %v1245, %v1246
        %1437 = vadd.xlane.f32.xlu0 %v1436
        %v1438 = vpop.xlane.xlu0 %1437
        %v1439 = vadd.f32 %v1247, %v1248
        %1440 = vadd.xlane.f32.xlu0 %v1439
        %v1441 = vpop.xlane.xlu0 %1440
        %v1442 = vadd.f32 %v1249, %v1250
        %1443 = vadd.xlane.f32.xlu0 %v1442
        %v1444 = vpop.xlane.xlu0 %1443
        %v1445 = vadd.f32 %v1251, %v1252
        %1446 = vadd.xlane.f32.xlu0 %v1445
        %v1447 = vpop.xlane.xlu0 %1446
        %v1448 = vadd.f32 %v1253, %v1254
        %1449 = vadd.xlane.f32.xlu0 %v1448
        %v1450 = vpop.xlane.xlu0 %1449
        %v1451 = vadd.f32 %v1255, %v1256
        %1452 = vadd.xlane.f32.xlu0 %v1451
        %v1453 = vpop.xlane.xlu0 %1452
        %v1454 = vadd.f32 %v1257, %v1258
        %1455 = vadd.xlane.f32.xlu0 %v1454
        %v1456 = vpop.xlane.xlu0 %1455
        %v1457 = vadd.f32 %v1259, %v1260
        %1458 = vadd.xlane.f32.xlu0 %v1457
        %v1459 = vpop.xlane.xlu0 %1458
        %v1460 = vadd.f32 %v1261, %v1262
        %1461 = vadd.xlane.f32.xlu0 %v1460
        %v1462 = vpop.xlane.xlu0 %1461
        %v1463 = vadd.f32 %v1263, %v1264
        %1464 = vadd.xlane.f32.xlu0 %v1463
        %v1465 = vpop.xlane.xlu0 %1464
        %v1466 = vadd.f32 %v1265, %v1266
        %1467 = vadd.xlane.f32.xlu0 %v1466
        %v1468 = vpop.xlane.xlu0 %1467
        %v1469 = vadd.f32 %v1267, %v1268
        %1470 = vadd.xlane.f32.xlu0 %v1469
        %v1471 = vpop.xlane.xlu0 %1470
        %v1472 = vadd.f32 %v1269, %v1270
        %1473 = vadd.xlane.f32.xlu0 %v1472
        %v1474 = vpop.xlane.xlu0 %1473
        %v1475 = vadd.f32 %v1347, %v1381
        %v1476 = vadd.f32 %v1348, %v1384
        %v1477 = vadd.f32 %v1349, %v1387
        %v1478 = vadd.f32 %v1350, %v1390
        %v1479 = vadd.f32 %v1351, %v1393
        %v1480 = vadd.f32 %v1352, %v1396
        %v1481 = vadd.f32 %v1353, %v1399
        %v1482 = vadd.f32 %v1354, %v1402
        %v1483 = vadd.f32 %v1355, %v1405
        %v1484 = vadd.f32 %v1356, %v1408
        %v1485 = vadd.f32 %v1357, %v1411
        %v1486 = vadd.f32 %v1358, %v1414
        %v1487 = vadd.f32 %v1359, %v1417
        %v1488 = vadd.f32 %v1360, %v1420
        %v1489 = vadd.f32 %v1361, %v1423
        %v1490 = vadd.f32 %v1362, %v1426
        %v1491 = vadd.f32 %v1363, %v1429
        %v1492 = vadd.f32 %v1364, %v1432
        %v1493 = vadd.f32 %v1365, %v1435
        %v1494 = vadd.f32 %v1366, %v1438
        %v1495 = vadd.f32 %v1367, %v1441
        %v1496 = vadd.f32 %v1368, %v1444
        %v1497 = vadd.f32 %v1369, %v1447
        %v1498 = vadd.f32 %v1370, %v1450
        %v1499 = vadd.f32 %v1371, %v1453
        %v1500 = vadd.f32 %v1372, %v1456
        %v1501 = vadd.f32 %v1373, %v1459
        %v1502 = vadd.f32 %v1374, %v1462
        %v1503 = vadd.f32 %v1375, %v1465
        %v1504 = vadd.f32 %v1376, %v1468
        %v1505 = vadd.f32 %v1377, %v1471
        %v1506 = vadd.f32 %v1378, %v1474
        %vm1507 = vcmask 7168
        %1508 = vst.msk [vmem:[#allocation4] sm:$0xff] %vm1507, %v1475
        %1509 = vst.msk [vmem:[#allocation4 + $0x8] sm:$0xff] %vm1507, %v1476
        %1510 = vst.msk [vmem:[#allocation4 + $0x10] sm:$0xff] %vm1507, %v1477
        %1511 = vst.msk [vmem:[#allocation4 + $0x18] sm:$0xff] %vm1507, %v1478
        %1512 = vst.msk [vmem:[#allocation4 + $0x20] sm:$0xff] %vm1507, %v1479
        %1513 = vst.msk [vmem:[#allocation4 + $0x28] sm:$0xff] %vm1507, %v1480
        %1514 = vst.msk [vmem:[#allocation4 + $0x30] sm:$0xff] %vm1507, %v1481
        %1515 = vst.msk [vmem:[#allocation4 + $0x38] sm:$0xff] %vm1507, %v1482
        %1516 = vst.msk [vmem:[#allocation4 + $0x40] sm:$0xff] %vm1507, %v1483
        %1517 = vst.msk [vmem:[#allocation4 + $0x48] sm:$0xff] %vm1507, %v1484
        %1518 = vst.msk [vmem:[#allocation4 + $0x50] sm:$0xff] %vm1507, %v1485
        %1519 = vst.msk [vmem:[#allocation4 + $0x58] sm:$0xff] %vm1507, %v1486
        %1520 = vst.msk [vmem:[#allocation4 + $0x60] sm:$0xff] %vm1507, %v1487
        %1521 = vst.msk [vmem:[#allocation4 + $0x68] sm:$0xff] %vm1507, %v1488
        %1522 = vst.msk [vmem:[#allocation4 + $0x70] sm:$0xff] %vm1507, %v1489
        %1523 = vst.msk [vmem:[#allocation4 + $0x78] sm:$0xff] %vm1507, %v1490
        %1524 = vst.msk [vmem:[#allocation4 + $0x80] sm:$0xff] %vm1507, %v1491
        %1525 = vst.msk [vmem:[#allocation4 + $0x88] sm:$0xff] %vm1507, %v1492
        %1526 = vst.msk [vmem:[#allocation4 + $0x90] sm:$0xff] %vm1507, %v1493
        %1527 = vst.msk [vmem:[#allocation4 + $0x98] sm:$0xff] %vm1507, %v1494
        %1528 = vst.msk [vmem:[#allocation4 + $0xa0] sm:$0xff] %vm1507, %v1495
        %1529 = vst.msk [vmem:[#allocation4 + $0xa8] sm:$0xff] %vm1507, %v1496
        %1530 = vst.msk [vmem:[#allocation4 + $0xb0] sm:$0xff] %vm1507, %v1497
        %1531 = vst.msk [vmem:[#allocation4 + $0xb8] sm:$0xff] %vm1507, %v1498
        %1532 = vst.msk [vmem:[#allocation4 + $0xc0] sm:$0xff] %vm1507, %v1499
        %1533 = vst.msk [vmem:[#allocation4 + $0xc8] sm:$0xff] %vm1507, %v1500
        %1534 = vst.msk [vmem:[#allocation4 + $0xd0] sm:$0xff] %vm1507, %v1501
        %1535 = vst.msk [vmem:[#allocation4 + $0xd8] sm:$0xff] %vm1507, %v1502
        %1536 = vst.msk [vmem:[#allocation4 + $0xe0] sm:$0xff] %vm1507, %v1503
        %1537 = vst.msk [vmem:[#allocation4 + $0xe8] sm:$0xff] %vm1507, %v1504
        %1538 = vst.msk [vmem:[#allocation4 + $0xf0] sm:$0xff] %vm1507, %v1505
        %1539 = vst.msk [vmem:[#allocation4 + $0xf8] sm:$0xff] %vm1507, %v1506
        %v1540 = vld [vmem:[#allocation5] sm:$0xff]
        %v1541 = vld [vmem:[#allocation5 + $0x8] sm:$0xff]
        %v1542 = vld [vmem:[#allocation5 + $0x10] sm:$0xff]
        %v1543 = vld [vmem:[#allocation5 + $0x18] sm:$0xff]
        %v1544 = vld [vmem:[#allocation5 + $0x20] sm:$0xff]
        %v1545 = vld [vmem:[#allocation5 + $0x28] sm:$0xff]
        %v1546 = vld [vmem:[#allocation5 + $0x30] sm:$0xff]
        %v1547 = vld [vmem:[#allocation5 + $0x38] sm:$0xff]
        %v1548 = vld [vmem:[#allocation5 + $0x40] sm:$0xff]
        %v1549 = vld [vmem:[#allocation5 + $0x48] sm:$0xff]
        %v1550 = vld [vmem:[#allocation5 + $0x50] sm:$0xff]
        %v1551 = vld [vmem:[#allocation5 + $0x58] sm:$0xff]
        %v1552 = vld [vmem:[#allocation5 + $0x60] sm:$0xff]
        %v1553 = vld [vmem:[#allocation5 + $0x68] sm:$0xff]
        %v1554 = vld [vmem:[#allocation5 + $0x70] sm:$0xff]
        %v1555 = vld [vmem:[#allocation5 + $0x78] sm:$0xff]
        %v1556 = vld [vmem:[#allocation5 + $0x80] sm:$0xff]
        %v1557 = vld [vmem:[#allocation5 + $0x88] sm:$0xff]
        %v1558 = vld [vmem:[#allocation5 + $0x90] sm:$0xff]
        %v1559 = vld [vmem:[#allocation5 + $0x98] sm:$0xff]
        %v1560 = vld [vmem:[#allocation5 + $0xa0] sm:$0xff]
        %v1561 = vld [vmem:[#allocation5 + $0xa8] sm:$0xff]
        %v1562 = vld [vmem:[#allocation5 + $0xb0] sm:$0xff]
        %v1563 = vld [vmem:[#allocation5 + $0xb8] sm:$0xff]
        %v1564 = vld [vmem:[#allocation5 + $0xc0] sm:$0xff]
        %v1565 = vld [vmem:[#allocation5 + $0xc8] sm:$0xff]
        %v1566 = vld [vmem:[#allocation5 + $0xd0] sm:$0xff]
        %v1567 = vld [vmem:[#allocation5 + $0xd8] sm:$0xff]
        %v1568 = vld [vmem:[#allocation5 + $0xe0] sm:$0xff]
        %v1569 = vld [vmem:[#allocation5 + $0xe8] sm:$0xff]
        %v1570 = vld [vmem:[#allocation5 + $0xf0] sm:$0xff]
        %v1571 = vld [vmem:[#allocation5 + $0xf8] sm:$0xff]
        %v1572 = vmul.f32 %v1207, %v1283
        %v1573 = vmul.f32 %v1208, %v1284
        %v1574 = vmul.f32 %v1209, %v1285
        %v1575 = vmul.f32 %v1210, %v1286
        %v1576 = vmul.f32 %v1211, %v1287
        %v1577 = vmul.f32 %v1212, %v1288
        %v1578 = vmul.f32 %v1213, %v1289
        %v1579 = vmul.f32 %v1214, %v1290
        %v1580 = vmul.f32 %v1215, %v1291
        %v1581 = vmul.f32 %v1216, %v1292
        %v1582 = vmul.f32 %v1217, %v1293
        %v1583 = vmul.f32 %v1218, %v1294
        %v1584 = vmul.f32 %v1219, %v1295
        %v1585 = vmul.f32 %v1220, %v1296
        %v1586 = vmul.f32 %v1221, %v1297
        %v1587 = vmul.f32 %v1222, %v1298
        %v1588 = vmul.f32 %v1223, %v1299
        %v1589 = vmul.f32 %v1224, %v1300
        %v1590 = vmul.f32 %v1225, %v1301
        %v1591 = vmul.f32 %v1226, %v1302
        %v1592 = vmul.f32 %v1227, %v1303
        %v1593 = vmul.f32 %v1228, %v1304
        %v1594 = vmul.f32 %v1229, %v1305
        %v1595 = vmul.f32 %v1230, %v1306
        %v1596 = vmul.f32 %v1231, %v1307
        %v1597 = vmul.f32 %v1232, %v1308
        %v1598 = vmul.f32 %v1233, %v1309
        %v1599 = vmul.f32 %v1234, %v1310
        %v1600 = vmul.f32 %v1235, %v1311
        %v1601 = vmul.f32 %v1236, %v1312
        %v1602 = vmul.f32 %v1237, %v1313
        %v1603 = vmul.f32 %v1238, %v1314
        %v1604 = vmul.f32 %v1239, %v1315
        %v1605 = vmul.f32 %v1240, %v1316
        %v1606 = vmul.f32 %v1241, %v1317
        %v1607 = vmul.f32 %v1242, %v1318
        %v1608 = vmul.f32 %v1243, %v1319
        %v1609 = vmul.f32 %v1244, %v1320
        %v1610 = vmul.f32 %v1245, %v1321
        %v1611 = vmul.f32 %v1246, %v1322
        %v1612 = vmul.f32 %v1247, %v1323
        %v1613 = vmul.f32 %v1248, %v1324
        %v1614 = vmul.f32 %v1249, %v1325
        %v1615 = vmul.f32 %v1250, %v1326
        %v1616 = vmul.f32 %v1251, %v1327
        %v1617 = vmul.f32 %v1252, %v1328
        %v1618 = vmul.f32 %v1253, %v1329
        %v1619 = vmul.f32 %v1254, %v1330
        %v1620 = vmul.f32 %v1255, %v1331
        %v1621 = vmul.f32 %v1256, %v1332
        %v1622 = vmul.f32 %v1257, %v1333
        %v1623 = vmul.f32 %v1258, %v1334
        %v1624 = vmul.f32 %v1259, %v1335
        %v1625 = vmul.f32 %v1260, %v1336
        %v1626 = vmul.f32 %v1261, %v1337
        %v1627 = vmul.f32 %v1262, %v1338
        %v1628 = vmul.f32 %v1263, %v1339
        %v1629 = vmul.f32 %v1264, %v1340
        %v1630 = vmul.f32 %v1265, %v1341
        %v1631 = vmul.f32 %v1266, %v1342
        %v1632 = vmul.f32 %v1267, %v1343
        %v1633 = vmul.f32 %v1268, %v1344
        %v1634 = vmul.f32 %v1269, %v1345
        %v1635 = vmul.f32 %v1270, %v1346
        %v1636 = vadd.f32 %v1572, %v1573
        %1637 = vadd.xlane.f32.xlu0 %v1636
        %v1638 = vpop.xlane.xlu0 %1637
        %v1639 = vadd.f32 %v1574, %v1575
        %1640 = vadd.xlane.f32.xlu0 %v1639
        %v1641 = vpop.xlane.xlu0 %1640
        %v1642 = vadd.f32 %v1576, %v1577
        %1643 = vadd.xlane.f32.xlu0 %v1642
        %v1644 = vpop.xlane.xlu0 %1643
        %v1645 = vadd.f32 %v1578, %v1579
        %1646 = vadd.xlane.f32.xlu0 %v1645
        %v1647 = vpop.xlane.xlu0 %1646
        %v1648 = vadd.f32 %v1580, %v1581
        %1649 = vadd.xlane.f32.xlu0 %v1648
        %v1650 = vpop.xlane.xlu0 %1649
        %v1651 = vadd.f32 %v1582, %v1583
        %1652 = vadd.xlane.f32.xlu0 %v1651
        %v1653 = vpop.xlane.xlu0 %1652
        %v1654 = vadd.f32 %v1584, %v1585
        %1655 = vadd.xlane.f32.xlu0 %v1654
        %v1656 = vpop.xlane.xlu0 %1655
        %v1657 = vadd.f32 %v1586, %v1587
        %1658 = vadd.xlane.f32.xlu0 %v1657
        %v1659 = vpop.xlane.xlu0 %1658
        %v1660 = vadd.f32 %v1588, %v1589
        %1661 = vadd.xlane.f32.xlu0 %v1660
        %v1662 = vpop.xlane.xlu0 %1661
        %v1663 = vadd.f32 %v1590, %v1591
        %1664 = vadd.xlane.f32.xlu0 %v1663
        %v1665 = vpop.xlane.xlu0 %1664
        %v1666 = vadd.f32 %v1592, %v1593
        %1667 = vadd.xlane.f32.xlu0 %v1666
        %v1668 = vpop.xlane.xlu0 %1667
        %v1669 = vadd.f32 %v1594, %v1595
        %1670 = vadd.xlane.f32.xlu0 %v1669
        %v1671 = vpop.xlane.xlu0 %1670
        %v1672 = vadd.f32 %v1596, %v1597
        %1673 = vadd.xlane.f32.xlu0 %v1672
        %v1674 = vpop.xlane.xlu0 %1673
        %v1675 = vadd.f32 %v1598, %v1599
        %1676 = vadd.xlane.f32.xlu0 %v1675
        %v1677 = vpop.xlane.xlu0 %1676
        %v1678 = vadd.f32 %v1600, %v1601
        %1679 = vadd.xlane.f32.xlu0 %v1678
        %v1680 = vpop.xlane.xlu0 %1679
        %v1681 = vadd.f32 %v1602, %v1603
        %1682 = vadd.xlane.f32.xlu0 %v1681
        %v1683 = vpop.xlane.xlu0 %1682
        %v1684 = vadd.f32 %v1604, %v1605
        %1685 = vadd.xlane.f32.xlu0 %v1684
        %v1686 = vpop.xlane.xlu0 %1685
        %v1687 = vadd.f32 %v1606, %v1607
        %1688 = vadd.xlane.f32.xlu0 %v1687
        %v1689 = vpop.xlane.xlu0 %1688
        %v1690 = vadd.f32 %v1608, %v1609
        %1691 = vadd.xlane.f32.xlu0 %v1690
        %v1692 = vpop.xlane.xlu0 %1691
        %v1693 = vadd.f32 %v1610, %v1611
        %1694 = vadd.xlane.f32.xlu0 %v1693
        %v1695 = vpop.xlane.xlu0 %1694
        %v1696 = vadd.f32 %v1612, %v1613
        %1697 = vadd.xlane.f32.xlu0 %v1696
        %v1698 = vpop.xlane.xlu0 %1697
        %v1699 = vadd.f32 %v1614, %v1615
        %1700 = vadd.xlane.f32.xlu0 %v1699
        %v1701 = vpop.xlane.xlu0 %1700
        %v1702 = vadd.f32 %v1616, %v1617
        %1703 = vadd.xlane.f32.xlu0 %v1702
        %v1704 = vpop.xlane.xlu0 %1703
        %v1705 = vadd.f32 %v1618, %v1619
        %1706 = vadd.xlane.f32.xlu0 %v1705
        %v1707 = vpop.xlane.xlu0 %1706
        %v1708 = vadd.f32 %v1620, %v1621
        %1709 = vadd.xlane.f32.xlu0 %v1708
        %v1710 = vpop.xlane.xlu0 %1709
        %v1711 = vadd.f32 %v1622, %v1623
        %1712 = vadd.xlane.f32.xlu0 %v1711
        %v1713 = vpop.xlane.xlu0 %1712
        %v1714 = vadd.f32 %v1624, %v1625
        %1715 = vadd.xlane.f32.xlu0 %v1714
        %v1716 = vpop.xlane.xlu0 %1715
        %v1717 = vadd.f32 %v1626, %v1627
        %1718 = vadd.xlane.f32.xlu0 %v1717
        %v1719 = vpop.xlane.xlu0 %1718
        %v1720 = vadd.f32 %v1628, %v1629
        %1721 = vadd.xlane.f32.xlu0 %v1720
        %v1722 = vpop.xlane.xlu0 %1721
        %v1723 = vadd.f32 %v1630, %v1631
        %1724 = vadd.xlane.f32.xlu0 %v1723
        %v1725 = vpop.xlane.xlu0 %1724
        %v1726 = vadd.f32 %v1632, %v1633
        %1727 = vadd.xlane.f32.xlu0 %v1726
        %v1728 = vpop.xlane.xlu0 %1727
        %v1729 = vadd.f32 %v1634, %v1635
        %1730 = vadd.xlane.f32.xlu0 %v1729
        %v1731 = vpop.xlane.xlu0 %1730
        %v1732 = vadd.f32 %v1540, %v1638
        %v1733 = vadd.f32 %v1541, %v1641
        %v1734 = vadd.f32 %v1542, %v1644
        %v1735 = vadd.f32 %v1543, %v1647
        %v1736 = vadd.f32 %v1544, %v1650
        %v1737 = vadd.f32 %v1545, %v1653
        %v1738 = vadd.f32 %v1546, %v1656
        %v1739 = vadd.f32 %v1547, %v1659
        %v1740 = vadd.f32 %v1548, %v1662
        %v1741 = vadd.f32 %v1549, %v1665
        %v1742 = vadd.f32 %v1550, %v1668
        %v1743 = vadd.f32 %v1551, %v1671
        %v1744 = vadd.f32 %v1552, %v1674
        %v1745 = vadd.f32 %v1553, %v1677
        %v1746 = vadd.f32 %v1554, %v1680
        %v1747 = vadd.f32 %v1555, %v1683
        %v1748 = vadd.f32 %v1556, %v1686
        %v1749 = vadd.f32 %v1557, %v1689
        %v1750 = vadd.f32 %v1558, %v1692
        %v1751 = vadd.f32 %v1559, %v1695
        %v1752 = vadd.f32 %v1560, %v1698
        %v1753 = vadd.f32 %v1561, %v1701
        %v1754 = vadd.f32 %v1562, %v1704
        %v1755 = vadd.f32 %v1563, %v1707
        %v1756 = vadd.f32 %v1564, %v1710
        %v1757 = vadd.f32 %v1565, %v1713
        %v1758 = vadd.f32 %v1566, %v1716
        %v1759 = vadd.f32 %v1567, %v1719
        %v1760 = vadd.f32 %v1568, %v1722
        %v1761 = vadd.f32 %v1569, %v1725
        %v1762 = vadd.f32 %v1570, %v1728
        %v1763 = vadd.f32 %v1571, %v1731
        %1764 = vst.msk [vmem:[#allocation5] sm:$0xff] %vm1507, %v1732
        %1765 = vst.msk [vmem:[#allocation5 + $0x8] sm:$0xff] %vm1507, %v1733
        %1766 = vst.msk [vmem:[#allocation5 + $0x10] sm:$0xff] %vm1507, %v1734
        %1767 = vst.msk [vmem:[#allocation5 + $0x18] sm:$0xff] %vm1507, %v1735
        %1768 = vst.msk [vmem:[#allocation5 + $0x20] sm:$0xff] %vm1507, %v1736
        %1769 = vst.msk [vmem:[#allocation5 + $0x28] sm:$0xff] %vm1507, %v1737
        %1770 = vst.msk [vmem:[#allocation5 + $0x30] sm:$0xff] %vm1507, %v1738
        %1771 = vst.msk [vmem:[#allocation5 + $0x38] sm:$0xff] %vm1507, %v1739
        %1772 = vst.msk [vmem:[#allocation5 + $0x40] sm:$0xff] %vm1507, %v1740
        %1773 = vst.msk [vmem:[#allocation5 + $0x48] sm:$0xff] %vm1507, %v1741
        %1774 = vst.msk [vmem:[#allocation5 + $0x50] sm:$0xff] %vm1507, %v1742
        %1775 = vst.msk [vmem:[#allocation5 + $0x58] sm:$0xff] %vm1507, %v1743
        %1776 = vst.msk [vmem:[#allocation5 + $0x60] sm:$0xff] %vm1507, %v1744
        %1777 = vst.msk [vmem:[#allocation5 + $0x68] sm:$0xff] %vm1507, %v1745
        %1778 = vst.msk [vmem:[#allocation5 + $0x70] sm:$0xff] %vm1507, %v1746
        %1779 = vst.msk [vmem:[#allocation5 + $0x78] sm:$0xff] %vm1507, %v1747
        %1780 = vst.msk [vmem:[#allocation5 + $0x80] sm:$0xff] %vm1507, %v1748
        %1781 = vst.msk [vmem:[#allocation5 + $0x88] sm:$0xff] %vm1507, %v1749
        %1782 = vst.msk [vmem:[#allocation5 + $0x90] sm:$0xff] %vm1507, %v1750
        %1783 = vst.msk [vmem:[#allocation5 + $0x98] sm:$0xff] %vm1507, %v1751
        %1784 = vst.msk [vmem:[#allocation5 + $0xa0] sm:$0xff] %vm1507, %v1752
        %1785 = vst.msk [vmem:[#allocation5 + $0xa8] sm:$0xff] %vm1507, %v1753
        %1786 = vst.msk [vmem:[#allocation5 + $0xb0] sm:$0xff] %vm1507, %v1754
        %1787 = vst.msk [vmem:[#allocation5 + $0xb8] sm:$0xff] %vm1507, %v1755
        %1788 = vst.msk [vmem:[#allocation5 + $0xc0] sm:$0xff] %vm1507, %v1756
        %1789 = vst.msk [vmem:[#allocation5 + $0xc8] sm:$0xff] %vm1507, %v1757
        %1790 = vst.msk [vmem:[#allocation5 + $0xd0] sm:$0xff] %vm1507, %v1758
        %1791 = vst.msk [vmem:[#allocation5 + $0xd8] sm:$0xff] %vm1507, %v1759
        %1792 = vst.msk [vmem:[#allocation5 + $0xe0] sm:$0xff] %vm1507, %v1760
        %1793 = vst.msk [vmem:[#allocation5 + $0xe8] sm:$0xff] %vm1507, %v1761
        %1794 = vst.msk [vmem:[#allocation5 + $0xf0] sm:$0xff] %vm1507, %v1762
        %1795 = vst.msk [vmem:[#allocation5 + $0xf8] sm:$0xff] %vm1507, %v1763
        %v1796 = vld [vmem:[#allocation2] sm:$0xff]
        %v1797 = vld [vmem:[#allocation2 + $0x8] sm:$0xff]
        %v1798 = vld [vmem:[#allocation2 + $0x10] sm:$0xff]
        %v1799 = vld [vmem:[#allocation2 + $0x18] sm:$0xff]
        %v1800 = vld [vmem:[#allocation2 + $0x20] sm:$0xff]
        %v1801 = vld [vmem:[#allocation2 + $0x28] sm:$0xff]
        %v1802 = vld [vmem:[#allocation2 + $0x30] sm:$0xff]
        %v1803 = vld [vmem:[#allocation2 + $0x38] sm:$0xff]
        %v1804 = vld [vmem:[#allocation2 + $0x40] sm:$0xff]
        %v1805 = vld [vmem:[#allocation2 + $0x48] sm:$0xff]
        %v1806 = vld [vmem:[#allocation2 + $0x50] sm:$0xff]
        %v1807 = vld [vmem:[#allocation2 + $0x58] sm:$0xff]
        %v1808 = vld [vmem:[#allocation2 + $0x60] sm:$0xff]
        %v1809 = vld [vmem:[#allocation2 + $0x68] sm:$0xff]
        %v1810 = vld [vmem:[#allocation2 + $0x70] sm:$0xff]
        %v1811 = vld [vmem:[#allocation2 + $0x78] sm:$0xff]
        %v1812 = vld [vmem:[#allocation2 + $0x80] sm:$0xff]
        %v1813 = vld [vmem:[#allocation2 + $0x88] sm:$0xff]
        %v1814 = vld [vmem:[#allocation2 + $0x90] sm:$0xff]
        %v1815 = vld [vmem:[#allocation2 + $0x98] sm:$0xff]
        %v1816 = vld [vmem:[#allocation2 + $0xa0] sm:$0xff]
        %v1817 = vld [vmem:[#allocation2 + $0xa8] sm:$0xff]
        %v1818 = vld [vmem:[#allocation2 + $0xb0] sm:$0xff]
        %v1819 = vld [vmem:[#allocation2 + $0xb8] sm:$0xff]
        %v1820 = vld [vmem:[#allocation2 + $0xc0] sm:$0xff]
        %v1821 = vld [vmem:[#allocation2 + $0xc8] sm:$0xff]
        %v1822 = vld [vmem:[#allocation2 + $0xd0] sm:$0xff]
        %v1823 = vld [vmem:[#allocation2 + $0xd8] sm:$0xff]
        %v1824 = vld [vmem:[#allocation2 + $0xe0] sm:$0xff]
        %v1825 = vld [vmem:[#allocation2 + $0xe8] sm:$0xff]
        %v1826 = vld [vmem:[#allocation2 + $0xf0] sm:$0xff]
        %v1827 = vld [vmem:[#allocation2 + $0xf8] sm:$0xff]
        %v1828 = vmax.f32 %v1283, %v1284
        %1829 = vmax.xlane.f32.xlu0 %v1828
        %v1830 = vpop.xlane.xlu0 %1829
        %v1831 = vmax.f32 %v1285, %v1286
        %1832 = vmax.xlane.f32.xlu0 %v1831
        %v1833 = vpop.xlane.xlu0 %1832
        %v1834 = vmax.f32 %v1287, %v1288
        %1835 = vmax.xlane.f32.xlu0 %v1834
        %v1836 = vpop.xlane.xlu0 %1835
        %v1837 = vmax.f32 %v1289, %v1290
        %1838 = vmax.xlane.f32.xlu0 %v1837
        %v1839 = vpop.xlane.xlu0 %1838
        %v1840 = vmax.f32 %v1291, %v1292
        %1841 = vmax.xlane.f32.xlu0 %v1840
        %v1842 = vpop.xlane.xlu0 %1841
        %v1843 = vmax.f32 %v1293, %v1294
        %1844 = vmax.xlane.f32.xlu0 %v1843
        %v1845 = vpop.xlane.xlu0 %1844
        %v1846 = vmax.f32 %v1295, %v1296
        %1847 = vmax.xlane.f32.xlu0 %v1846
        %v1848 = vpop.xlane.xlu0 %1847
        %v1849 = vmax.f32 %v1297, %v1298
        %1850 = vmax.xlane.f32.xlu0 %v1849
        %v1851 = vpop.xlane.xlu0 %1850
        %v1852 = vmax.f32 %v1299, %v1300
        %1853 = vmax.xlane.f32.xlu0 %v1852
        %v1854 = vpop.xlane.xlu0 %1853
        %v1855 = vmax.f32 %v1301, %v1302
        %1856 = vmax.xlane.f32.xlu0 %v1855
        %v1857 = vpop.xlane.xlu0 %1856
        %v1858 = vmax.f32 %v1303, %v1304
        %1859 = vmax.xlane.f32.xlu0 %v1858
        %v1860 = vpop.xlane.xlu0 %1859
        %v1861 = vmax.f32 %v1305, %v1306
        %1862 = vmax.xlane.f32.xlu0 %v1861
        %v1863 = vpop.xlane.xlu0 %1862
        %v1864 = vmax.f32 %v1307, %v1308
        %1865 = vmax.xlane.f32.xlu0 %v1864
        %v1866 = vpop.xlane.xlu0 %1865
        %v1867 = vmax.f32 %v1309, %v1310
        %1868 = vmax.xlane.f32.xlu0 %v1867
        %v1869 = vpop.xlane.xlu0 %1868
        %v1870 = vmax.f32 %v1311, %v1312
        %1871 = vmax.xlane.f32.xlu0 %v1870
        %v1872 = vpop.xlane.xlu0 %1871
        %v1873 = vmax.f32 %v1313, %v1314
        %1874 = vmax.xlane.f32.xlu0 %v1873
        %v1875 = vpop.xlane.xlu0 %1874
        %v1876 = vmax.f32 %v1315, %v1316
        %1877 = vmax.xlane.f32.xlu0 %v1876
        %v1878 = vpop.xlane.xlu0 %1877
        %v1879 = vmax.f32 %v1317, %v1318
        %1880 = vmax.xlane.f32.xlu0 %v1879
        %v1881 = vpop.xlane.xlu0 %1880
        %v1882 = vmax.f32 %v1319, %v1320
        %1883 = vmax.xlane.f32.xlu0 %v1882
        %v1884 = vpop.xlane.xlu0 %1883
        %v1885 = vmax.f32 %v1321, %v1322
        %1886 = vmax.xlane.f32.xlu0 %v1885
        %v1887 = vpop.xlane.xlu0 %1886
        %v1888 = vmax.f32 %v1323, %v1324
        %1889 = vmax.xlane.f32.xlu0 %v1888
        %v1890 = vpop.xlane.xlu0 %1889
        %v1891 = vmax.f32 %v1325, %v1326
        %1892 = vmax.xlane.f32.xlu0 %v1891
        %v1893 = vpop.xlane.xlu0 %1892
        %v1894 = vmax.f32 %v1327, %v1328
        %1895 = vmax.xlane.f32.xlu0 %v1894
        %v1896 = vpop.xlane.xlu0 %1895
        %v1897 = vmax.f32 %v1329, %v1330
        %1898 = vmax.xlane.f32.xlu0 %v1897
        %v1899 = vpop.xlane.xlu0 %1898
        %v1900 = vmax.f32 %v1331, %v1332
        %1901 = vmax.xlane.f32.xlu0 %v1900
        %v1902 = vpop.xlane.xlu0 %1901
        %v1903 = vmax.f32 %v1333, %v1334
        %1904 = vmax.xlane.f32.xlu0 %v1903
        %v1905 = vpop.xlane.xlu0 %1904
        %v1906 = vmax.f32 %v1335, %v1336
        %1907 = vmax.xlane.f32.xlu0 %v1906
        %v1908 = vpop.xlane.xlu0 %1907
        %v1909 = vmax.f32 %v1337, %v1338
        %1910 = vmax.xlane.f32.xlu0 %v1909
        %v1911 = vpop.xlane.xlu0 %1910
        %v1912 = vmax.f32 %v1339, %v1340
        %1913 = vmax.xlane.f32.xlu0 %v1912
        %v1914 = vpop.xlane.xlu0 %1913
        %v1915 = vmax.f32 %v1341, %v1342
        %1916 = vmax.xlane.f32.xlu0 %v1915
        %v1917 = vpop.xlane.xlu0 %1916
        %v1918 = vmax.f32 %v1343, %v1344
        %1919 = vmax.xlane.f32.xlu0 %v1918
        %v1920 = vpop.xlane.xlu0 %1919
        %v1921 = vmax.f32 %v1345, %v1346
        %1922 = vmax.xlane.f32.xlu0 %v1921
        %v1923 = vpop.xlane.xlu0 %1922
        %v1924 = vmax.f32 %v1796, %v1830
        %v1925 = vmax.f32 %v1797, %v1833
        %v1926 = vmax.f32 %v1798, %v1836
        %v1927 = vmax.f32 %v1799, %v1839
        %v1928 = vmax.f32 %v1800, %v1842
        %v1929 = vmax.f32 %v1801, %v1845
        %v1930 = vmax.f32 %v1802, %v1848
        %v1931 = vmax.f32 %v1803, %v1851
        %v1932 = vmax.f32 %v1804, %v1854
        %v1933 = vmax.f32 %v1805, %v1857
        %v1934 = vmax.f32 %v1806, %v1860
        %v1935 = vmax.f32 %v1807, %v1863
        %v1936 = vmax.f32 %v1808, %v1866
        %v1937 = vmax.f32 %v1809, %v1869
        %v1938 = vmax.f32 %v1810, %v1872
        %v1939 = vmax.f32 %v1811, %v1875
        %v1940 = vmax.f32 %v1812, %v1878
        %v1941 = vmax.f32 %v1813, %v1881
        %v1942 = vmax.f32 %v1814, %v1884
        %v1943 = vmax.f32 %v1815, %v1887
        %v1944 = vmax.f32 %v1816, %v1890
        %v1945 = vmax.f32 %v1817, %v1893
        %v1946 = vmax.f32 %v1818, %v1896
        %v1947 = vmax.f32 %v1819, %v1899
        %v1948 = vmax.f32 %v1820, %v1902
        %v1949 = vmax.f32 %v1821, %v1905
        %v1950 = vmax.f32 %v1822, %v1908
        %v1951 = vmax.f32 %v1823, %v1911
        %v1952 = vmax.f32 %v1824, %v1914
        %v1953 = vmax.f32 %v1825, %v1917
        %v1954 = vmax.f32 %v1826, %v1920
        %v1955 = vmax.f32 %v1827, %v1923
        %v1956 = vsub.f32 %v1796, %v1924
        %v1957 = vsub.f32 %v1797, %v1925
        %v1958 = vsub.f32 %v1798, %v1926
        %v1959 = vsub.f32 %v1799, %v1927
        %v1960 = vsub.f32 %v1800, %v1928
        %v1961 = vsub.f32 %v1801, %v1929
        %v1962 = vsub.f32 %v1802, %v1930
        %v1963 = vsub.f32 %v1803, %v1931
        %v1964 = vsub.f32 %v1804, %v1932
        %v1965 = vsub.f32 %v1805, %v1933
        %v1966 = vsub.f32 %v1806, %v1934
        %v1967 = vsub.f32 %v1807, %v1935
        %v1968 = vsub.f32 %v1808, %v1936
        %v1969 = vsub.f32 %v1809, %v1937
        %v1970 = vsub.f32 %v1810, %v1938
        %v1971 = vsub.f32 %v1811, %v1939
        %v1972 = vsub.f32 %v1812, %v1940
        %v1973 = vsub.f32 %v1813, %v1941
        %v1974 = vsub.f32 %v1814, %v1942
        %v1975 = vsub.f32 %v1815, %v1943
        %v1976 = vsub.f32 %v1816, %v1944
        %v1977 = vsub.f32 %v1817, %v1945
        %v1978 = vsub.f32 %v1818, %v1946
        %v1979 = vsub.f32 %v1819, %v1947
        %v1980 = vsub.f32 %v1820, %v1948
        %v1981 = vsub.f32 %v1821, %v1949
        %v1982 = vsub.f32 %v1822, %v1950
        %v1983 = vsub.f32 %v1823, %v1951
        %v1984 = vsub.f32 %v1824, %v1952
        %v1985 = vsub.f32 %v1825, %v1953
        %v1986 = vsub.f32 %v1826, %v1954
        %v1987 = vsub.f32 %v1827, %v1955
        %v1988 = vmul.f32 %v1956, 1.442695
        %v1989 = vpow.pop %v1988
        %v1990 = vmul.f32 %v1957, 1.442695
        %v1991 = vpow.pop %v1990
        %v1992 = vmul.f32 %v1958, 1.442695
        %v1993 = vpow.pop %v1992
        %v1994 = vmul.f32 %v1959, 1.442695
        %v1995 = vpow.pop %v1994
        %v1996 = vmul.f32 %v1960, 1.442695
        %v1997 = vpow.pop %v1996
        %v1998 = vmul.f32 %v1961, 1.442695
        %v1999 = vpow.pop %v1998
        %v2000 = vmul.f32 %v1962, 1.442695
        %v2001 = vpow.pop %v2000
        %v2002 = vmul.f32 %v1963, 1.442695
        %v2003 = vpow.pop %v2002
        %v2004 = vmul.f32 %v1964, 1.442695
        %v2005 = vpow.pop %v2004
        %v2006 = vmul.f32 %v1965, 1.442695
        %v2007 = vpow.pop %v2006
        %v2008 = vmul.f32 %v1966, 1.442695
        %v2009 = vpow.pop %v2008
        %v2010 = vmul.f32 %v1967, 1.442695
        %v2011 = vpow.pop %v2010
        %v2012 = vmul.f32 %v1968, 1.442695
        %v2013 = vpow.pop %v2012
        %v2014 = vmul.f32 %v1969, 1.442695
        %v2015 = vpow.pop %v2014
        %v2016 = vmul.f32 %v1970, 1.442695
        %v2017 = vpow.pop %v2016
        %v2018 = vmul.f32 %v1971, 1.442695
        %v2019 = vpow.pop %v2018
        %v2020 = vmul.f32 %v1972, 1.442695
        %v2021 = vpow.pop %v2020
        %v2022 = vmul.f32 %v1973, 1.442695
        %v2023 = vpow.pop %v2022
        %v2024 = vmul.f32 %v1974, 1.442695
        %v2025 = vpow.pop %v2024
        %v2026 = vmul.f32 %v1975, 1.442695
        %v2027 = vpow.pop %v2026
        %v2028 = vmul.f32 %v1976, 1.442695
        %v2029 = vpow.pop %v2028
        %v2030 = vmul.f32 %v1977, 1.442695
        %v2031 = vpow.pop %v2030
        %v2032 = vmul.f32 %v1978, 1.442695
        %v2033 = vpow.pop %v2032
        %v2034 = vmul.f32 %v1979, 1.442695
        %v2035 = vpow.pop %v2034
        %v2036 = vmul.f32 %v1980, 1.442695
        %v2037 = vpow.pop %v2036
        %v2038 = vmul.f32 %v1981, 1.442695
        %v2039 = vpow.pop %v2038
        %v2040 = vmul.f32 %v1982, 1.442695
        %v2041 = vpow.pop %v2040
        %v2042 = vmul.f32 %v1983, 1.442695
        %v2043 = vpow.pop %v2042
        %v2044 = vmul.f32 %v1984, 1.442695
        %v2045 = vpow.pop %v2044
        %v2046 = vmul.f32 %v1985, 1.442695
        %v2047 = vpow.pop %v2046
        %v2048 = vmul.f32 %v1986, 1.442695
        %v2049 = vpow.pop %v2048
        %v2050 = vmul.f32 %v1987, 1.442695
        %v2051 = vpow.pop %v2050
        %v2052 = vld [vmem:[#allocation3] sm:$0xff]
        %v2053 = vld [vmem:[#allocation3 + $0x8] sm:$0xff]
        %v2054 = vld [vmem:[#allocation3 + $0x10] sm:$0xff]
        %v2055 = vld [vmem:[#allocation3 + $0x18] sm:$0xff]
        %v2056 = vld [vmem:[#allocation3 + $0x20] sm:$0xff]
        %v2057 = vld [vmem:[#allocation3 + $0x28] sm:$0xff]
        %v2058 = vld [vmem:[#allocation3 + $0x30] sm:$0xff]
        %v2059 = vld [vmem:[#allocation3 + $0x38] sm:$0xff]
        %v2060 = vld [vmem:[#allocation3 + $0x40] sm:$0xff]
        %v2061 = vld [vmem:[#allocation3 + $0x48] sm:$0xff]
        %v2062 = vld [vmem:[#allocation3 + $0x50] sm:$0xff]
        %v2063 = vld [vmem:[#allocation3 + $0x58] sm:$0xff]
        %v2064 = vld [vmem:[#allocation3 + $0x60] sm:$0xff]
        %v2065 = vld [vmem:[#allocation3 + $0x68] sm:$0xff]
        %v2066 = vld [vmem:[#allocation3 + $0x70] sm:$0xff]
        %v2067 = vld [vmem:[#allocation3 + $0x78] sm:$0xff]
        %v2068 = vld [vmem:[#allocation3 + $0x80] sm:$0xff]
        %v2069 = vld [vmem:[#allocation3 + $0x88] sm:$0xff]
        %v2070 = vld [vmem:[#allocation3 + $0x90] sm:$0xff]
        %v2071 = vld [vmem:[#allocation3 + $0x98] sm:$0xff]
        %v2072 = vld [vmem:[#allocation3 + $0xa0] sm:$0xff]
        %v2073 = vld [vmem:[#allocation3 + $0xa8] sm:$0xff]
        %v2074 = vld [vmem:[#allocation3 + $0xb0] sm:$0xff]
        %v2075 = vld [vmem:[#allocation3 + $0xb8] sm:$0xff]
        %v2076 = vld [vmem:[#allocation3 + $0xc0] sm:$0xff]
        %v2077 = vld [vmem:[#allocation3 + $0xc8] sm:$0xff]
        %v2078 = vld [vmem:[#allocation3 + $0xd0] sm:$0xff]
        %v2079 = vld [vmem:[#allocation3 + $0xd8] sm:$0xff]
        %v2080 = vld [vmem:[#allocation3 + $0xe0] sm:$0xff]
        %v2081 = vld [vmem:[#allocation3 + $0xe8] sm:$0xff]
        %v2082 = vld [vmem:[#allocation3 + $0xf0] sm:$0xff]
        %v2083 = vld [vmem:[#allocation3 + $0xf8] sm:$0xff]
        %v2084 = vmul.f32 %v1989, %v2052
        %v2085 = vmul.f32 %v1991, %v2053
        %v2086 = vmul.f32 %v1993, %v2054
        %v2087 = vmul.f32 %v1995, %v2055
        %v2088 = vmul.f32 %v1997, %v2056
        %v2089 = vmul.f32 %v1999, %v2057
        %v2090 = vmul.f32 %v2001, %v2058
        %v2091 = vmul.f32 %v2003, %v2059
        %v2092 = vmul.f32 %v2005, %v2060
        %v2093 = vmul.f32 %v2007, %v2061
        %v2094 = vmul.f32 %v2009, %v2062
        %v2095 = vmul.f32 %v2011, %v2063
        %v2096 = vmul.f32 %v2013, %v2064
        %v2097 = vmul.f32 %v2015, %v2065
        %v2098 = vmul.f32 %v2017, %v2066
        %v2099 = vmul.f32 %v2019, %v2067
        %v2100 = vmul.f32 %v2021, %v2068
        %v2101 = vmul.f32 %v2023, %v2069
        %v2102 = vmul.f32 %v2025, %v2070
        %v2103 = vmul.f32 %v2027, %v2071
        %v2104 = vmul.f32 %v2029, %v2072
        %v2105 = vmul.f32 %v2031, %v2073
        %v2106 = vmul.f32 %v2033, %v2074
        %v2107 = vmul.f32 %v2035, %v2075
        %v2108 = vmul.f32 %v2037, %v2076
        %v2109 = vmul.f32 %v2039, %v2077
        %v2110 = vmul.f32 %v2041, %v2078
        %v2111 = vmul.f32 %v2043, %v2079
        %v2112 = vmul.f32 %v2045, %v2080
        %v2113 = vmul.f32 %v2047, %v2081
        %v2114 = vmul.f32 %v2049, %v2082
        %v2115 = vmul.f32 %v2051, %v2083
        %2117 = vset.pattern.permute.xlu0 0
        %2118 = vperm.xlu0 %2117, %v1924
        %v2119 = vpop.permute.xlu0 %2118
        %2122 = vset.pattern.permute.xlu0 0
        %2123 = vperm.xlu0 %2122, %v1925
        %v2124 = vpop.permute.xlu0 %2123
        %2127 = vset.pattern.permute.xlu0 0
        %2128 = vperm.xlu0 %2127, %v1926
        %v2129 = vpop.permute.xlu0 %2128
        %2132 = vset.pattern.permute.xlu0 0
        %2133 = vperm.xlu0 %2132, %v1927
        %v2134 = vpop.permute.xlu0 %2133
        %2137 = vset.pattern.permute.xlu0 0
        %2138 = vperm.xlu0 %2137, %v1928
        %v2139 = vpop.permute.xlu0 %2138
        %2142 = vset.pattern.permute.xlu0 0
        %2143 = vperm.xlu0 %2142, %v1929
        %v2144 = vpop.permute.xlu0 %2143
        %2147 = vset.pattern.permute.xlu0 0
        %2148 = vperm.xlu0 %2147, %v1930
        %v2149 = vpop.permute.xlu0 %2148
        %2152 = vset.pattern.permute.xlu0 0
        %2153 = vperm.xlu0 %2152, %v1931
        %v2154 = vpop.permute.xlu0 %2153
        %2157 = vset.pattern.permute.xlu0 0
        %2158 = vperm.xlu0 %2157, %v1932
        %v2159 = vpop.permute.xlu0 %2158
        %2162 = vset.pattern.permute.xlu0 0
        %2163 = vperm.xlu0 %2162, %v1933
        %v2164 = vpop.permute.xlu0 %2163
        %2167 = vset.pattern.permute.xlu0 0
        %2168 = vperm.xlu0 %2167, %v1934
        %v2169 = vpop.permute.xlu0 %2168
        %2172 = vset.pattern.permute.xlu0 0
        %2173 = vperm.xlu0 %2172, %v1935
        %v2174 = vpop.permute.xlu0 %2173
        %2177 = vset.pattern.permute.xlu0 0
        %2178 = vperm.xlu0 %2177, %v1936
        %v2179 = vpop.permute.xlu0 %2178
        %2182 = vset.pattern.permute.xlu0 0
        %2183 = vperm.xlu0 %2182, %v1937
        %v2184 = vpop.permute.xlu0 %2183
        %2187 = vset.pattern.permute.xlu0 0
        %2188 = vperm.xlu0 %2187, %v1938
        %v2189 = vpop.permute.xlu0 %2188
        %2192 = vset.pattern.permute.xlu0 0
        %2193 = vperm.xlu0 %2192, %v1939
        %v2194 = vpop.permute.xlu0 %2193
        %2197 = vset.pattern.permute.xlu0 0
        %2198 = vperm.xlu0 %2197, %v1940
        %v2199 = vpop.permute.xlu0 %2198
        %2202 = vset.pattern.permute.xlu0 0
        %2203 = vperm.xlu0 %2202, %v1941
        %v2204 = vpop.permute.xlu0 %2203
        %2207 = vset.pattern.permute.xlu0 0
        %2208 = vperm.xlu0 %2207, %v1942
        %v2209 = vpop.permute.xlu0 %2208
        %2212 = vset.pattern.permute.xlu0 0
        %2213 = vperm.xlu0 %2212, %v1943
        %v2214 = vpop.permute.xlu0 %2213
        %2217 = vset.pattern.permute.xlu0 0
        %2218 = vperm.xlu0 %2217, %v1944
        %v2219 = vpop.permute.xlu0 %2218
        %2222 = vset.pattern.permute.xlu0 0
        %2223 = vperm.xlu0 %2222, %v1945
        %v2224 = vpop.permute.xlu0 %2223
        %2227 = vset.pattern.permute.xlu0 0
        %2228 = vperm.xlu0 %2227, %v1946
        %v2229 = vpop.permute.xlu0 %2228
        %2232 = vset.pattern.permute.xlu0 0
        %2233 = vperm.xlu0 %2232, %v1947
        %v2234 = vpop.permute.xlu0 %2233
        %2237 = vset.pattern.permute.xlu0 0
        %2238 = vperm.xlu0 %2237, %v1948
        %v2239 = vpop.permute.xlu0 %2238
        %2242 = vset.pattern.permute.xlu0 0
        %2243 = vperm.xlu0 %2242, %v1949
        %v2244 = vpop.permute.xlu0 %2243
        %2247 = vset.pattern.permute.xlu0 0
        %2248 = vperm.xlu0 %2247, %v1950
        %v2249 = vpop.permute.xlu0 %2248
        %2252 = vset.pattern.permute.xlu0 0
        %2253 = vperm.xlu0 %2252, %v1951
        %v2254 = vpop.permute.xlu0 %2253
        %2257 = vset.pattern.permute.xlu0 0
        %2258 = vperm.xlu0 %2257, %v1952
        %v2259 = vpop.permute.xlu0 %2258
        %2262 = vset.pattern.permute.xlu0 0
        %2263 = vperm.xlu0 %2262, %v1953
        %v2264 = vpop.permute.xlu0 %2263
        %2267 = vset.pattern.permute.xlu0 0
        %2268 = vperm.xlu0 %2267, %v1954
        %v2269 = vpop.permute.xlu0 %2268
        %2272 = vset.pattern.permute.xlu0 0
        %2273 = vperm.xlu0 %2272, %v1955
        %v2274 = vpop.permute.xlu0 %2273
        %v2276 = vsub.f32 %v1283, %v2119
        %v2277 = vsub.f32 %v1284, %v2119
        %v2278 = vsub.f32 %v1285, %v2124
        %v2279 = vsub.f32 %v1286, %v2124
        %v2280 = vsub.f32 %v1287, %v2129
        %v2281 = vsub.f32 %v1288, %v2129
        %v2282 = vsub.f32 %v1289, %v2134
        %v2283 = vsub.f32 %v1290, %v2134
        %v2284 = vsub.f32 %v1291, %v2139
        %v2285 = vsub.f32 %v1292, %v2139
        %v2286 = vsub.f32 %v1293, %v2144
        %v2287 = vsub.f32 %v1294, %v2144
        %v2288 = vsub.f32 %v1295, %v2149
        %v2289 = vsub.f32 %v1296, %v2149
        %v2290 = vsub.f32 %v1297, %v2154
        %v2291 = vsub.f32 %v1298, %v2154
        %v2292 = vsub.f32 %v1299, %v2159
        %v2293 = vsub.f32 %v1300, %v2159
        %v2294 = vsub.f32 %v1301, %v2164
        %v2295 = vsub.f32 %v1302, %v2164
        %v2296 = vsub.f32 %v1303, %v2169
        %v2297 = vsub.f32 %v1304, %v2169
        %v2298 = vsub.f32 %v1305, %v2174
        %v2299 = vsub.f32 %v1306, %v2174
        %v2300 = vsub.f32 %v1307, %v2179
        %v2301 = vsub.f32 %v1308, %v2179
        %v2302 = vsub.f32 %v1309, %v2184
        %v2303 = vsub.f32 %v1310, %v2184
        %v2304 = vsub.f32 %v1311, %v2189
        %v2305 = vsub.f32 %v1312, %v2189
        %v2306 = vsub.f32 %v1313, %v2194
        %v2307 = vsub.f32 %v1314, %v2194
        %v2308 = vsub.f32 %v1315, %v2199
        %v2309 = vsub.f32 %v1316, %v2199
        %v2310 = vsub.f32 %v1317, %v2204
        %v2311 = vsub.f32 %v1318, %v2204
        %v2312 = vsub.f32 %v1319, %v2209
        %v2313 = vsub.f32 %v1320, %v2209
        %v2314 = vsub.f32 %v1321, %v2214
        %v2315 = vsub.f32 %v1322, %v2214
        %v2316 = vsub.f32 %v1323, %v2219
        %v2317 = vsub.f32 %v1324, %v2219
        %v2318 = vsub.f32 %v1325, %v2224
        %v2319 = vsub.f32 %v1326, %v2224
        %v2320 = vsub.f32 %v1327, %v2229
        %v2321 = vsub.f32 %v1328, %v2229
        %v2322 = vsub.f32 %v1329, %v2234
        %v2323 = vsub.f32 %v1330, %v2234
        %v2324 = vsub.f32 %v1331, %v2239
        %v2325 = vsub.f32 %v1332, %v2239
        %v2326 = vsub.f32 %v1333, %v2244
        %v2327 = vsub.f32 %v1334, %v2244
        %v2328 = vsub.f32 %v1335, %v2249
        %v2329 = vsub.f32 %v1336, %v2249
        %v2330 = vsub.f32 %v1337, %v2254
        %v2331 = vsub.f32 %v1338, %v2254
        %v2332 = vsub.f32 %v1339, %v2259
        %v2333 = vsub.f32 %v1340, %v2259
        %v2334 = vsub.f32 %v1341, %v2264
        %v2335 = vsub.f32 %v1342, %v2264
        %v2336 = vsub.f32 %v1343, %v2269
        %v2337 = vsub.f32 %v1344, %v2269
        %v2338 = vsub.f32 %v1345, %v2274
        %v2339 = vsub.f32 %v1346, %v2274
        %v2340 = vmul.f32 %v2276, 1.442695
        %v2341 = vpow.pop %v2340
        %v2342 = vmul.f32 %v2277, 1.442695
        %v2343 = vpow.pop %v2342
        %v2344 = vmul.f32 %v2278, 1.442695
        %v2345 = vpow.pop %v2344
        %v2346 = vmul.f32 %v2279, 1.442695
        %v2347 = vpow.pop %v2346
        %v2348 = vmul.f32 %v2280, 1.442695
        %v2349 = vpow.pop %v2348
        %v2350 = vmul.f32 %v2281, 1.442695
        %v2351 = vpow.pop %v2350
        %v2352 = vmul.f32 %v2282, 1.442695
        %v2353 = vpow.pop %v2352
        %v2354 = vmul.f32 %v2283, 1.442695
        %v2355 = vpow.pop %v2354
        %v2356 = vmul.f32 %v2284, 1.442695
        %v2357 = vpow.pop %v2356
        %v2358 = vmul.f32 %v2285, 1.442695
        %v2359 = vpow.pop %v2358
        %v2360 = vmul.f32 %v2286, 1.442695
        %v2361 = vpow.pop %v2360
        %v2362 = vmul.f32 %v2287, 1.442695
        %v2363 = vpow.pop %v2362
        %v2364 = vmul.f32 %v2288, 1.442695
        %v2365 = vpow.pop %v2364
        %v2366 = vmul.f32 %v2289, 1.442695
        %v2367 = vpow.pop %v2366
        %v2368 = vmul.f32 %v2290, 1.442695
        %v2369 = vpow.pop %v2368
        %v2370 = vmul.f32 %v2291, 1.442695
        %v2371 = vpow.pop %v2370
        %v2372 = vmul.f32 %v2292, 1.442695
        %v2373 = vpow.pop %v2372
        %v2374 = vmul.f32 %v2293, 1.442695
        %v2375 = vpow.pop %v2374
        %v2376 = vmul.f32 %v2294, 1.442695
        %v2377 = vpow.pop %v2376
        %v2378 = vmul.f32 %v2295, 1.442695
        %v2379 = vpow.pop %v2378
        %v2380 = vmul.f32 %v2296, 1.442695
        %v2381 = vpow.pop %v2380
        %v2382 = vmul.f32 %v2297, 1.442695
        %v2383 = vpow.pop %v2382
        %v2384 = vmul.f32 %v2298, 1.442695
        %v2385 = vpow.pop %v2384
        %v2386 = vmul.f32 %v2299, 1.442695
        %v2387 = vpow.pop %v2386
        %v2388 = vmul.f32 %v2300, 1.442695
        %v2389 = vpow.pop %v2388
        %v2390 = vmul.f32 %v2301, 1.442695
        %v2391 = vpow.pop %v2390
        %v2392 = vmul.f32 %v2302, 1.442695
        %v2393 = vpow.pop %v2392
        %v2394 = vmul.f32 %v2303, 1.442695
        %v2395 = vpow.pop %v2394
        %v2396 = vmul.f32 %v2304, 1.442695
        %v2397 = vpow.pop %v2396
        %v2398 = vmul.f32 %v2305, 1.442695
        %v2399 = vpow.pop %v2398
        %v2400 = vmul.f32 %v2306, 1.442695
        %v2401 = vpow.pop %v2400
        %v2402 = vmul.f32 %v2307, 1.442695
        %v2403 = vpow.pop %v2402
        %v2404 = vmul.f32 %v2308, 1.442695
        %v2405 = vpow.pop %v2404
        %v2406 = vmul.f32 %v2309, 1.442695
        %v2407 = vpow.pop %v2406
        %v2408 = vmul.f32 %v2310, 1.442695
        %v2409 = vpow.pop %v2408
        %v2410 = vmul.f32 %v2311, 1.442695
        %v2411 = vpow.pop %v2410
        %v2412 = vmul.f32 %v2312, 1.442695
        %v2413 = vpow.pop %v2412
        %v2414 = vmul.f32 %v2313, 1.442695
        %v2415 = vpow.pop %v2414
        %v2416 = vmul.f32 %v2314, 1.442695
        %v2417 = vpow.pop %v2416
        %v2418 = vmul.f32 %v2315, 1.442695
        %v2419 = vpow.pop %v2418
        %v2420 = vmul.f32 %v2316, 1.442695
        %v2421 = vpow.pop %v2420
        %v2422 = vmul.f32 %v2317, 1.442695
        %v2423 = vpow.pop %v2422
        %v2424 = vmul.f32 %v2318, 1.442695
        %v2425 = vpow.pop %v2424
        %v2426 = vmul.f32 %v2319, 1.442695
        %v2427 = vpow.pop %v2426
        %v2428 = vmul.f32 %v2320, 1.442695
        %v2429 = vpow.pop %v2428
        %v2430 = vmul.f32 %v2321, 1.442695
        %v2431 = vpow.pop %v2430
        %v2432 = vmul.f32 %v2322, 1.442695
        %v2433 = vpow.pop %v2432
        %v2434 = vmul.f32 %v2323, 1.442695
        %v2435 = vpow.pop %v2434
        %v2436 = vmul.f32 %v2324, 1.442695
        %v2437 = vpow.pop %v2436
        %v2438 = vmul.f32 %v2325, 1.442695
        %v2439 = vpow.pop %v2438
        %v2440 = vmul.f32 %v2326, 1.442695
        %v2441 = vpow.pop %v2440
        %v2442 = vmul.f32 %v2327, 1.442695
        %v2443 = vpow.pop %v2442
        %v2444 = vmul.f32 %v2328, 1.442695
        %v2445 = vpow.pop %v2444
        %v2446 = vmul.f32 %v2329, 1.442695
        %v2447 = vpow.pop %v2446
        %v2448 = vmul.f32 %v2330, 1.442695
        %v2449 = vpow.pop %v2448
        %v2450 = vmul.f32 %v2331, 1.442695
        %v2451 = vpow.pop %v2450
        %v2452 = vmul.f32 %v2332, 1.442695
        %v2453 = vpow.pop %v2452
        %v2454 = vmul.f32 %v2333, 1.442695
        %v2455 = vpow.pop %v2454
        %v2456 = vmul.f32 %v2334, 1.442695
        %v2457 = vpow.pop %v2456
        %v2458 = vmul.f32 %v2335, 1.442695
        %v2459 = vpow.pop %v2458
        %v2460 = vmul.f32 %v2336, 1.442695
        %v2461 = vpow.pop %v2460
        %v2462 = vmul.f32 %v2337, 1.442695
        %v2463 = vpow.pop %v2462
        %v2464 = vmul.f32 %v2338, 1.442695
        %v2465 = vpow.pop %v2464
        %v2466 = vmul.f32 %v2339, 1.442695
        %v2467 = vpow.pop %v2466
        %v2468 = vadd.f32 %v2341, %v2343
        %2469 = vadd.xlane.f32.xlu0 %v2468
        %v2470 = vpop.xlane.xlu0 %2469
        %v2471 = vadd.f32 %v2345, %v2347
        %2472 = vadd.xlane.f32.xlu0 %v2471
        %v2473 = vpop.xlane.xlu0 %2472
        %v2474 = vadd.f32 %v2349, %v2351
        %2475 = vadd.xlane.f32.xlu0 %v2474
        %v2476 = vpop.xlane.xlu0 %2475
        %v2477 = vadd.f32 %v2353, %v2355
        %2478 = vadd.xlane.f32.xlu0 %v2477
        %v2479 = vpop.xlane.xlu0 %2478
        %v2480 = vadd.f32 %v2357, %v2359
        %2481 = vadd.xlane.f32.xlu0 %v2480
        %v2482 = vpop.xlane.xlu0 %2481
        %v2483 = vadd.f32 %v2361, %v2363
        %2484 = vadd.xlane.f32.xlu0 %v2483
        %v2485 = vpop.xlane.xlu0 %2484
        %v2486 = vadd.f32 %v2365, %v2367
        %2487 = vadd.xlane.f32.xlu0 %v2486
        %v2488 = vpop.xlane.xlu0 %2487
        %v2489 = vadd.f32 %v2369, %v2371
        %2490 = vadd.xlane.f32.xlu0 %v2489
        %v2491 = vpop.xlane.xlu0 %2490
        %v2492 = vadd.f32 %v2373, %v2375
        %2493 = vadd.xlane.f32.xlu0 %v2492
        %v2494 = vpop.xlane.xlu0 %2493
        %v2495 = vadd.f32 %v2377, %v2379
        %2496 = vadd.xlane.f32.xlu0 %v2495
        %v2497 = vpop.xlane.xlu0 %2496
        %v2498 = vadd.f32 %v2381, %v2383
        %2499 = vadd.xlane.f32.xlu0 %v2498
        %v2500 = vpop.xlane.xlu0 %2499
        %v2501 = vadd.f32 %v2385, %v2387
        %2502 = vadd.xlane.f32.xlu0 %v2501
        %v2503 = vpop.xlane.xlu0 %2502
        %v2504 = vadd.f32 %v2389, %v2391
        %2505 = vadd.xlane.f32.xlu0 %v2504
        %v2506 = vpop.xlane.xlu0 %2505
        %v2507 = vadd.f32 %v2393, %v2395
        %2508 = vadd.xlane.f32.xlu0 %v2507
        %v2509 = vpop.xlane.xlu0 %2508
        %v2510 = vadd.f32 %v2397, %v2399
        %2511 = vadd.xlane.f32.xlu0 %v2510
        %v2512 = vpop.xlane.xlu0 %2511
        %v2513 = vadd.f32 %v2401, %v2403
        %2514 = vadd.xlane.f32.xlu0 %v2513
        %v2515 = vpop.xlane.xlu0 %2514
        %v2516 = vadd.f32 %v2405, %v2407
        %2517 = vadd.xlane.f32.xlu0 %v2516
        %v2518 = vpop.xlane.xlu0 %2517
        %v2519 = vadd.f32 %v2409, %v2411
        %2520 = vadd.xlane.f32.xlu0 %v2519
        %v2521 = vpop.xlane.xlu0 %2520
        %v2522 = vadd.f32 %v2413, %v2415
        %2523 = vadd.xlane.f32.xlu0 %v2522
        %v2524 = vpop.xlane.xlu0 %2523
        %v2525 = vadd.f32 %v2417, %v2419
        %2526 = vadd.xlane.f32.xlu0 %v2525
        %v2527 = vpop.xlane.xlu0 %2526
        %v2528 = vadd.f32 %v2421, %v2423
        %2529 = vadd.xlane.f32.xlu0 %v2528
        %v2530 = vpop.xlane.xlu0 %2529
        %v2531 = vadd.f32 %v2425, %v2427
        %2532 = vadd.xlane.f32.xlu0 %v2531
        %v2533 = vpop.xlane.xlu0 %2532
        %v2534 = vadd.f32 %v2429, %v2431
        %2535 = vadd.xlane.f32.xlu0 %v2534
        %v2536 = vpop.xlane.xlu0 %2535
        %v2537 = vadd.f32 %v2433, %v2435
        %2538 = vadd.xlane.f32.xlu0 %v2537
        %v2539 = vpop.xlane.xlu0 %2538
        %v2540 = vadd.f32 %v2437, %v2439
        %2541 = vadd.xlane.f32.xlu0 %v2540
        %v2542 = vpop.xlane.xlu0 %2541
        %v2543 = vadd.f32 %v2441, %v2443
        %2544 = vadd.xlane.f32.xlu0 %v2543
        %v2545 = vpop.xlane.xlu0 %2544
        %v2546 = vadd.f32 %v2445, %v2447
        %2547 = vadd.xlane.f32.xlu0 %v2546
        %v2548 = vpop.xlane.xlu0 %2547
        %v2549 = vadd.f32 %v2449, %v2451
        %2550 = vadd.xlane.f32.xlu0 %v2549
        %v2551 = vpop.xlane.xlu0 %2550
        %v2552 = vadd.f32 %v2453, %v2455
        %2553 = vadd.xlane.f32.xlu0 %v2552
        %v2554 = vpop.xlane.xlu0 %2553
        %v2555 = vadd.f32 %v2457, %v2459
        %2556 = vadd.xlane.f32.xlu0 %v2555
        %v2557 = vpop.xlane.xlu0 %2556
        %v2558 = vadd.f32 %v2461, %v2463
        %2559 = vadd.xlane.f32.xlu0 %v2558
        %v2560 = vpop.xlane.xlu0 %2559
        %v2561 = vadd.f32 %v2465, %v2467
        %2562 = vadd.xlane.f32.xlu0 %v2561
        %v2563 = vpop.xlane.xlu0 %2562
        %v2564 = vadd.f32 %v2084, %v2470
        %v2565 = vadd.f32 %v2085, %v2473
        %v2566 = vadd.f32 %v2086, %v2476
        %v2567 = vadd.f32 %v2087, %v2479
        %v2568 = vadd.f32 %v2088, %v2482
        %v2569 = vadd.f32 %v2089, %v2485
        %v2570 = vadd.f32 %v2090, %v2488
        %v2571 = vadd.f32 %v2091, %v2491
        %v2572 = vadd.f32 %v2092, %v2494
        %v2573 = vadd.f32 %v2093, %v2497
        %v2574 = vadd.f32 %v2094, %v2500
        %v2575 = vadd.f32 %v2095, %v2503
        %v2576 = vadd.f32 %v2096, %v2506
        %v2577 = vadd.f32 %v2097, %v2509
        %v2578 = vadd.f32 %v2098, %v2512
        %v2579 = vadd.f32 %v2099, %v2515
        %v2580 = vadd.f32 %v2100, %v2518
        %v2581 = vadd.f32 %v2101, %v2521
        %v2582 = vadd.f32 %v2102, %v2524
        %v2583 = vadd.f32 %v2103, %v2527
        %v2584 = vadd.f32 %v2104, %v2530
        %v2585 = vadd.f32 %v2105, %v2533
        %v2586 = vadd.f32 %v2106, %v2536
        %v2587 = vadd.f32 %v2107, %v2539
        %v2588 = vadd.f32 %v2108, %v2542
        %v2589 = vadd.f32 %v2109, %v2545
        %v2590 = vadd.f32 %v2110, %v2548
        %v2591 = vadd.f32 %v2111, %v2551
        %v2592 = vadd.f32 %v2112, %v2554
        %v2593 = vadd.f32 %v2113, %v2557
        %v2594 = vadd.f32 %v2114, %v2560
        %v2595 = vadd.f32 %v2115, %v2563
        %2596 = vst.msk [vmem:[#allocation3] sm:$0xff] %vm1507, %v2564
        %2597 = vst.msk [vmem:[#allocation3 + $0x8] sm:$0xff] %vm1507, %v2565
        %2598 = vst.msk [vmem:[#allocation3 + $0x10] sm:$0xff] %vm1507, %v2566
        %2599 = vst.msk [vmem:[#allocation3 + $0x18] sm:$0xff] %vm1507, %v2567
        %2600 = vst.msk [vmem:[#allocation3 + $0x20] sm:$0xff] %vm1507, %v2568
        %2601 = vst.msk [vmem:[#allocation3 + $0x28] sm:$0xff] %vm1507, %v2569
        %2602 = vst.msk [vmem:[#allocation3 + $0x30] sm:$0xff] %vm1507, %v2570
        %2603 = vst.msk [vmem:[#allocation3 + $0x38] sm:$0xff] %vm1507, %v2571
        %2604 = vst.msk [vmem:[#allocation3 + $0x40] sm:$0xff] %vm1507, %v2572
        %2605 = vst.msk [vmem:[#allocation3 + $0x48] sm:$0xff] %vm1507, %v2573
        %2606 = vst.msk [vmem:[#allocation3 + $0x50] sm:$0xff] %vm1507, %v2574
        %2607 = vst.msk [vmem:[#allocation3 + $0x58] sm:$0xff] %vm1507, %v2575
        %2608 = vst.msk [vmem:[#allocation3 + $0x60] sm:$0xff] %vm1507, %v2576
        %2609 = vst.msk [vmem:[#allocation3 + $0x68] sm:$0xff] %vm1507, %v2577
        %2610 = vst.msk [vmem:[#allocation3 + $0x70] sm:$0xff] %vm1507, %v2578
        %2611 = vst.msk [vmem:[#allocation3 + $0x78] sm:$0xff] %vm1507, %v2579
        %2612 = vst.msk [vmem:[#allocation3 + $0x80] sm:$0xff] %vm1507, %v2580
        %2613 = vst.msk [vmem:[#allocation3 + $0x88] sm:$0xff] %vm1507, %v2581
        %2614 = vst.msk [vmem:[#allocation3 + $0x90] sm:$0xff] %vm1507, %v2582
        %2615 = vst.msk [vmem:[#allocation3 + $0x98] sm:$0xff] %vm1507, %v2583
        %2616 = vst.msk [vmem:[#allocation3 + $0xa0] sm:$0xff] %vm1507, %v2584
        %2617 = vst.msk [vmem:[#allocation3 + $0xa8] sm:$0xff] %vm1507, %v2585
        %2618 = vst.msk [vmem:[#allocation3 + $0xb0] sm:$0xff] %vm1507, %v2586
        %2619 = vst.msk [vmem:[#allocation3 + $0xb8] sm:$0xff] %vm1507, %v2587
        %2620 = vst.msk [vmem:[#allocation3 + $0xc0] sm:$0xff] %vm1507, %v2588
        %2621 = vst.msk [vmem:[#allocation3 + $0xc8] sm:$0xff] %vm1507, %v2589
        %2622 = vst.msk [vmem:[#allocation3 + $0xd0] sm:$0xff] %vm1507, %v2590
        %2623 = vst.msk [vmem:[#allocation3 + $0xd8] sm:$0xff] %vm1507, %v2591
        %2624 = vst.msk [vmem:[#allocation3 + $0xe0] sm:$0xff] %vm1507, %v2592
        %2625 = vst.msk [vmem:[#allocation3 + $0xe8] sm:$0xff] %vm1507, %v2593
        %2626 = vst.msk [vmem:[#allocation3 + $0xf0] sm:$0xff] %vm1507, %v2594
        %2627 = vst.msk [vmem:[#allocation3 + $0xf8] sm:$0xff] %vm1507, %v2595
        %2628 = vst.msk [vmem:[#allocation2] sm:$0xff] %vm1507, %v1924
        %2629 = vst.msk [vmem:[#allocation2 + $0x8] sm:$0xff] %vm1507, %v1925
        %2630 = vst.msk [vmem:[#allocation2 + $0x10] sm:$0xff] %vm1507, %v1926
        %2631 = vst.msk [vmem:[#allocation2 + $0x18] sm:$0xff] %vm1507, %v1927
        %2632 = vst.msk [vmem:[#allocation2 + $0x20] sm:$0xff] %vm1507, %v1928
        %2633 = vst.msk [vmem:[#allocation2 + $0x28] sm:$0xff] %vm1507, %v1929
        %2634 = vst.msk [vmem:[#allocation2 + $0x30] sm:$0xff] %vm1507, %v1930
        %2635 = vst.msk [vmem:[#allocation2 + $0x38] sm:$0xff] %vm1507, %v1931
        %2636 = vst.msk [vmem:[#allocation2 + $0x40] sm:$0xff] %vm1507, %v1932
        %2637 = vst.msk [vmem:[#allocation2 + $0x48] sm:$0xff] %vm1507, %v1933
        %2638 = vst.msk [vmem:[#allocation2 + $0x50] sm:$0xff] %vm1507, %v1934
        %2639 = vst.msk [vmem:[#allocation2 + $0x58] sm:$0xff] %vm1507, %v1935
        %2640 = vst.msk [vmem:[#allocation2 + $0x60] sm:$0xff] %vm1507, %v1936
        %2641 = vst.msk [vmem:[#allocation2 + $0x68] sm:$0xff] %vm1507, %v1937
        %2642 = vst.msk [vmem:[#allocation2 + $0x70] sm:$0xff] %vm1507, %v1938
        %2643 = vst.msk [vmem:[#allocation2 + $0x78] sm:$0xff] %vm1507, %v1939
        %2644 = vst.msk [vmem:[#allocation2 + $0x80] sm:$0xff] %vm1507, %v1940
        %2645 = vst.msk [vmem:[#allocation2 + $0x88] sm:$0xff] %vm1507, %v1941
        %2646 = vst.msk [vmem:[#allocation2 + $0x90] sm:$0xff] %vm1507, %v1942
        %2647 = vst.msk [vmem:[#allocation2 + $0x98] sm:$0xff] %vm1507, %v1943
        %2648 = vst.msk [vmem:[#allocation2 + $0xa0] sm:$0xff] %vm1507, %v1944
        %2649 = vst.msk [vmem:[#allocation2 + $0xa8] sm:$0xff] %vm1507, %v1945
        %2650 = vst.msk [vmem:[#allocation2 + $0xb0] sm:$0xff] %vm1507, %v1946
        %2651 = vst.msk [vmem:[#allocation2 + $0xb8] sm:$0xff] %vm1507, %v1947
        %2652 = vst.msk [vmem:[#allocation2 + $0xc0] sm:$0xff] %vm1507, %v1948
        %2653 = vst.msk [vmem:[#allocation2 + $0xc8] sm:$0xff] %vm1507, %v1949
        %2654 = vst.msk [vmem:[#allocation2 + $0xd0] sm:$0xff] %vm1507, %v1950
        %2655 = vst.msk [vmem:[#allocation2 + $0xd8] sm:$0xff] %vm1507, %v1951
        %2656 = vst.msk [vmem:[#allocation2 + $0xe0] sm:$0xff] %vm1507, %v1952
        %2657 = vst.msk [vmem:[#allocation2 + $0xe8] sm:$0xff] %vm1507, %v1953
        %2658 = vst.msk [vmem:[#allocation2 + $0xf0] sm:$0xff] %vm1507, %v1954
        %2659 = vst.msk [vmem:[#allocation2 + $0xf8] sm:$0xff] %vm1507, %v1955
        // Predicated region
        $region49: #{tpu_custom_call.1} parent=35 // pred_check
          %p2660 = pneg %p355
        $region50: #{tpu_custom_call.1} parent=35 // pred_check_branch
          %2662 = sbr.rel (%p2660) target = $region52
        $region51: #{tpu_custom_call.1} parent=35 // pred_region
          %v2663 = vld [vmem:[#allocation2] sm:$0xff]
          %v2664 = vld [vmem:[#allocation2 + $0x8] sm:$0xff]
          %v2665 = vld [vmem:[#allocation2 + $0x10] sm:$0xff]
          %v2666 = vld [vmem:[#allocation2 + $0x18] sm:$0xff]
          %v2667 = vld [vmem:[#allocation2 + $0x20] sm:$0xff]
          %v2668 = vld [vmem:[#allocation2 + $0x28] sm:$0xff]
          %v2669 = vld [vmem:[#allocation2 + $0x30] sm:$0xff]
          %v2670 = vld [vmem:[#allocation2 + $0x38] sm:$0xff]
          %v2671 = vld [vmem:[#allocation2 + $0x40] sm:$0xff]
          %v2672 = vld [vmem:[#allocation2 + $0x48] sm:$0xff]
          %v2673 = vld [vmem:[#allocation2 + $0x50] sm:$0xff]
          %v2674 = vld [vmem:[#allocation2 + $0x58] sm:$0xff]
          %v2675 = vld [vmem:[#allocation2 + $0x60] sm:$0xff]
          %v2676 = vld [vmem:[#allocation2 + $0x68] sm:$0xff]
          %v2677 = vld [vmem:[#allocation2 + $0x70] sm:$0xff]
          %v2678 = vld [vmem:[#allocation2 + $0x78] sm:$0xff]
          %v2679 = vld [vmem:[#allocation2 + $0x80] sm:$0xff]
          %v2680 = vld [vmem:[#allocation2 + $0x88] sm:$0xff]
          %v2681 = vld [vmem:[#allocation2 + $0x90] sm:$0xff]
          %v2682 = vld [vmem:[#allocation2 + $0x98] sm:$0xff]
          %v2683 = vld [vmem:[#allocation2 + $0xa0] sm:$0xff]
          %v2684 = vld [vmem:[#allocation2 + $0xa8] sm:$0xff]
          %v2685 = vld [vmem:[#allocation2 + $0xb0] sm:$0xff]
          %v2686 = vld [vmem:[#allocation2 + $0xb8] sm:$0xff]
          %v2687 = vld [vmem:[#allocation2 + $0xc0] sm:$0xff]
          %v2688 = vld [vmem:[#allocation2 + $0xc8] sm:$0xff]
          %v2689 = vld [vmem:[#allocation2 + $0xd0] sm:$0xff]
          %v2690 = vld [vmem:[#allocation2 + $0xd8] sm:$0xff]
          %v2691 = vld [vmem:[#allocation2 + $0xe0] sm:$0xff]
          %v2692 = vld [vmem:[#allocation2 + $0xe8] sm:$0xff]
          %v2693 = vld [vmem:[#allocation2 + $0xf0] sm:$0xff]
          %v2694 = vld [vmem:[#allocation2 + $0xf8] sm:$0xff]
          %v2695 = vld [vmem:[#allocation3] sm:$0xff]
          %v2696 = vld [vmem:[#allocation3 + $0x8] sm:$0xff]
          %v2697 = vld [vmem:[#allocation3 + $0x10] sm:$0xff]
          %v2698 = vld [vmem:[#allocation3 + $0x18] sm:$0xff]
          %v2699 = vld [vmem:[#allocation3 + $0x20] sm:$0xff]
          %v2700 = vld [vmem:[#allocation3 + $0x28] sm:$0xff]
          %v2701 = vld [vmem:[#allocation3 + $0x30] sm:$0xff]
          %v2702 = vld [vmem:[#allocation3 + $0x38] sm:$0xff]
          %v2703 = vld [vmem:[#allocation3 + $0x40] sm:$0xff]
          %v2704 = vld [vmem:[#allocation3 + $0x48] sm:$0xff]
          %v2705 = vld [vmem:[#allocation3 + $0x50] sm:$0xff]
          %v2706 = vld [vmem:[#allocation3 + $0x58] sm:$0xff]
          %v2707 = vld [vmem:[#allocation3 + $0x60] sm:$0xff]
          %v2708 = vld [vmem:[#allocation3 + $0x68] sm:$0xff]
          %v2709 = vld [vmem:[#allocation3 + $0x70] sm:$0xff]
          %v2710 = vld [vmem:[#allocation3 + $0x78] sm:$0xff]
          %v2711 = vld [vmem:[#allocation3 + $0x80] sm:$0xff]
          %v2712 = vld [vmem:[#allocation3 + $0x88] sm:$0xff]
          %v2713 = vld [vmem:[#allocation3 + $0x90] sm:$0xff]
          %v2714 = vld [vmem:[#allocation3 + $0x98] sm:$0xff]
          %v2715 = vld [vmem:[#allocation3 + $0xa0] sm:$0xff]
          %v2716 = vld [vmem:[#allocation3 + $0xa8] sm:$0xff]
          %v2717 = vld [vmem:[#allocation3 + $0xb0] sm:$0xff]
          %v2718 = vld [vmem:[#allocation3 + $0xb8] sm:$0xff]
          %v2719 = vld [vmem:[#allocation3 + $0xc0] sm:$0xff]
          %v2720 = vld [vmem:[#allocation3 + $0xc8] sm:$0xff]
          %v2721 = vld [vmem:[#allocation3 + $0xd0] sm:$0xff]
          %v2722 = vld [vmem:[#allocation3 + $0xd8] sm:$0xff]
          %v2723 = vld [vmem:[#allocation3 + $0xe0] sm:$0xff]
          %v2724 = vld [vmem:[#allocation3 + $0xe8] sm:$0xff]
          %v2725 = vld [vmem:[#allocation3 + $0xf0] sm:$0xff]
          %v2726 = vld [vmem:[#allocation3 + $0xf8] sm:$0xff]
          %v2727 = vlog2.pop %v2695
          %v2728 = vmul.f32 %v2727, 0.6931472
          %v2729 = vlog2.pop %v2696
          %v2730 = vmul.f32 %v2729, 0.6931472
          %v2731 = vlog2.pop %v2697
          %v2732 = vmul.f32 %v2731, 0.6931472
          %v2733 = vlog2.pop %v2698
          %v2734 = vmul.f32 %v2733, 0.6931472
          %v2735 = vlog2.pop %v2699
          %v2736 = vmul.f32 %v2735, 0.6931472
          %v2737 = vlog2.pop %v2700
          %v2738 = vmul.f32 %v2737, 0.6931472
          %v2739 = vlog2.pop %v2701
          %v2740 = vmul.f32 %v2739, 0.6931472
          %v2741 = vlog2.pop %v2702
          %v2742 = vmul.f32 %v2741, 0.6931472
          %v2743 = vlog2.pop %v2703
          %v2744 = vmul.f32 %v2743, 0.6931472
          %v2745 = vlog2.pop %v2704
          %v2746 = vmul.f32 %v2745, 0.6931472
          %v2747 = vlog2.pop %v2705
          %v2748 = vmul.f32 %v2747, 0.6931472
          %v2749 = vlog2.pop %v2706
          %v2750 = vmul.f32 %v2749, 0.6931472
          %v2751 = vlog2.pop %v2707
          %v2752 = vmul.f32 %v2751, 0.6931472
          %v2753 = vlog2.pop %v2708
          %v2754 = vmul.f32 %v2753, 0.6931472
          %v2755 = vlog2.pop %v2709
          %v2756 = vmul.f32 %v2755, 0.6931472
          %v2757 = vlog2.pop %v2710
          %v2758 = vmul.f32 %v2757, 0.6931472
          %v2759 = vlog2.pop %v2711
          %v2760 = vmul.f32 %v2759, 0.6931472
          %v2761 = vlog2.pop %v2712
          %v2762 = vmul.f32 %v2761, 0.6931472
          %v2763 = vlog2.pop %v2713
          %v2764 = vmul.f32 %v2763, 0.6931472
          %v2765 = vlog2.pop %v2714
          %v2766 = vmul.f32 %v2765, 0.6931472
          %v2767 = vlog2.pop %v2715
          %v2768 = vmul.f32 %v2767, 0.6931472
          %v2769 = vlog2.pop %v2716
          %v2770 = vmul.f32 %v2769, 0.6931472
          %v2771 = vlog2.pop %v2717
          %v2772 = vmul.f32 %v2771, 0.6931472
          %v2773 = vlog2.pop %v2718
          %v2774 = vmul.f32 %v2773, 0.6931472
          %v2775 = vlog2.pop %v2719
          %v2776 = vmul.f32 %v2775, 0.6931472
          %v2777 = vlog2.pop %v2720
          %v2778 = vmul.f32 %v2777, 0.6931472
          %v2779 = vlog2.pop %v2721
          %v2780 = vmul.f32 %v2779, 0.6931472
          %v2781 = vlog2.pop %v2722
          %v2782 = vmul.f32 %v2781, 0.6931472
          %v2783 = vlog2.pop %v2723
          %v2784 = vmul.f32 %v2783, 0.6931472
          %v2785 = vlog2.pop %v2724
          %v2786 = vmul.f32 %v2785, 0.6931472
          %v2787 = vlog2.pop %v2725
          %v2788 = vmul.f32 %v2787, 0.6931472
          %v2789 = vlog2.pop %v2726
          %v2790 = vmul.f32 %v2789, 0.6931472
          %v2791 = vadd.f32 %v2663, %v2728
          %v2792 = vadd.f32 %v2664, %v2730
          %v2793 = vadd.f32 %v2665, %v2732
          %v2794 = vadd.f32 %v2666, %v2734
          %v2795 = vadd.f32 %v2667, %v2736
          %v2796 = vadd.f32 %v2668, %v2738
          %v2797 = vadd.f32 %v2669, %v2740
          %v2798 = vadd.f32 %v2670, %v2742
          %v2799 = vadd.f32 %v2671, %v2744
          %v2800 = vadd.f32 %v2672, %v2746
          %v2801 = vadd.f32 %v2673, %v2748
          %v2802 = vadd.f32 %v2674, %v2750
          %v2803 = vadd.f32 %v2675, %v2752
          %v2804 = vadd.f32 %v2676, %v2754
          %v2805 = vadd.f32 %v2677, %v2756
          %v2806 = vadd.f32 %v2678, %v2758
          %v2807 = vadd.f32 %v2679, %v2760
          %v2808 = vadd.f32 %v2680, %v2762
          %v2809 = vadd.f32 %v2681, %v2764
          %v2810 = vadd.f32 %v2682, %v2766
          %v2811 = vadd.f32 %v2683, %v2768
          %v2812 = vadd.f32 %v2684, %v2770
          %v2813 = vadd.f32 %v2685, %v2772
          %v2814 = vadd.f32 %v2686, %v2774
          %v2815 = vadd.f32 %v2687, %v2776
          %v2816 = vadd.f32 %v2688, %v2778
          %v2817 = vadd.f32 %v2689, %v2780
          %v2818 = vadd.f32 %v2690, %v2782
          %v2819 = vadd.f32 %v2691, %v2784
          %v2820 = vadd.f32 %v2692, %v2786
          %v2821 = vadd.f32 %v2693, %v2788
          %v2822 = vadd.f32 %v2694, %v2790
          %v2823 = vld [vmem:[#allocation4] sm:$0xff]
          %v2824 = vld [vmem:[#allocation4 + $0x8] sm:$0xff]
          %v2825 = vld [vmem:[#allocation4 + $0x10] sm:$0xff]
          %v2826 = vld [vmem:[#allocation4 + $0x18] sm:$0xff]
          %v2827 = vld [vmem:[#allocation4 + $0x20] sm:$0xff]
          %v2828 = vld [vmem:[#allocation4 + $0x28] sm:$0xff]
          %v2829 = vld [vmem:[#allocation4 + $0x30] sm:$0xff]
          %v2830 = vld [vmem:[#allocation4 + $0x38] sm:$0xff]
          %v2831 = vld [vmem:[#allocation4 + $0x40] sm:$0xff]
          %v2832 = vld [vmem:[#allocation4 + $0x48] sm:$0xff]
          %v2833 = vld [vmem:[#allocation4 + $0x50] sm:$0xff]
          %v2834 = vld [vmem:[#allocation4 + $0x58] sm:$0xff]
          %v2835 = vld [vmem:[#allocation4 + $0x60] sm:$0xff]
          %v2836 = vld [vmem:[#allocation4 + $0x68] sm:$0xff]
          %v2837 = vld [vmem:[#allocation4 + $0x70] sm:$0xff]
          %v2838 = vld [vmem:[#allocation4 + $0x78] sm:$0xff]
          %v2839 = vld [vmem:[#allocation4 + $0x80] sm:$0xff]
          %v2840 = vld [vmem:[#allocation4 + $0x88] sm:$0xff]
          %v2841 = vld [vmem:[#allocation4 + $0x90] sm:$0xff]
          %v2842 = vld [vmem:[#allocation4 + $0x98] sm:$0xff]
          %v2843 = vld [vmem:[#allocation4 + $0xa0] sm:$0xff]
          %v2844 = vld [vmem:[#allocation4 + $0xa8] sm:$0xff]
          %v2845 = vld [vmem:[#allocation4 + $0xb0] sm:$0xff]
          %v2846 = vld [vmem:[#allocation4 + $0xb8] sm:$0xff]
          %v2847 = vld [vmem:[#allocation4 + $0xc0] sm:$0xff]
          %v2848 = vld [vmem:[#allocation4 + $0xc8] sm:$0xff]
          %v2849 = vld [vmem:[#allocation4 + $0xd0] sm:$0xff]
          %v2850 = vld [vmem:[#allocation4 + $0xd8] sm:$0xff]
          %v2851 = vld [vmem:[#allocation4 + $0xe0] sm:$0xff]
          %v2852 = vld [vmem:[#allocation4 + $0xe8] sm:$0xff]
          %v2853 = vld [vmem:[#allocation4 + $0xf0] sm:$0xff]
          %v2854 = vld [vmem:[#allocation4 + $0xf8] sm:$0xff]
          %v2855 = vmul.f32 %v2823, %v2791
          %v2856 = vmul.f32 %v2824, %v2792
          %v2857 = vmul.f32 %v2825, %v2793
          %v2858 = vmul.f32 %v2826, %v2794
          %v2859 = vmul.f32 %v2827, %v2795
          %v2860 = vmul.f32 %v2828, %v2796
          %v2861 = vmul.f32 %v2829, %v2797
          %v2862 = vmul.f32 %v2830, %v2798
          %v2863 = vmul.f32 %v2831, %v2799
          %v2864 = vmul.f32 %v2832, %v2800
          %v2865 = vmul.f32 %v2833, %v2801
          %v2866 = vmul.f32 %v2834, %v2802
          %v2867 = vmul.f32 %v2835, %v2803
          %v2868 = vmul.f32 %v2836, %v2804
          %v2869 = vmul.f32 %v2837, %v2805
          %v2870 = vmul.f32 %v2838, %v2806
          %v2871 = vmul.f32 %v2839, %v2807
          %v2872 = vmul.f32 %v2840, %v2808
          %v2873 = vmul.f32 %v2841, %v2809
          %v2874 = vmul.f32 %v2842, %v2810
          %v2875 = vmul.f32 %v2843, %v2811
          %v2876 = vmul.f32 %v2844, %v2812
          %v2877 = vmul.f32 %v2845, %v2813
          %v2878 = vmul.f32 %v2846, %v2814
          %v2879 = vmul.f32 %v2847, %v2815
          %v2880 = vmul.f32 %v2848, %v2816
          %v2881 = vmul.f32 %v2849, %v2817
          %v2882 = vmul.f32 %v2850, %v2818
          %v2883 = vmul.f32 %v2851, %v2819
          %v2884 = vmul.f32 %v2852, %v2820
          %v2885 = vmul.f32 %v2853, %v2821
          %v2886 = vmul.f32 %v2854, %v2822
          %v2887 = vld [vmem:[#allocation5] sm:$0xff]
          %v2888 = vld [vmem:[#allocation5 + $0x8] sm:$0xff]
          %v2889 = vld [vmem:[#allocation5 + $0x10] sm:$0xff]
          %v2890 = vld [vmem:[#allocation5 + $0x18] sm:$0xff]
          %v2891 = vld [vmem:[#allocation5 + $0x20] sm:$0xff]
          %v2892 = vld [vmem:[#allocation5 + $0x28] sm:$0xff]
          %v2893 = vld [vmem:[#allocation5 + $0x30] sm:$0xff]
          %v2894 = vld [vmem:[#allocation5 + $0x38] sm:$0xff]
          %v2895 = vld [vmem:[#allocation5 + $0x40] sm:$0xff]
          %v2896 = vld [vmem:[#allocation5 + $0x48] sm:$0xff]
          %v2897 = vld [vmem:[#allocation5 + $0x50] sm:$0xff]
          %v2898 = vld [vmem:[#allocation5 + $0x58] sm:$0xff]
          %v2899 = vld [vmem:[#allocation5 + $0x60] sm:$0xff]
          %v2900 = vld [vmem:[#allocation5 + $0x68] sm:$0xff]
          %v2901 = vld [vmem:[#allocation5 + $0x70] sm:$0xff]
          %v2902 = vld [vmem:[#allocation5 + $0x78] sm:$0xff]
          %v2903 = vld [vmem:[#allocation5 + $0x80] sm:$0xff]
          %v2904 = vld [vmem:[#allocation5 + $0x88] sm:$0xff]
          %v2905 = vld [vmem:[#allocation5 + $0x90] sm:$0xff]
          %v2906 = vld [vmem:[#allocation5 + $0x98] sm:$0xff]
          %v2907 = vld [vmem:[#allocation5 + $0xa0] sm:$0xff]
          %v2908 = vld [vmem:[#allocation5 + $0xa8] sm:$0xff]
          %v2909 = vld [vmem:[#allocation5 + $0xb0] sm:$0xff]
          %v2910 = vld [vmem:[#allocation5 + $0xb8] sm:$0xff]
          %v2911 = vld [vmem:[#allocation5 + $0xc0] sm:$0xff]
          %v2912 = vld [vmem:[#allocation5 + $0xc8] sm:$0xff]
          %v2913 = vld [vmem:[#allocation5 + $0xd0] sm:$0xff]
          %v2914 = vld [vmem:[#allocation5 + $0xd8] sm:$0xff]
          %v2915 = vld [vmem:[#allocation5 + $0xe0] sm:$0xff]
          %v2916 = vld [vmem:[#allocation5 + $0xe8] sm:$0xff]
          %v2917 = vld [vmem:[#allocation5 + $0xf0] sm:$0xff]
          %v2918 = vld [vmem:[#allocation5 + $0xf8] sm:$0xff]
          %v2919 = vsub.f32 %v2855, %v2887
          %v2920 = vsub.f32 %v2856, %v2888
          %v2921 = vsub.f32 %v2857, %v2889
          %v2922 = vsub.f32 %v2858, %v2890
          %v2923 = vsub.f32 %v2859, %v2891
          %v2924 = vsub.f32 %v2860, %v2892
          %v2925 = vsub.f32 %v2861, %v2893
          %v2926 = vsub.f32 %v2862, %v2894
          %v2927 = vsub.f32 %v2863, %v2895
          %v2928 = vsub.f32 %v2864, %v2896
          %v2929 = vsub.f32 %v2865, %v2897
          %v2930 = vsub.f32 %v2866, %v2898
          %v2931 = vsub.f32 %v2867, %v2899
          %v2932 = vsub.f32 %v2868, %v2900
          %v2933 = vsub.f32 %v2869, %v2901
          %v2934 = vsub.f32 %v2870, %v2902
          %v2935 = vsub.f32 %v2871, %v2903
          %v2936 = vsub.f32 %v2872, %v2904
          %v2937 = vsub.f32 %v2873, %v2905
          %v2938 = vsub.f32 %v2874, %v2906
          %v2939 = vsub.f32 %v2875, %v2907
          %v2940 = vsub.f32 %v2876, %v2908
          %v2941 = vsub.f32 %v2877, %v2909
          %v2942 = vsub.f32 %v2878, %v2910
          %v2943 = vsub.f32 %v2879, %v2911
          %v2944 = vsub.f32 %v2880, %v2912
          %v2945 = vsub.f32 %v2881, %v2913
          %v2946 = vsub.f32 %v2882, %v2914
          %v2947 = vsub.f32 %v2883, %v2915
          %v2948 = vsub.f32 %v2884, %v2916
          %v2949 = vsub.f32 %v2885, %v2917
          %v2950 = vsub.f32 %v2886, %v2918
          %v2951 = vld [vmem:[%s334] sm:$0xff]
          %v2952 = vld [vmem:[%s334 + $0x8] sm:$0xff]
          %v2953 = vld [vmem:[%s334 + $0x10] sm:$0xff]
          %v2954 = vld [vmem:[%s334 + $0x18] sm:$0xff]
          %v2955 = vld [vmem:[%s334 + $0x20] sm:$0xff]
          %v2956 = vld [vmem:[%s334 + $0x28] sm:$0xff]
          %v2957 = vld [vmem:[%s334 + $0x30] sm:$0xff]
          %v2958 = vld [vmem:[%s334 + $0x38] sm:$0xff]
          %v2959 = vld [vmem:[%s334 + $0x40] sm:$0xff]
          %v2960 = vld [vmem:[%s334 + $0x48] sm:$0xff]
          %v2961 = vld [vmem:[%s334 + $0x50] sm:$0xff]
          %v2962 = vld [vmem:[%s334 + $0x58] sm:$0xff]
          %v2963 = vld [vmem:[%s334 + $0x60] sm:$0xff]
          %v2964 = vld [vmem:[%s334 + $0x68] sm:$0xff]
          %v2965 = vld [vmem:[%s334 + $0x70] sm:$0xff]
          %v2966 = vld [vmem:[%s334 + $0x78] sm:$0xff]
          %v2967 = vld [vmem:[%s334 + $0x80] sm:$0xff]
          %v2968 = vld [vmem:[%s334 + $0x88] sm:$0xff]
          %v2969 = vld [vmem:[%s334 + $0x90] sm:$0xff]
          %v2970 = vld [vmem:[%s334 + $0x98] sm:$0xff]
          %v2971 = vld [vmem:[%s334 + $0xa0] sm:$0xff]
          %v2972 = vld [vmem:[%s334 + $0xa8] sm:$0xff]
          %v2973 = vld [vmem:[%s334 + $0xb0] sm:$0xff]
          %v2974 = vld [vmem:[%s334 + $0xb8] sm:$0xff]
          %v2975 = vld [vmem:[%s334 + $0xc0] sm:$0xff]
          %v2976 = vld [vmem:[%s334 + $0xc8] sm:$0xff]
          %v2977 = vld [vmem:[%s334 + $0xd0] sm:$0xff]
          %v2978 = vld [vmem:[%s334 + $0xd8] sm:$0xff]
          %v2979 = vld [vmem:[%s334 + $0xe0] sm:$0xff]
          %v2980 = vld [vmem:[%s334 + $0xe8] sm:$0xff]
          %v2981 = vld [vmem:[%s334 + $0xf0] sm:$0xff]
          %v2982 = vld [vmem:[%s334 + $0xf8] sm:$0xff]
          %vm2983 = vcmp.ge.s32.totalorder %v2951, 0
          %vm2984 = vcmp.ge.s32.totalorder %v2952, 0
          %vm2985 = vcmp.ge.s32.totalorder %v2953, 0
          %vm2986 = vcmp.ge.s32.totalorder %v2954, 0
          %vm2987 = vcmp.ge.s32.totalorder %v2955, 0
          %vm2988 = vcmp.ge.s32.totalorder %v2956, 0
          %vm2989 = vcmp.ge.s32.totalorder %v2957, 0
          %vm2990 = vcmp.ge.s32.totalorder %v2958, 0
          %vm2991 = vcmp.ge.s32.totalorder %v2959, 0
          %vm2992 = vcmp.ge.s32.totalorder %v2960, 0
          %vm2993 = vcmp.ge.s32.totalorder %v2961, 0
          %vm2994 = vcmp.ge.s32.totalorder %v2962, 0
          %vm2995 = vcmp.ge.s32.totalorder %v2963, 0
          %vm2996 = vcmp.ge.s32.totalorder %v2964, 0
          %vm2997 = vcmp.ge.s32.totalorder %v2965, 0
          %vm2998 = vcmp.ge.s32.totalorder %v2966, 0
          %vm2999 = vcmp.ge.s32.totalorder %v2967, 0
          %vm3000 = vcmp.ge.s32.totalorder %v2968, 0
          %vm3001 = vcmp.ge.s32.totalorder %v2969, 0
          %vm3002 = vcmp.ge.s32.totalorder %v2970, 0
          %vm3003 = vcmp.ge.s32.totalorder %v2971, 0
          %vm3004 = vcmp.ge.s32.totalorder %v2972, 0
          %vm3005 = vcmp.ge.s32.totalorder %v2973, 0
          %vm3006 = vcmp.ge.s32.totalorder %v2974, 0
          %vm3007 = vcmp.ge.s32.totalorder %v2975, 0
          %vm3008 = vcmp.ge.s32.totalorder %v2976, 0
          %vm3009 = vcmp.ge.s32.totalorder %v2977, 0
          %vm3010 = vcmp.ge.s32.totalorder %v2978, 0
          %vm3011 = vcmp.ge.s32.totalorder %v2979, 0
          %vm3012 = vcmp.ge.s32.totalorder %v2980, 0
          %vm3013 = vcmp.ge.s32.totalorder %v2981, 0
          %vm3014 = vcmp.ge.s32.totalorder %v2982, 0
          %v3015 = vsel %vm2983, %v2919, 0.0
          %v3016 = vsel %vm2984, %v2920, 0.0
          %v3017 = vsel %vm2985, %v2921, 0.0
          %v3018 = vsel %vm2986, %v2922, 0.0
          %v3019 = vsel %vm2987, %v2923, 0.0
          %v3020 = vsel %vm2988, %v2924, 0.0
          %v3021 = vsel %vm2989, %v2925, 0.0
          %v3022 = vsel %vm2990, %v2926, 0.0
          %v3023 = vsel %vm2991, %v2927, 0.0
          %v3024 = vsel %vm2992, %v2928, 0.0
          %v3025 = vsel %vm2993, %v2929, 0.0
          %v3026 = vsel %vm2994, %v2930, 0.0
          %v3027 = vsel %vm2995, %v2931, 0.0
          %v3028 = vsel %vm2996, %v2932, 0.0
          %v3029 = vsel %vm2997, %v2933, 0.0
          %v3030 = vsel %vm2998, %v2934, 0.0
          %v3031 = vsel %vm2999, %v2935, 0.0
          %v3032 = vsel %vm3000, %v2936, 0.0
          %v3033 = vsel %vm3001, %v2937, 0.0
          %v3034 = vsel %vm3002, %v2938, 0.0
          %v3035 = vsel %vm3003, %v2939, 0.0
          %v3036 = vsel %vm3004, %v2940, 0.0
          %v3037 = vsel %vm3005, %v2941, 0.0
          %v3038 = vsel %vm3006, %v2942, 0.0
          %v3039 = vsel %vm3007, %v2943, 0.0
          %v3040 = vsel %vm3008, %v2944, 0.0
          %v3041 = vsel %vm3009, %v2945, 0.0
          %v3042 = vsel %vm3010, %v2946, 0.0
          %v3043 = vsel %vm3011, %v2947, 0.0
          %v3044 = vsel %vm3012, %v2948, 0.0
          %v3045 = vsel %vm3013, %v2949, 0.0
          %v3046 = vsel %vm3014, %v2950, 0.0
          %3047 = vst.msk [vmem:[%s352] sm:$0xff] %vm1507, %v3015
          %3048 = vst.msk [vmem:[%s352 + $0x8] sm:$0xff] %vm1507, %v3016
          %3049 = vst.msk [vmem:[%s352 + $0x10] sm:$0xff] %vm1507, %v3017
          %3050 = vst.msk [vmem:[%s352 + $0x18] sm:$0xff] %vm1507, %v3018
          %3051 = vst.msk [vmem:[%s352 + $0x20] sm:$0xff] %vm1507, %v3019
          %3052 = vst.msk [vmem:[%s352 + $0x28] sm:$0xff] %vm1507, %v3020
          %3053 = vst.msk [vmem:[%s352 + $0x30] sm:$0xff] %vm1507, %v3021
          %3054 = vst.msk [vmem:[%s352 + $0x38] sm:$0xff] %vm1507, %v3022
          %3055 = vst.msk [vmem:[%s352 + $0x40] sm:$0xff] %vm1507, %v3023
          %3056 = vst.msk [vmem:[%s352 + $0x48] sm:$0xff] %vm1507, %v3024
          %3057 = vst.msk [vmem:[%s352 + $0x50] sm:$0xff] %vm1507, %v3025
          %3058 = vst.msk [vmem:[%s352 + $0x58] sm:$0xff] %vm1507, %v3026
          %3059 = vst.msk [vmem:[%s352 + $0x60] sm:$0xff] %vm1507, %v3027
          %3060 = vst.msk [vmem:[%s352 + $0x68] sm:$0xff] %vm1507, %v3028
          %3061 = vst.msk [vmem:[%s352 + $0x70] sm:$0xff] %vm1507, %v3029
          %3062 = vst.msk [vmem:[%s352 + $0x78] sm:$0xff] %vm1507, %v3030
          %3063 = vst.msk [vmem:[%s352 + $0x80] sm:$0xff] %vm1507, %v3031
          %3064 = vst.msk [vmem:[%s352 + $0x88] sm:$0xff] %vm1507, %v3032
          %3065 = vst.msk [vmem:[%s352 + $0x90] sm:$0xff] %vm1507, %v3033
          %3066 = vst.msk [vmem:[%s352 + $0x98] sm:$0xff] %vm1507, %v3034
          %3067 = vst.msk [vmem:[%s352 + $0xa0] sm:$0xff] %vm1507, %v3035
          %3068 = vst.msk [vmem:[%s352 + $0xa8] sm:$0xff] %vm1507, %v3036
          %3069 = vst.msk [vmem:[%s352 + $0xb0] sm:$0xff] %vm1507, %v3037
          %3070 = vst.msk [vmem:[%s352 + $0xb8] sm:$0xff] %vm1507, %v3038
          %3071 = vst.msk [vmem:[%s352 + $0xc0] sm:$0xff] %vm1507, %v3039
          %3072 = vst.msk [vmem:[%s352 + $0xc8] sm:$0xff] %vm1507, %v3040
          %3073 = vst.msk [vmem:[%s352 + $0xd0] sm:$0xff] %vm1507, %v3041
          %3074 = vst.msk [vmem:[%s352 + $0xd8] sm:$0xff] %vm1507, %v3042
          %3075 = vst.msk [vmem:[%s352 + $0xe0] sm:$0xff] %vm1507, %v3043
          %3076 = vst.msk [vmem:[%s352 + $0xe8] sm:$0xff] %vm1507, %v3044
          %3077 = vst.msk [vmem:[%s352 + $0xf0] sm:$0xff] %vm1507, %v3045
          %3078 = vst.msk [vmem:[%s352 + $0xf8] sm:$0xff] %vm1507, %v3046
        $region52: #{tpu_custom_call.1} parent=35 // pred_fallthru
          _
        %s3079 = smul.u32 32, %s39
        %p3080 = scmp.lt.s32.totalorder %s38, 5
        %s3081 = scalar_select %p3080, %s38, 5
        %p3082 = scmp.lt.s32.totalorder %s3079, 31
        %s3083 = scalar_select %p3082, %s3079, 31
        %s3084 = smul.addr %s3081, 32
        %s3085 = sadd.s32 %s3083, %s3084
        %s3086 = smul.addr %s3085, 8
        %s3087 = scalar_lea.vmem %s6, %s3086
        // Predicated region
        $region53: #{tpu_custom_call.1} parent=35 // pred_check
          %p3088 = pneg %p182
        $region54: #{tpu_custom_call.1} parent=35 // pred_check_branch
          %3090 = sbr.rel (%p3088) target = $region56
        $region55: #{tpu_custom_call.1} parent=35 // pred_region
          %s3091 = smul.u32 32, %s39
        $region56: #{tpu_custom_call.1} parent=35 // pred_fallthru
          _
      $region36: #{tpu_custom_call.1} parent=5 // pred_fallthru
        _
      %p3092 = scmp.le.s32.totalorder 2, %s28
      // Predicated region
      $region57: #{tpu_custom_call.1} parent=5 // pred_check
        %p3093 = pneg %p3092
      $region58: #{tpu_custom_call.1} parent=5 // pred_check_branch
        %3095 = sbr.rel (%p3093) target = $region60
      $region59: #{tpu_custom_call.1} parent=5 // pred_region
        %s3096 = ssub.s32 %s28, 2
        // Predicated region
        $region61: #{tpu_custom_call.1} parent=59 // pred_check
          %p3097 = pneg %p188
        $region62: #{tpu_custom_call.1} parent=59 // pred_check_branch
          %3099 = sbr.rel (%p3097) target = $region64
        $region63: #{tpu_custom_call.1} parent=59 // pred_region
          %s3100 = smul.u32 32, %s42
          %p3101 = scmp.lt.s32.totalorder %s41, 5
          %s3102 = scalar_select %p3101, %s41, 5
          %p3103 = scmp.lt.s32.totalorder %s3100, 31
          %s3104 = scalar_select %p3103, %s3100, 31
          %s3105 = smul.addr %s3102, 32
          %s3106 = sadd.s32 %s3104, %s3105
          %s3107 = smul.addr %s3106, 8
          %s3108 = scalar_lea.vmem %s6, %s3107
        $region64: #{tpu_custom_call.1} parent=59 // pred_fallthru
          _
      $region60: #{tpu_custom_call.1} parent=5 // pred_fallthru
        _
    $region6: #{tpu_custom_call.1} parent=1 // loop_footer
      %s32 = sadd.s32 1, %s28
    $region7: #{tpu_custom_call.1} parent=1 // loop_footer_branch
      %27 = sbr.rel target = $region3
    $region8: #{tpu_custom_call.1} parent=1 // loop_exit
      _
    %3109 = vsyncpa [#allocation10], 1
    %s3110 = scalar_lea.sflag [#allocation10], 1
    %3111 = vsyncpa %s3110, 1
    %3112 = vsyncpa [#allocation12], 1
    %s3113 = scalar_lea.sflag [#allocation12], 1
    %3114 = vsyncpa %s3113, 1

</llo_original>
